<compile_context>
chip_gen: v5e
topology: v5e:2x2
jax: 0.10.0
libtpu: 0.0.40
codegen_flags: <defaults>
</compile_context>

<pallas_src>
import numpy as np

import jax
import jax.numpy as jnp
from jax.experimental import pallas as pl
from jax.experimental.pallas import tpu as pltpu  # noqa: F401  (kept for TPU-specific tuning hooks)

_EPS = 1e-5  # nn.BatchNorm2d default eps


# ----------------------------------------------------------------------------
# Host-side (trace-time) DFT matrices: rfft2 / irfft2 (norm='ortho') as real
# matmuls so the FourierUnit "FFTs" run on the MXU inside the fused kernel.
# ----------------------------------------------------------------------------
def _rfft2_mats(H, W):
    """Real 2-D DFT (ortho) as real matrices.

      forward :  Xre = x @ dre ,  Xim = x @ dim         x      : (..., H*W)  -> (..., H*Wf)
      inverse :  y   = Yre @ idre + Yim @ idim          Yre/Yim: (..., H*Wf) -> (..., H*W)

    Matches torch.fft.rfft2 / irfft2(norm='ortho'), including irfft2's implicit
    dropping of the imaginary parts of the f=0 / f=W/2 bins.
    """
    Wf = W // 2 + 1
    h = np.arange(H)[:, None, None, None]
    w = np.arange(W)[None, :, None, None]
    k = np.arange(H)[None, None, :, None]
    f = np.arange(Wf)[None, None, None, :]
    ang = 2.0 * np.pi * (h * k / H + w * f / W)          # (H, W, H, Wf) indexed [h, w, k, f]
    s = 1.0 / np.sqrt(H * W)
    dre = (np.cos(ang) * s).reshape(H * W, H * Wf)
    dim = (-np.sin(ang) * s).reshape(H * W, H * Wf)
    c = np.full((Wf,), 2.0)                              # Hermitian doubling weights
    c[0] = 1.0
    if W % 2 == 0:
        c[-1] = 1.0
    idre = (np.cos(ang) * c * s).reshape(H * W, H * Wf).T.copy()
    idim = (-np.sin(ang) * c * s).reshape(H * W, H * Wf).T.copy()
    return dre, dim, idre, idim


def _lfu_mats(H, W):
    """Local-FourierUnit matrices with the torch split/cat (forward) and 2x2
    repeat (inverse) shuffles folded in.

      qdre/qdim  : (4, H*W, Fh)  per-quadrant forward DFT that picks its
                   quadrant straight out of the full flattened (H*W) grid
                   (quadrant order matches torch: (L,T), (L,B), (R,T), (R,B))
      tidre/tidim: (Fh, H*W)     inverse DFT whose columns are already 2x2 tiled
    """
    Hh, Wh = H // 2, W // 2
    dre_h, dim_h, idre_h, idim_h = _rfft2_mats(Hh, Wh)
    Fh = idre_h.shape[0]
    qdre = np.zeros((4, H * W, Fh), np.float64)
    qdim = np.zeros((4, H * W, Fh), np.float64)
    for q in range(4):
        wq, hq = q // 2, q % 2
        rows = ((np.arange(Hh)[:, None] + hq * Hh) * W +
                (np.arange(Wh)[None, :] + wq * Wh)).reshape(-1)
        qdre[q, rows, :] = dre_h
        qdim[q, rows, :] = dim_h
    col = ((np.arange(H) % Hh)[:, None] * Wh + (np.arange(W) % Wh)[None, :]).reshape(-1)
    tidre = idre_h[:, col]
    tidim = idim_h[:, col]
    return qdre, qdim, tidre, tidim


# ----------------------------------------------------------------------------
# In-kernel helper: training-mode BatchNorm (batch stats, biased variance,
# two-pass) + ReLU, over a list of per-sample (C, L) slabs.
# ----------------------------------------------------------------------------
def _bn_relu(parts, gamma, beta, count):
    inv = jnp.float32(1.0 / count)
    mean = sum(jnp.sum(p, axis=1, keepdims=True) for p in parts) * inv
    var = sum(jnp.sum(jnp.square(p - mean), axis=1, keepdims=True) for p in parts) * inv
    scale = gamma * jax.lax.rsqrt(var + _EPS)            # EUP rsqrt
    shift = beta - mean * scale
    return [jnp.maximum(p * scale + shift, 0.0) for p in parts]


# ----------------------------------------------------------------------------
# The single fused FFConvSet kernel
# ----------------------------------------------------------------------------
def _build_ffc_kernel(N, H, W, in_cl, in_cg, out_cl, out_cg):
    C1 = out_cg // 2               # SpectralTransform bottleneck channels
    cq = C1 // 4                   # source channels feeding the local Fourier unit
    HW = H * W
    F = H * (W // 2 + 1)           # rfft2 bins of the full grid
    Fh = (H // 2) * (W // 4 + 1)   # rfft2 bins of one quadrant

    def kernel(xl_ref, xg_ref,
               w_l2l_ref, w_g2l_ref, w_c1_ref, w_fu_ref, w_lfu_ref,
               w_l2g_ref, w_c2_ref,
               g_loc_ref, b_loc_ref, g_c1_ref, b_c1_ref,
               g_fu_ref, b_fu_ref, g_lfu_ref, b_lfu_ref,
               g_glo_ref, b_glo_ref,
               fdre_ref, fdim_ref, fidre_ref, fidim_ref,
               qdre_ref, qdim_ref, tidre_ref, tidim_ref,
               out_l_ref, out_g_ref):
        dot = lambda a, b: jnp.dot(a, b, preferred_element_type=jnp.float32)

        xl = [xl_ref[n] for n in range(N)]                 # (in_cl, HW) per sample
        xg = [xg_ref[n] for n in range(N)]                 # (in_cg, HW)

        # --- x_local = ReLU(BN(convl2l(x_l) + convg2l(x_g))) ------------------
        w_l2l = w_l2l_ref[...]
        w_g2l = w_g2l_ref[...]
        yloc = [dot(w_l2l, xl[n]) + dot(w_g2l, xg[n]) for n in range(N)]
        yloc = _bn_relu(yloc, g_loc_ref[...], b_loc_ref[...], N * HW)
        for n in range(N):
            out_l_ref[n] = yloc[n]

        # --- SpectralTransform.conv1: x1 = ReLU(BN(conv1(x_g))) ---------------
        w_c1 = w_c1_ref[...]
        x1 = [dot(w_c1, xg[n]) for n in range(N)]
        x1 = _bn_relu(x1, g_c1_ref[...], b_c1_ref[...], N * HW)

        # --- FourierUnit: rfft2 (DFT matmul) -> 1x1conv+BN+ReLU -> irfft2 -----
        fdre, fdim = fdre_ref[...], fdim_ref[...]
        w_fu = w_fu_ref[...]
        yf = []
        for n in range(N):
            zre = dot(x1[n], fdre)                         # (C1, F)  real part
            zim = dot(x1[n], fdim)                         # (C1, F)  imag part
            # conv over channels [re ; im] done as two partial matmuls (no concat)
            yf.append(dot(w_fu[:, :C1], zre) + dot(w_fu[:, C1:], zim))   # (2*C1, F)
        yf = _bn_relu(yf, g_fu_ref[...], b_fu_ref[...], N * F)
        fidre, fidim = fidre_ref[...], fidim_ref[...]
        fu = [dot(yf[n][:C1, :], fidre) + dot(yf[n][C1:, :], fidim)
              for n in range(N)]                           # (C1, HW)

        # --- Local FourierUnit: quadrant split + 2x2 tile folded into matrices -
        w_lfu = w_lfu_ref[...]
        yl2 = []
        for n in range(N):
            src = x1[n][:cq, :]                            # (cq, HW)
            zre = jnp.concatenate([dot(src, qdre_ref[q]) for q in range(4)], axis=0)
            zim = jnp.concatenate([dot(src, qdim_ref[q]) for q in range(4)], axis=0)
            yl2.append(dot(w_lfu[:, :C1], zre) + dot(w_lfu[:, C1:], zim))  # (2*C1, Fh)
        yl2 = _bn_relu(yl2, g_lfu_ref[...], b_lfu_ref[...], N * Fh)
        tidre, tidim = tidre_ref[...], tidim_ref[...]
        xs = [dot(yl2[n][:C1, :], tidre) + dot(yl2[n][C1:, :], tidim)
              for n in range(N)]                           # (C1, HW), already 2x2-tiled

        # --- x_global = ReLU(BN(convl2g(x_l) + conv2(x1 + fu + xs))) ----------
        w_l2g = w_l2g_ref[...]
        w_c2 = w_c2_ref[...]
        yglo = [dot(w_l2g, xl[n]) + dot(w_c2, x1[n] + fu[n] + xs[n]) for n in range(N)]
        yglo = _bn_relu(yglo, g_glo_ref[...], b_glo_ref[...], N * HW)
        for n in range(N):
            out_g_ref[n] = yglo[n]

    return kernel


# ----------------------------------------------------------------------------
# Forward wrapper: NCHW in / NCHW out, everything else inside ONE pallas_call.
# ----------------------------------------------------------------------------
def ffconvset_forward(params, x_l, x_g):
    """FFConvSet forward (ratio_in = ratio_out = (0.5, 0.5), k=1, stride=1,
    enable_lfu=True).  NCHW in/out; the (N, C, H*W) slabs used internally are
    free reshapes (no transposes)."""
    N, in_cl, H, W = x_l.shape
    in_cg = x_g.shape[1]
    out_cl = params["convl2l_w"].shape[0]
    out_cg = params["convl2g_w"].shape[0]
    st = params["st"]
    C1 = st["conv1_w"].shape[0]
    assert H % 4 == 0 and W % 4 == 0 and C1 % 4 == 0
    HW = H * W

    fdre, fdim, fidre, fidim = (jnp.asarray(m, jnp.float32) for m in _rfft2_mats(H, W))
    qdre, qdim, tidre, tidim = (jnp.asarray(m, jnp.float32) for m in _lfu_mats(H, W))

    def w2d(w):                       # (Co, Ci, 1, 1) -> (Co, Ci)
        return w[:, :, 0, 0].astype(jnp.float32)

    def colv(v):                      # (C,) -> (C, 1)
        return v.reshape(-1, 1).astype(jnp.float32)

    kernel = _build_ffc_kernel(N, H, W, in_cl, in_cg, out_cl, out_cg)
    # Single un-gridded invocation: every operand is a full-array VMEM block
    # (total ~1.3 MiB, safely inside the scoped VMEM limit on v5e/v6e/v7x).
    out_l, out_g = pl.pallas_call(
        kernel,
        out_shape=(jax.ShapeDtypeStruct((N, out_cl, HW), jnp.float32),
                   jax.ShapeDtypeStruct((N, out_cg, HW), jnp.float32)),
    )(
        x_l.reshape(N, in_cl, HW).astype(jnp.float32),
        x_g.reshape(N, in_cg, HW).astype(jnp.float32),
        w2d(params["convl2l_w"]), w2d(params["convg2l_w"]), w2d(st["conv1_w"]),
        w2d(st["fu_w"]), w2d(st["lfu_w"]),
        w2d(params["convl2g_w"]), w2d(st["conv2_w"]),
        colv(params["bn_local_g"]), colv(params["bn_local_b"]),
        colv(st["conv1_bn_g"]), colv(st["conv1_bn_b"]),
        colv(st["fu_bn_g"]), colv(st["fu_bn_b"]),
        colv(st["lfu_bn_g"]), colv(st["lfu_bn_b"]),
        colv(params["bn_global_g"]), colv(params["bn_global_b"]),
        fdre, fdim, fidre, fidim,
        qdre, qdim, tidre, tidim,
    )
    return (out_l.reshape(N, out_cl, H, W), out_g.reshape(N, out_cg, H, W))


# ----------------------------------------------------------------------------
# Pure-JAX reference (jnp.fft path) — used only to validate the kernel.
# ----------------------------------------------------------------------------
def _conv1x1_ref(x, w):
    return jnp.einsum("oi,nihw->nohw", w[:, :, 0, 0], x,
                      precision=jax.lax.Precision.HIGHEST)


def _bn_relu_ref(y, g, b):
    mean = jnp.mean(y, axis=(0, 2, 3), keepdims=True)
    var = jnp.mean(jnp.square(y - mean), axis=(0, 2, 3), keepdims=True)
    yhat = (y - mean) * jax.lax.rsqrt(var + _EPS)
    return jax.nn.relu(yhat * g.reshape(1, -1, 1, 1) + b.reshape(1, -1, 1, 1))


def _fourier_unit_ref(x, w, g, b):
    n, c, h, wd = x.shape
    xf = jnp.fft.rfft2(x, norm="ortho")
    xr = jnp.concatenate([jnp.real(xf), jnp.imag(xf)], axis=1)
    y = _bn_relu_ref(_conv1x1_ref(xr, w), g, b)
    re, im = jnp.split(y, 2, axis=1)
    return jnp.fft.irfft2(jax.lax.complex(re, im), s=(h, wd), norm="ortho")


def ffconvset_reference(params, x_l, x_g):
    st = params["st"]
    out_xl = _conv1x1_ref(x_l, params["convl2l_w"]) + _conv1x1_ref(x_g, params["convg2l_w"])
    x1 = _bn_relu_ref(_conv1x1_ref(x_g, st["conv1_w"]), st["conv1_bn_g"], st["conv1_bn_b"])
    fu = _fourier_unit_ref(x1, st["fu_w"], st["fu_bn_g"], st["fu_bn_b"])
    c1 = x1.shape[1]
    xs = x1[:, : c1 // 4]
    xs = jnp.concatenate(jnp.split(xs, 2, axis=2), axis=1)
    xs = jnp.concatenate(jnp.split(xs, 2, axis=3), axis=1)
    xs = _fourier_unit_ref(xs, st["lfu_w"], st["lfu_bn_g"], st["lfu_bn_b"])
    xs = jnp.tile(xs, (1, 1, 2, 2))
    out_xg = _conv1x1_ref(x_l, params["convl2g_w"]) + _conv1x1_ref(x1 + fu + xs, st["conv2_w"])
    return (_bn_relu_ref(out_xl, params["bn_local_g"], params["bn_local_b"]),
            _bn_relu_ref(out_xg, params["bn_global_g"], params["bn_global_b"]))


# ----------------------------------------------------------------------------
# Deterministic parameter initialization (shapes follow the torch __init__)
# ----------------------------------------------------------------------------
def init_params(key, in_channels, out_channels, ratio_in, ratio_out):
    in_cl = int(in_channels * ratio_in[0])
    in_cg = int(in_channels * ratio_in[1])
    out_cl = int(out_channels * ratio_out[0])
    out_cg = int(out_channels * ratio_out[1])
    ks = jax.random.split(key, 7)

    def conv_w(k, co, ci):
        return 0.1 * jax.random.normal(k, (co, ci, 1, 1), jnp.float32)

    return {
        "convl2l_w": conv_w(ks[0], out_cl, in_cl),
        "convl2g_w": conv_w(ks[1], out_cg, in_cl),
        "convg2l_w": conv_w(ks[2], out_cl, in_cg),
        "st": {
            "conv1_w": conv_w(ks[3], out_cg // 2, in_cg),
            "conv1_bn_g": jnp.ones((out_cg // 2,), jnp.float32),
            "conv1_bn_b": jnp.zeros((out_cg // 2,), jnp.float32),
            "fu_w": conv_w(ks[4], out_cg, out_cg),      # (C1*2) -> (C1*2)
            "fu_bn_g": jnp.ones((out_cg,), jnp.float32),
            "fu_bn_b": jnp.zeros((out_cg,), jnp.float32),
            "lfu_w": conv_w(ks[5], out_cg, out_cg),
            "lfu_bn_g": jnp.ones((out_cg,), jnp.float32),
            "lfu_bn_b": jnp.zeros((out_cg,), jnp.float32),
            "conv2_w": conv_w(ks[6], out_cg, out_cg // 2),
        },
        "bn_local_g": jnp.ones((out_cl,), jnp.float32),
        "bn_local_b": jnp.zeros((out_cl,), jnp.float32),
        "bn_global_g": jnp.ones((out_cg,), jnp.float32),
        "bn_global_b": jnp.zeros((out_cg,), jnp.float32),
    }


if __name__ == "__main__":
    # FFConvSet(in_channels=8, out_channels=16, kernel_size=1,
    #           ratio_in=(0.5, 0.5), ratio_out=(0.5, 0.5), stride=1,
    #           padding=0, bias=False, enable_lfu=True)
    N, H, W = 2, 16, 16
    in_channels, out_channels = 8, 16
    ratio_in = ratio_out = (0.5, 0.5)
    in_cl = int(in_channels * ratio_in[0])
    in_cg = int(in_channels * ratio_in[1])
    out_cl = int(out_channels * ratio_out[0])
    out_cg = int(out_channels * ratio_out[1])

    key = jax.random.PRNGKey(0)
    kxl, kxg, kp = jax.random.split(key, 3)
    x_l = jax.random.normal(kxl, (N, in_cl, H, W), jnp.float32)
    x_g = jax.random.normal(kxg, (N, in_cg, H, W), jnp.float32)
    params = init_params(kp, in_channels, out_channels, ratio_in, ratio_out)

    fwd = jax.jit(ffconvset_forward)
    x_local, x_global = fwd(params, x_l, x_g)
    jax.block_until_ready((x_local, x_global))

    assert x_local.shape == (N, out_cl, H, W)
    assert x_global.shape == (N, out_cg, H, W)
    assert bool(jnp.all(jnp.isfinite(x_local)))
    assert bool(jnp.all(jnp.isfinite(x_global)))

    # Validate against the jnp.fft reference (tolerance loose enough for MXU
    # matmul rounding, tight enough to catch any structural / DFT mistake).
    r_local, r_global = jax.jit(ffconvset_reference)(params, x_l, x_g)
    assert float(jnp.max(jnp.abs(x_local - r_local))) < 0.1
    assert float(jnp.max(jnp.abs(x_global - r_global))) < 0.1

    print("KERNEL_OK")
</pallas_src>

<mosaic_0001>
module attributes {stable_mosaic.version = 11 : i64} {
  func.func @kernel(%arg0: memref<2x4x256xf32, #tpu.memory_space<vmem>>, %arg1: memref<2x4x256xf32, #tpu.memory_space<vmem>>, %arg2: memref<8x4xf32, #tpu.memory_space<vmem>>, %arg3: memref<8x4xf32, #tpu.memory_space<vmem>>, %arg4: memref<4x4xf32, #tpu.memory_space<vmem>>, %arg5: memref<8x8xf32, #tpu.memory_space<vmem>>, %arg6: memref<8x8xf32, #tpu.memory_space<vmem>>, %arg7: memref<8x4xf32, #tpu.memory_space<vmem>>, %arg8: memref<8x4xf32, #tpu.memory_space<vmem>>, %arg9: memref<8x1xf32, #tpu.memory_space<vmem>>, %arg10: memref<8x1xf32, #tpu.memory_space<vmem>>, %arg11: memref<4x1xf32, #tpu.memory_space<vmem>>, %arg12: memref<4x1xf32, #tpu.memory_space<vmem>>, %arg13: memref<8x1xf32, #tpu.memory_space<vmem>>, %arg14: memref<8x1xf32, #tpu.memory_space<vmem>>, %arg15: memref<8x1xf32, #tpu.memory_space<vmem>>, %arg16: memref<8x1xf32, #tpu.memory_space<vmem>>, %arg17: memref<8x1xf32, #tpu.memory_space<vmem>>, %arg18: memref<8x1xf32, #tpu.memory_space<vmem>>, %arg19: memref<256x144xf32, #tpu.memory_space<vmem>>, %arg20: memref<256x144xf32, #tpu.memory_space<vmem>>, %arg21: memref<144x256xf32, #tpu.memory_space<vmem>>, %arg22: memref<144x256xf32, #tpu.memory_space<vmem>>, %arg23: memref<4x256x40xf32, #tpu.memory_space<vmem>>, %arg24: memref<4x256x40xf32, #tpu.memory_space<vmem>>, %arg25: memref<40x256xf32, #tpu.memory_space<vmem>>, %arg26: memref<40x256xf32, #tpu.memory_space<vmem>>, %arg27: memref<2x8x256xf32, #tpu.memory_space<vmem>>, %arg28: memref<2x8x256xf32, #tpu.memory_space<vmem>>) attributes {dimension_semantics = [], scalar_prefetch = 0 : i64, scratch_operands = 0 : i64, tpu.core_type = #tpu.core_type<tc>} {
    %c0 = arith.constant 0 : index
    %c0_0 = arith.constant 0 : index
    %c0_1 = arith.constant 0 : index
    %0 = vector.load %arg0[%c0, %c0_0, %c0_1] : memref<2x4x256xf32, #tpu.memory_space<vmem>>, vector<1x4x256xf32>
    %1 = vector.shape_cast %0 : vector<1x4x256xf32> to vector<4x256xf32>
    %c1 = arith.constant 1 : index
    %c0_2 = arith.constant 0 : index
    %c0_3 = arith.constant 0 : index
    %2 = vector.load %arg0[%c1, %c0_2, %c0_3] : memref<2x4x256xf32, #tpu.memory_space<vmem>>, vector<1x4x256xf32>
    %3 = vector.shape_cast %2 : vector<1x4x256xf32> to vector<4x256xf32>
    %c0_4 = arith.constant 0 : index
    %c0_5 = arith.constant 0 : index
    %c0_6 = arith.constant 0 : index
    %4 = vector.load %arg1[%c0_4, %c0_5, %c0_6] : memref<2x4x256xf32, #tpu.memory_space<vmem>>, vector<1x4x256xf32>
    %5 = vector.shape_cast %4 : vector<1x4x256xf32> to vector<4x256xf32>
    %c1_7 = arith.constant 1 : index
    %c0_8 = arith.constant 0 : index
    %c0_9 = arith.constant 0 : index
    %6 = vector.load %arg1[%c1_7, %c0_8, %c0_9] : memref<2x4x256xf32, #tpu.memory_space<vmem>>, vector<1x4x256xf32>
    %7 = vector.shape_cast %6 : vector<1x4x256xf32> to vector<4x256xf32>
    %c0_10 = arith.constant 0 : index
    %c0_11 = arith.constant 0 : index
    %8 = vector.load %arg2[%c0_10, %c0_11] : memref<8x4xf32, #tpu.memory_space<vmem>>, vector<8x4xf32>
    %c0_12 = arith.constant 0 : index
    %c0_13 = arith.constant 0 : index
    %9 = vector.load %arg3[%c0_12, %c0_13] : memref<8x4xf32, #tpu.memory_space<vmem>>, vector<8x4xf32>
    %cst = arith.constant dense<0.000000e+00> : vector<8x256xf32>
    %10 = tpu.matmul %8, %1, %cst {dimension_numbers = #tpu.dot_dimension_numbers<[1], [0], [0], [1], [0, 0, 1, 1], [], []>} : vector<8x4xf32>, vector<4x256xf32>, vector<8x256xf32> -> vector<8x256xf32>
    %cst_14 = arith.constant dense<0.000000e+00> : vector<8x256xf32>
    %11 = tpu.matmul %9, %5, %cst_14 {dimension_numbers = #tpu.dot_dimension_numbers<[1], [0], [0], [1], [0, 0, 1, 1], [], []>} : vector<8x4xf32>, vector<4x256xf32>, vector<8x256xf32> -> vector<8x256xf32>
    %12 = arith.addf %10, %11 : vector<8x256xf32>
    %cst_15 = arith.constant dense<0.000000e+00> : vector<8x256xf32>
    %13 = tpu.matmul %8, %3, %cst_15 {dimension_numbers = #tpu.dot_dimension_numbers<[1], [0], [0], [1], [0, 0, 1, 1], [], []>} : vector<8x4xf32>, vector<4x256xf32>, vector<8x256xf32> -> vector<8x256xf32>
    %cst_16 = arith.constant dense<0.000000e+00> : vector<8x256xf32>
    %14 = tpu.matmul %9, %7, %cst_16 {dimension_numbers = #tpu.dot_dimension_numbers<[1], [0], [0], [1], [0, 0, 1, 1], [], []>} : vector<8x4xf32>, vector<4x256xf32>, vector<8x256xf32> -> vector<8x256xf32>
    %15 = arith.addf %13, %14 : vector<8x256xf32>
    %c0_17 = arith.constant 0 : index
    %c0_18 = arith.constant 0 : index
    %16 = vector.load %arg9[%c0_17, %c0_18] : memref<8x1xf32, #tpu.memory_space<vmem>>, vector<8x1xf32>
    %c0_19 = arith.constant 0 : index
    %c0_20 = arith.constant 0 : index
    %17 = vector.load %arg10[%c0_19, %c0_20] : memref<8x1xf32, #tpu.memory_space<vmem>>, vector<8x1xf32>
    %cst_21 = arith.constant dense<0.000000e+00> : vector<8xf32>
    %18 = vector.multi_reduction <add>, %12, %cst_21 [1] : vector<8x256xf32> to vector<8xf32>
    %19 = vector.shape_cast %18 : vector<8xf32> to vector<8x1xf32>
    %cst_22 = arith.constant 0.000000e+00 : f32
    %20 = vector.broadcast %cst_22 : f32 to vector<8x1xf32>
    %21 = arith.addf %20, %19 : vector<8x1xf32>
    %cst_23 = arith.constant dense<0.000000e+00> : vector<8xf32>
    %22 = vector.multi_reduction <add>, %15, %cst_23 [1] : vector<8x256xf32> to vector<8xf32>
    %23 = vector.shape_cast %22 : vector<8xf32> to vector<8x1xf32>
    %24 = arith.addf %21, %23 : vector<8x1xf32>
    %cst_24 = arith.constant 0.001953125 : f32
    %25 = vector.broadcast %cst_24 : f32 to vector<8x1xf32>
    %26 = arith.mulf %24, %25 : vector<8x1xf32>
    %27 = vector.broadcast %26 : vector<8x1xf32> to vector<8x256xf32>
    %28 = arith.subf %12, %27 : vector<8x256xf32>
    %29 = arith.mulf %28, %28 : vector<8x256xf32>
    %cst_25 = arith.constant dense<0.000000e+00> : vector<8xf32>
    %30 = vector.multi_reduction <add>, %29, %cst_25 [1] : vector<8x256xf32> to vector<8xf32>
    %31 = vector.shape_cast %30 : vector<8xf32> to vector<8x1xf32>
    %cst_26 = arith.constant 0.000000e+00 : f32
    %32 = vector.broadcast %cst_26 : f32 to vector<8x1xf32>
    %33 = arith.addf %32, %31 : vector<8x1xf32>
    %34 = vector.broadcast %26 : vector<8x1xf32> to vector<8x256xf32>
    %35 = arith.subf %15, %34 : vector<8x256xf32>
    %36 = arith.mulf %35, %35 : vector<8x256xf32>
    %cst_27 = arith.constant dense<0.000000e+00> : vector<8xf32>
    %37 = vector.multi_reduction <add>, %36, %cst_27 [1] : vector<8x256xf32> to vector<8xf32>
    %38 = vector.shape_cast %37 : vector<8xf32> to vector<8x1xf32>
    %39 = arith.addf %33, %38 : vector<8x1xf32>
    %cst_28 = arith.constant 0.001953125 : f32
    %40 = vector.broadcast %cst_28 : f32 to vector<8x1xf32>
    %41 = arith.mulf %39, %40 : vector<8x1xf32>
    %cst_29 = arith.constant 9.99999974E-6 : f32
    %42 = vector.broadcast %cst_29 : f32 to vector<8x1xf32>
    %43 = arith.addf %41, %42 : vector<8x1xf32>
    %44 = math.rsqrt %43 : vector<8x1xf32>
    %45 = arith.mulf %16, %44 : vector<8x1xf32>
    %46 = arith.mulf %26, %45 : vector<8x1xf32>
    %47 = arith.subf %17, %46 : vector<8x1xf32>
    %48 = vector.broadcast %45 : vector<8x1xf32> to vector<8x256xf32>
    %49 = arith.mulf %12, %48 : vector<8x256xf32>
    %50 = vector.broadcast %47 : vector<8x1xf32> to vector<8x256xf32>
    %51 = arith.addf %49, %50 : vector<8x256xf32>
    %cst_30 = arith.constant 0.000000e+00 : f32
    %52 = vector.broadcast %cst_30 : f32 to vector<8x256xf32>
    %53 = arith.maximumf %51, %52 : vector<8x256xf32>
    %54 = vector.broadcast %45 : vector<8x1xf32> to vector<8x256xf32>
    %55 = arith.mulf %15, %54 : vector<8x256xf32>
    %56 = vector.broadcast %47 : vector<8x1xf32> to vector<8x256xf32>
    %57 = arith.addf %55, %56 : vector<8x256xf32>
    %cst_31 = arith.constant 0.000000e+00 : f32
    %58 = vector.broadcast %cst_31 : f32 to vector<8x256xf32>
    %59 = arith.maximumf %57, %58 : vector<8x256xf32>
    %c0_32 = arith.constant 0 : index
    %c0_33 = arith.constant 0 : index
    %c0_34 = arith.constant 0 : index
    %60 = vector.load %arg27[%c0_32, %c0_33, %c0_34] : memref<2x8x256xf32, #tpu.memory_space<vmem>>, vector<1x8x256xf32>
    %61 = vector.shape_cast %60 : vector<1x8x256xf32> to vector<8x256xf32>
    %62 = vector.shape_cast %53 : vector<8x256xf32> to vector<1x8x256xf32>
    tpu.vector_store %arg27[%c0_32, %c0_33, %c0_34], %62 {strides = array<i32>} : memref<2x8x256xf32, #tpu.memory_space<vmem>>, vector<1x8x256xf32>,
    %c1_35 = arith.constant 1 : index
    %c0_36 = arith.constant 0 : index
    %c0_37 = arith.constant 0 : index
    %63 = vector.load %arg27[%c1_35, %c0_36, %c0_37] : memref<2x8x256xf32, #tpu.memory_space<vmem>>, vector<1x8x256xf32>
    %64 = vector.shape_cast %63 : vector<1x8x256xf32> to vector<8x256xf32>
    %65 = vector.shape_cast %59 : vector<8x256xf32> to vector<1x8x256xf32>
    tpu.vector_store %arg27[%c1_35, %c0_36, %c0_37], %65 {strides = array<i32>} : memref<2x8x256xf32, #tpu.memory_space<vmem>>, vector<1x8x256xf32>,
    %c0_38 = arith.constant 0 : index
    %c0_39 = arith.constant 0 : index
    %66 = vector.load %arg4[%c0_38, %c0_39] : memref<4x4xf32, #tpu.memory_space<vmem>>, vector<4x4xf32>
    %cst_40 = arith.constant dense<0.000000e+00> : vector<4x256xf32>
    %67 = tpu.matmul %66, %5, %cst_40 {dimension_numbers = #tpu.dot_dimension_numbers<[1], [0], [0], [1], [0, 0, 1, 1], [], []>} : vector<4x4xf32>, vector<4x256xf32>, vector<4x256xf32> -> vector<4x256xf32>
    %cst_41 = arith.constant dense<0.000000e+00> : vector<4x256xf32>
    %68 = tpu.matmul %66, %7, %cst_41 {dimension_numbers = #tpu.dot_dimension_numbers<[1], [0], [0], [1], [0, 0, 1, 1], [], []>} : vector<4x4xf32>, vector<4x256xf32>, vector<4x256xf32> -> vector<4x256xf32>
    %c0_42 = arith.constant 0 : index
    %c0_43 = arith.constant 0 : index
    %69 = vector.load %arg11[%c0_42, %c0_43] : memref<4x1xf32, #tpu.memory_space<vmem>>, vector<4x1xf32>
    %c0_44 = arith.constant 0 : index
    %c0_45 = arith.constant 0 : index
    %70 = vector.load %arg12[%c0_44, %c0_45] : memref<4x1xf32, #tpu.memory_space<vmem>>, vector<4x1xf32>
    %cst_46 = arith.constant dense<0.000000e+00> : vector<4xf32>
    %71 = vector.multi_reduction <add>, %67, %cst_46 [1] : vector<4x256xf32> to vector<4xf32>
    %72 = vector.shape_cast %71 : vector<4xf32> to vector<4x1xf32>
    %cst_47 = arith.constant 0.000000e+00 : f32
    %73 = vector.broadcast %cst_47 : f32 to vector<4x1xf32>
    %74 = arith.addf %73, %72 : vector<4x1xf32>
    %cst_48 = arith.constant dense<0.000000e+00> : vector<4xf32>
    %75 = vector.multi_reduction <add>, %68, %cst_48 [1] : vector<4x256xf32> to vector<4xf32>
    %76 = vector.shape_cast %75 : vector<4xf32> to vector<4x1xf32>
    %77 = arith.addf %74, %76 : vector<4x1xf32>
    %cst_49 = arith.constant 0.001953125 : f32
    %78 = vector.broadcast %cst_49 : f32 to vector<4x1xf32>
    %79 = arith.mulf %77, %78 : vector<4x1xf32>
    %80 = vector.broadcast %79 : vector<4x1xf32> to vector<4x256xf32>
    %81 = arith.subf %67, %80 : vector<4x256xf32>
    %82 = arith.mulf %81, %81 : vector<4x256xf32>
    %cst_50 = arith.constant dense<0.000000e+00> : vector<4xf32>
    %83 = vector.multi_reduction <add>, %82, %cst_50 [1] : vector<4x256xf32> to vector<4xf32>
    %84 = vector.shape_cast %83 : vector<4xf32> to vector<4x1xf32>
    %cst_51 = arith.constant 0.000000e+00 : f32
    %85 = vector.broadcast %cst_51 : f32 to vector<4x1xf32>
    %86 = arith.addf %85, %84 : vector<4x1xf32>
    %87 = vector.broadcast %79 : vector<4x1xf32> to vector<4x256xf32>
    %88 = arith.subf %68, %87 : vector<4x256xf32>
    %89 = arith.mulf %88, %88 : vector<4x256xf32>
    %cst_52 = arith.constant dense<0.000000e+00> : vector<4xf32>
    %90 = vector.multi_reduction <add>, %89, %cst_52 [1] : vector<4x256xf32> to vector<4xf32>
    %91 = vector.shape_cast %90 : vector<4xf32> to vector<4x1xf32>
    %92 = arith.addf %86, %91 : vector<4x1xf32>
    %cst_53 = arith.constant 0.001953125 : f32
    %93 = vector.broadcast %cst_53 : f32 to vector<4x1xf32>
    %94 = arith.mulf %92, %93 : vector<4x1xf32>
    %cst_54 = arith.constant 9.99999974E-6 : f32
    %95 = vector.broadcast %cst_54 : f32 to vector<4x1xf32>
    %96 = arith.addf %94, %95 : vector<4x1xf32>
    %97 = math.rsqrt %96 : vector<4x1xf32>
    %98 = arith.mulf %69, %97 : vector<4x1xf32>
    %99 = arith.mulf %79, %98 : vector<4x1xf32>
    %100 = arith.subf %70, %99 : vector<4x1xf32>
    %101 = vector.broadcast %98 : vector<4x1xf32> to vector<4x256xf32>
    %102 = arith.mulf %67, %101 : vector<4x256xf32>
    %103 = vector.broadcast %100 : vector<4x1xf32> to vector<4x256xf32>
    %104 = arith.addf %102, %103 : vector<4x256xf32>
    %cst_55 = arith.constant 0.000000e+00 : f32
    %105 = vector.broadcast %cst_55 : f32 to vector<4x256xf32>
    %106 = arith.maximumf %104, %105 : vector<4x256xf32>
    %107 = vector.broadcast %98 : vector<4x1xf32> to vector<4x256xf32>
    %108 = arith.mulf %68, %107 : vector<4x256xf32>
    %109 = vector.broadcast %100 : vector<4x1xf32> to vector<4x256xf32>
    %110 = arith.addf %108, %109 : vector<4x256xf32>
    %cst_56 = arith.constant 0.000000e+00 : f32
    %111 = vector.broadcast %cst_56 : f32 to vector<4x256xf32>
    %112 = arith.maximumf %110, %111 : vector<4x256xf32>
    %c0_57 = arith.constant 0 : index
    %c0_58 = arith.constant 0 : index
    %113 = vector.load %arg19[%c0_57, %c0_58] : memref<256x144xf32, #tpu.memory_space<vmem>>, vector<256x144xf32>
    %c0_59 = arith.constant 0 : index
    %c0_60 = arith.constant 0 : index
    %114 = vector.load %arg20[%c0_59, %c0_60] : memref<256x144xf32, #tpu.memory_space<vmem>>, vector<256x144xf32>
    %c0_61 = arith.constant 0 : index
    %c0_62 = arith.constant 0 : index
    %115 = vector.load %arg5[%c0_61, %c0_62] : memref<8x8xf32, #tpu.memory_space<vmem>>, vector<8x8xf32>
    %cst_63 = arith.constant dense<0.000000e+00> : vector<4x144xf32>
    %116 = tpu.matmul %106, %113, %cst_63 {dimension_numbers = #tpu.dot_dimension_numbers<[1], [0], [0], [1], [0, 0, 1, 1], [], []>} : vector<4x256xf32>, vector<256x144xf32>, vector<4x144xf32> -> vector<4x144xf32>
    %cst_64 = arith.constant dense<0.000000e+00> : vector<4x144xf32>
    %117 = tpu.matmul %106, %114, %cst_64 {dimension_numbers = #tpu.dot_dimension_numbers<[1], [0], [0], [1], [0, 0, 1, 1], [], []>} : vector<4x256xf32>, vector<256x144xf32>, vector<4x144xf32> -> vector<4x144xf32>
    %118 = vector.extract_strided_slice %115 {offsets = [0, 0], sizes = [8, 4], strides = [1, 1]} : vector<8x8xf32> to vector<8x4xf32>
    %cst_65 = arith.constant dense<0.000000e+00> : vector<8x144xf32>
    %119 = tpu.matmul %118, %116, %cst_65 {dimension_numbers = #tpu.dot_dimension_numbers<[1], [0], [0], [1], [0, 0, 1, 1], [], []>} : vector<8x4xf32>, vector<4x144xf32>, vector<8x144xf32> -> vector<8x144xf32>
    %120 = vector.extract_strided_slice %115 {offsets = [0, 4], sizes = [8, 4], strides = [1, 1]} : vector<8x8xf32> to vector<8x4xf32>
    %cst_66 = arith.constant dense<0.000000e+00> : vector<8x144xf32>
    %121 = tpu.matmul %120, %117, %cst_66 {dimension_numbers = #tpu.dot_dimension_numbers<[1], [0], [0], [1], [0, 0, 1, 1], [], []>} : vector<8x4xf32>, vector<4x144xf32>, vector<8x144xf32> -> vector<8x144xf32>
    %122 = arith.addf %119, %121 : vector<8x144xf32>
    %cst_67 = arith.constant dense<0.000000e+00> : vector<4x144xf32>
    %123 = tpu.matmul %112, %113, %cst_67 {dimension_numbers = #tpu.dot_dimension_numbers<[1], [0], [0], [1], [0, 0, 1, 1], [], []>} : vector<4x256xf32>, vector<256x144xf32>, vector<4x144xf32> -> vector<4x144xf32>
    %cst_68 = arith.constant dense<0.000000e+00> : vector<4x144xf32>
    %124 = tpu.matmul %112, %114, %cst_68 {dimension_numbers = #tpu.dot_dimension_numbers<[1], [0], [0], [1], [0, 0, 1, 1], [], []>} : vector<4x256xf32>, vector<256x144xf32>, vector<4x144xf32> -> vector<4x144xf32>
    %125 = vector.extract_strided_slice %115 {offsets = [0, 0], sizes = [8, 4], strides = [1, 1]} : vector<8x8xf32> to vector<8x4xf32>
    %cst_69 = arith.constant dense<0.000000e+00> : vector<8x144xf32>
    %126 = tpu.matmul %125, %123, %cst_69 {dimension_numbers = #tpu.dot_dimension_numbers<[1], [0], [0], [1], [0, 0, 1, 1], [], []>} : vector<8x4xf32>, vector<4x144xf32>, vector<8x144xf32> -> vector<8x144xf32>
    %127 = vector.extract_strided_slice %115 {offsets = [0, 4], sizes = [8, 4], strides = [1, 1]} : vector<8x8xf32> to vector<8x4xf32>
    %cst_70 = arith.constant dense<0.000000e+00> : vector<8x144xf32>
    %128 = tpu.matmul %127, %124, %cst_70 {dimension_numbers = #tpu.dot_dimension_numbers<[1], [0], [0], [1], [0, 0, 1, 1], [], []>} : vector<8x4xf32>, vector<4x144xf32>, vector<8x144xf32> -> vector<8x144xf32>
    %129 = arith.addf %126, %128 : vector<8x144xf32>
    %c0_71 = arith.constant 0 : index
    %c0_72 = arith.constant 0 : index
    %130 = vector.load %arg13[%c0_71, %c0_72] : memref<8x1xf32, #tpu.memory_space<vmem>>, vector<8x1xf32>
    %c0_73 = arith.constant 0 : index
    %c0_74 = arith.constant 0 : index
    %131 = vector.load %arg14[%c0_73, %c0_74] : memref<8x1xf32, #tpu.memory_space<vmem>>, vector<8x1xf32>
    %cst_75 = arith.constant dense<0.000000e+00> : vector<8xf32>
    %132 = vector.multi_reduction <add>, %122, %cst_75 [1] : vector<8x144xf32> to vector<8xf32>
    %133 = vector.shape_cast %132 : vector<8xf32> to vector<8x1xf32>
    %cst_76 = arith.constant 0.000000e+00 : f32
    %134 = vector.broadcast %cst_76 : f32 to vector<8x1xf32>
    %135 = arith.addf %134, %133 : vector<8x1xf32>
    %cst_77 = arith.constant dense<0.000000e+00> : vector<8xf32>
    %136 = vector.multi_reduction <add>, %129, %cst_77 [1] : vector<8x144xf32> to vector<8xf32>
    %137 = vector.shape_cast %136 : vector<8xf32> to vector<8x1xf32>
    %138 = arith.addf %135, %137 : vector<8x1xf32>
    %cst_78 = arith.constant 0.00347222225 : f32
    %139 = vector.broadcast %cst_78 : f32 to vector<8x1xf32>
    %140 = arith.mulf %138, %139 : vector<8x1xf32>
    %141 = vector.broadcast %140 : vector<8x1xf32> to vector<8x144xf32>
    %142 = arith.subf %122, %141 : vector<8x144xf32>
    %143 = arith.mulf %142, %142 : vector<8x144xf32>
    %cst_79 = arith.constant dense<0.000000e+00> : vector<8xf32>
    %144 = vector.multi_reduction <add>, %143, %cst_79 [1] : vector<8x144xf32> to vector<8xf32>
    %145 = vector.shape_cast %144 : vector<8xf32> to vector<8x1xf32>
    %cst_80 = arith.constant 0.000000e+00 : f32
    %146 = vector.broadcast %cst_80 : f32 to vector<8x1xf32>
    %147 = arith.addf %146, %145 : vector<8x1xf32>
    %148 = vector.broadcast %140 : vector<8x1xf32> to vector<8x144xf32>
    %149 = arith.subf %129, %148 : vector<8x144xf32>
    %150 = arith.mulf %149, %149 : vector<8x144xf32>
    %cst_81 = arith.constant dense<0.000000e+00> : vector<8xf32>
    %151 = vector.multi_reduction <add>, %150, %cst_81 [1] : vector<8x144xf32> to vector<8xf32>
    %152 = vector.shape_cast %151 : vector<8xf32> to vector<8x1xf32>
    %153 = arith.addf %147, %152 : vector<8x1xf32>
    %cst_82 = arith.constant 0.00347222225 : f32
    %154 = vector.broadcast %cst_82 : f32 to vector<8x1xf32>
    %155 = arith.mulf %153, %154 : vector<8x1xf32>
    %cst_83 = arith.constant 9.99999974E-6 : f32
    %156 = vector.broadcast %cst_83 : f32 to vector<8x1xf32>
    %157 = arith.addf %155, %156 : vector<8x1xf32>
    %158 = math.rsqrt %157 : vector<8x1xf32>
    %159 = arith.mulf %130, %158 : vector<8x1xf32>
    %160 = arith.mulf %140, %159 : vector<8x1xf32>
    %161 = arith.subf %131, %160 : vector<8x1xf32>
    %162 = vector.broadcast %159 : vector<8x1xf32> to vector<8x144xf32>
    %163 = arith.mulf %122, %162 : vector<8x144xf32>
    %164 = vector.broadcast %161 : vector<8x1xf32> to vector<8x144xf32>
    %165 = arith.addf %163, %164 : vector<8x144xf32>
    %cst_84 = arith.constant 0.000000e+00 : f32
    %166 = vector.broadcast %cst_84 : f32 to vector<8x144xf32>
    %167 = arith.maximumf %165, %166 : vector<8x144xf32>
    %168 = vector.broadcast %159 : vector<8x1xf32> to vector<8x144xf32>
    %169 = arith.mulf %129, %168 : vector<8x144xf32>
    %170 = vector.broadcast %161 : vector<8x1xf32> to vector<8x144xf32>
    %171 = arith.addf %169, %170 : vector<8x144xf32>
    %cst_85 = arith.constant 0.000000e+00 : f32
    %172 = vector.broadcast %cst_85 : f32 to vector<8x144xf32>
    %173 = arith.maximumf %171, %172 : vector<8x144xf32>
    %c0_86 = arith.constant 0 : index
    %c0_87 = arith.constant 0 : index
    %174 = vector.load %arg21[%c0_86, %c0_87] : memref<144x256xf32, #tpu.memory_space<vmem>>, vector<144x256xf32>
    %c0_88 = arith.constant 0 : index
    %c0_89 = arith.constant 0 : index
    %175 = vector.load %arg22[%c0_88, %c0_89] : memref<144x256xf32, #tpu.memory_space<vmem>>, vector<144x256xf32>
    %176 = vector.extract_strided_slice %167 {offsets = [0, 0], sizes = [4, 144], strides = [1, 1]} : vector<8x144xf32> to vector<4x144xf32>
    %cst_90 = arith.constant dense<0.000000e+00> : vector<4x256xf32>
    %177 = tpu.matmul %176, %174, %cst_90 {dimension_numbers = #tpu.dot_dimension_numbers<[1], [0], [0], [1], [0, 0, 1, 1], [], []>} : vector<4x144xf32>, vector<144x256xf32>, vector<4x256xf32> -> vector<4x256xf32>
    %178 = vector.extract_strided_slice %167 {offsets = [4, 0], sizes = [4, 144], strides = [1, 1]} : vector<8x144xf32> to vector<4x144xf32>
    %cst_91 = arith.constant dense<0.000000e+00> : vector<4x256xf32>
    %179 = tpu.matmul %178, %175, %cst_91 {dimension_numbers = #tpu.dot_dimension_numbers<[1], [0], [0], [1], [0, 0, 1, 1], [], []>} : vector<4x144xf32>, vector<144x256xf32>, vector<4x256xf32> -> vector<4x256xf32>
    %180 = arith.addf %177, %179 : vector<4x256xf32>
    %181 = vector.extract_strided_slice %173 {offsets = [0, 0], sizes = [4, 144], strides = [1, 1]} : vector<8x144xf32> to vector<4x144xf32>
    %cst_92 = arith.constant dense<0.000000e+00> : vector<4x256xf32>
    %182 = tpu.matmul %181, %174, %cst_92 {dimension_numbers = #tpu.dot_dimension_numbers<[1], [0], [0], [1], [0, 0, 1, 1], [], []>} : vector<4x144xf32>, vector<144x256xf32>, vector<4x256xf32> -> vector<4x256xf32>
    %183 = vector.extract_strided_slice %173 {offsets = [4, 0], sizes = [4, 144], strides = [1, 1]} : vector<8x144xf32> to vector<4x144xf32>
    %cst_93 = arith.constant dense<0.000000e+00> : vector<4x256xf32>
    %184 = tpu.matmul %183, %175, %cst_93 {dimension_numbers = #tpu.dot_dimension_numbers<[1], [0], [0], [1], [0, 0, 1, 1], [], []>} : vector<4x144xf32>, vector<144x256xf32>, vector<4x256xf32> -> vector<4x256xf32>
    %185 = arith.addf %182, %184 : vector<4x256xf32>
    %c0_94 = arith.constant 0 : index
    %c0_95 = arith.constant 0 : index
    %186 = vector.load %arg6[%c0_94, %c0_95] : memref<8x8xf32, #tpu.memory_space<vmem>>, vector<8x8xf32>
    %187 = vector.extract_strided_slice %106 {offsets = [0, 0], sizes = [1, 256], strides = [1, 1]} : vector<4x256xf32> to vector<1x256xf32>
    %c0_96 = arith.constant 0 : index
    %c0_97 = arith.constant 0 : index
    %c0_98 = arith.constant 0 : index
    %188 = vector.load %arg23[%c0_96, %c0_97, %c0_98] : memref<4x256x40xf32, #tpu.memory_space<vmem>>, vector<1x256x40xf32>
    %189 = vector.shape_cast %188 : vector<1x256x40xf32> to vector<256x40xf32>
    %cst_99 = arith.constant dense<0.000000e+00> : vector<1x40xf32>
    %190 = tpu.matmul %187, %189, %cst_99 {dimension_numbers = #tpu.dot_dimension_numbers<[1], [0], [0], [1], [0, 0, 1, 1], [], []>} : vector<1x256xf32>, vector<256x40xf32>, vector<1x40xf32> -> vector<1x40xf32>
    %c1_100 = arith.constant 1 : index
    %c0_101 = arith.constant 0 : index
    %c0_102 = arith.constant 0 : index
    %191 = vector.load %arg23[%c1_100, %c0_101, %c0_102] : memref<4x256x40xf32, #tpu.memory_space<vmem>>, vector<1x256x40xf32>
    %192 = vector.shape_cast %191 : vector<1x256x40xf32> to vector<256x40xf32>
    %cst_103 = arith.constant dense<0.000000e+00> : vector<1x40xf32>
    %193 = tpu.matmul %187, %192, %cst_103 {dimension_numbers = #tpu.dot_dimension_numbers<[1], [0], [0], [1], [0, 0, 1, 1], [], []>} : vector<1x256xf32>, vector<256x40xf32>, vector<1x40xf32> -> vector<1x40xf32>
    %c2 = arith.constant 2 : index
    %c0_104 = arith.constant 0 : index
    %c0_105 = arith.constant 0 : index
    %194 = vector.load %arg23[%c2, %c0_104, %c0_105] : memref<4x256x40xf32, #tpu.memory_space<vmem>>, vector<1x256x40xf32>
    %195 = vector.shape_cast %194 : vector<1x256x40xf32> to vector<256x40xf32>
    %cst_106 = arith.constant dense<0.000000e+00> : vector<1x40xf32>
    %196 = tpu.matmul %187, %195, %cst_106 {dimension_numbers = #tpu.dot_dimension_numbers<[1], [0], [0], [1], [0, 0, 1, 1], [], []>} : vector<1x256xf32>, vector<256x40xf32>, vector<1x40xf32> -> vector<1x40xf32>
    %c3 = arith.constant 3 : index
    %c0_107 = arith.constant 0 : index
    %c0_108 = arith.constant 0 : index
    %197 = vector.load %arg23[%c3, %c0_107, %c0_108] : memref<4x256x40xf32, #tpu.memory_space<vmem>>, vector<1x256x40xf32>
    %198 = vector.shape_cast %197 : vector<1x256x40xf32> to vector<256x40xf32>
    %cst_109 = arith.constant dense<0.000000e+00> : vector<1x40xf32>
    %199 = tpu.matmul %187, %198, %cst_109 {dimension_numbers = #tpu.dot_dimension_numbers<[1], [0], [0], [1], [0, 0, 1, 1], [], []>} : vector<1x256xf32>, vector<256x40xf32>, vector<1x40xf32> -> vector<1x40xf32>
    %200 = tpu.concatenate %190, %193, %196, %199 in 0 : vector<1x40xf32>, vector<1x40xf32>, vector<1x40xf32>, vector<1x40xf32> -> vector<4x40xf32>
    %c0_110 = arith.constant 0 : index
    %c0_111 = arith.constant 0 : index
    %c0_112 = arith.constant 0 : index
    %201 = vector.load %arg24[%c0_110, %c0_111, %c0_112] : memref<4x256x40xf32, #tpu.memory_space<vmem>>, vector<1x256x40xf32>
    %202 = vector.shape_cast %201 : vector<1x256x40xf32> to vector<256x40xf32>
    %cst_113 = arith.constant dense<0.000000e+00> : vector<1x40xf32>
    %203 = tpu.matmul %187, %202, %cst_113 {dimension_numbers = #tpu.dot_dimension_numbers<[1], [0], [0], [1], [0, 0, 1, 1], [], []>} : vector<1x256xf32>, vector<256x40xf32>, vector<1x40xf32> -> vector<1x40xf32>
    %c1_114 = arith.constant 1 : index
    %c0_115 = arith.constant 0 : index
    %c0_116 = arith.constant 0 : index
    %204 = vector.load %arg24[%c1_114, %c0_115, %c0_116] : memref<4x256x40xf32, #tpu.memory_space<vmem>>, vector<1x256x40xf32>
    %205 = vector.shape_cast %204 : vector<1x256x40xf32> to vector<256x40xf32>
    %cst_117 = arith.constant dense<0.000000e+00> : vector<1x40xf32>
    %206 = tpu.matmul %187, %205, %cst_117 {dimension_numbers = #tpu.dot_dimension_numbers<[1], [0], [0], [1], [0, 0, 1, 1], [], []>} : vector<1x256xf32>, vector<256x40xf32>, vector<1x40xf32> -> vector<1x40xf32>
    %c2_118 = arith.constant 2 : index
    %c0_119 = arith.constant 0 : index
    %c0_120 = arith.constant 0 : index
    %207 = vector.load %arg24[%c2_118, %c0_119, %c0_120] : memref<4x256x40xf32, #tpu.memory_space<vmem>>, vector<1x256x40xf32>
    %208 = vector.shape_cast %207 : vector<1x256x40xf32> to vector<256x40xf32>
    %cst_121 = arith.constant dense<0.000000e+00> : vector<1x40xf32>
    %209 = tpu.matmul %187, %208, %cst_121 {dimension_numbers = #tpu.dot_dimension_numbers<[1], [0], [0], [1], [0, 0, 1, 1], [], []>} : vector<1x256xf32>, vector<256x40xf32>, vector<1x40xf32> -> vector<1x40xf32>
    %c3_122 = arith.constant 3 : index
    %c0_123 = arith.constant 0 : index
    %c0_124 = arith.constant 0 : index
    %210 = vector.load %arg24[%c3_122, %c0_123, %c0_124] : memref<4x256x40xf32, #tpu.memory_space<vmem>>, vector<1x256x40xf32>
    %211 = vector.shape_cast %210 : vector<1x256x40xf32> to vector<256x40xf32>
    %cst_125 = arith.constant dense<0.000000e+00> : vector<1x40xf32>
    %212 = tpu.matmul %187, %211, %cst_125 {dimension_numbers = #tpu.dot_dimension_numbers<[1], [0], [0], [1], [0, 0, 1, 1], [], []>} : vector<1x256xf32>, vector<256x40xf32>, vector<1x40xf32> -> vector<1x40xf32>
    %213 = tpu.concatenate %203, %206, %209, %212 in 0 : vector<1x40xf32>, vector<1x40xf32>, vector<1x40xf32>, vector<1x40xf32> -> vector<4x40xf32>
    %214 = vector.extract_strided_slice %186 {offsets = [0, 0], sizes = [8, 4], strides = [1, 1]} : vector<8x8xf32> to vector<8x4xf32>
    %cst_126 = arith.constant dense<0.000000e+00> : vector<8x40xf32>
    %215 = tpu.matmul %214, %200, %cst_126 {dimension_numbers = #tpu.dot_dimension_numbers<[1], [0], [0], [1], [0, 0, 1, 1], [], []>} : vector<8x4xf32>, vector<4x40xf32>, vector<8x40xf32> -> vector<8x40xf32>
    %216 = vector.extract_strided_slice %186 {offsets = [0, 4], sizes = [8, 4], strides = [1, 1]} : vector<8x8xf32> to vector<8x4xf32>
    %cst_127 = arith.constant dense<0.000000e+00> : vector<8x40xf32>
    %217 = tpu.matmul %216, %213, %cst_127 {dimension_numbers = #tpu.dot_dimension_numbers<[1], [0], [0], [1], [0, 0, 1, 1], [], []>} : vector<8x4xf32>, vector<4x40xf32>, vector<8x40xf32> -> vector<8x40xf32>
    %218 = arith.addf %215, %217 : vector<8x40xf32>
    %219 = vector.extract_strided_slice %112 {offsets = [0, 0], sizes = [1, 256], strides = [1, 1]} : vector<4x256xf32> to vector<1x256xf32>
    %c0_128 = arith.constant 0 : index
    %c0_129 = arith.constant 0 : index
    %c0_130 = arith.constant 0 : index
    %220 = vector.load %arg23[%c0_128, %c0_129, %c0_130] : memref<4x256x40xf32, #tpu.memory_space<vmem>>, vector<1x256x40xf32>
    %221 = vector.shape_cast %220 : vector<1x256x40xf32> to vector<256x40xf32>
    %cst_131 = arith.constant dense<0.000000e+00> : vector<1x40xf32>
    %222 = tpu.matmul %219, %221, %cst_131 {dimension_numbers = #tpu.dot_dimension_numbers<[1], [0], [0], [1], [0, 0, 1, 1], [], []>} : vector<1x256xf32>, vector<256x40xf32>, vector<1x40xf32> -> vector<1x40xf32>
    %c1_132 = arith.constant 1 : index
    %c0_133 = arith.constant 0 : index
    %c0_134 = arith.constant 0 : index
    %223 = vector.load %arg23[%c1_132, %c0_133, %c0_134] : memref<4x256x40xf32, #tpu.memory_space<vmem>>, vector<1x256x40xf32>
    %224 = vector.shape_cast %223 : vector<1x256x40xf32> to vector<256x40xf32>
    %cst_135 = arith.constant dense<0.000000e+00> : vector<1x40xf32>
    %225 = tpu.matmul %219, %224, %cst_135 {dimension_numbers = #tpu.dot_dimension_numbers<[1], [0], [0], [1], [0, 0, 1, 1], [], []>} : vector<1x256xf32>, vector<256x40xf32>, vector<1x40xf32> -> vector<1x40xf32>
    %c2_136 = arith.constant 2 : index
    %c0_137 = arith.constant 0 : index
    %c0_138 = arith.constant 0 : index
    %226 = vector.load %arg23[%c2_136, %c0_137, %c0_138] : memref<4x256x40xf32, #tpu.memory_space<vmem>>, vector<1x256x40xf32>
    %227 = vector.shape_cast %226 : vector<1x256x40xf32> to vector<256x40xf32>
    %cst_139 = arith.constant dense<0.000000e+00> : vector<1x40xf32>
    %228 = tpu.matmul %219, %227, %cst_139 {dimension_numbers = #tpu.dot_dimension_numbers<[1], [0], [0], [1], [0, 0, 1, 1], [], []>} : vector<1x256xf32>, vector<256x40xf32>, vector<1x40xf32> -> vector<1x40xf32>
    %c3_140 = arith.constant 3 : index
    %c0_141 = arith.constant 0 : index
    %c0_142 = arith.constant 0 : index
    %229 = vector.load %arg23[%c3_140, %c0_141, %c0_142] : memref<4x256x40xf32, #tpu.memory_space<vmem>>, vector<1x256x40xf32>
    %230 = vector.shape_cast %229 : vector<1x256x40xf32> to vector<256x40xf32>
    %cst_143 = arith.constant dense<0.000000e+00> : vector<1x40xf32>
    %231 = tpu.matmul %219, %230, %cst_143 {dimension_numbers = #tpu.dot_dimension_numbers<[1], [0], [0], [1], [0, 0, 1, 1], [], []>} : vector<1x256xf32>, vector<256x40xf32>, vector<1x40xf32> -> vector<1x40xf32>
    %232 = tpu.concatenate %222, %225, %228, %231 in 0 : vector<1x40xf32>, vector<1x40xf32>, vector<1x40xf32>, vector<1x40xf32> -> vector<4x40xf32>
    %c0_144 = arith.constant 0 : index
    %c0_145 = arith.constant 0 : index
    %c0_146 = arith.constant 0 : index
    %233 = vector.load %arg24[%c0_144, %c0_145, %c0_146] : memref<4x256x40xf32, #tpu.memory_space<vmem>>, vector<1x256x40xf32>
    %234 = vector.shape_cast %233 : vector<1x256x40xf32> to vector<256x40xf32>
    %cst_147 = arith.constant dense<0.000000e+00> : vector<1x40xf32>
    %235 = tpu.matmul %219, %234, %cst_147 {dimension_numbers = #tpu.dot_dimension_numbers<[1], [0], [0], [1], [0, 0, 1, 1], [], []>} : vector<1x256xf32>, vector<256x40xf32>, vector<1x40xf32> -> vector<1x40xf32>
    %c1_148 = arith.constant 1 : index
    %c0_149 = arith.constant 0 : index
    %c0_150 = arith.constant 0 : index
    %236 = vector.load %arg24[%c1_148, %c0_149, %c0_150] : memref<4x256x40xf32, #tpu.memory_space<vmem>>, vector<1x256x40xf32>
    %237 = vector.shape_cast %236 : vector<1x256x40xf32> to vector<256x40xf32>
    %cst_151 = arith.constant dense<0.000000e+00> : vector<1x40xf32>
    %238 = tpu.matmul %219, %237, %cst_151 {dimension_numbers = #tpu.dot_dimension_numbers<[1], [0], [0], [1], [0, 0, 1, 1], [], []>} : vector<1x256xf32>, vector<256x40xf32>, vector<1x40xf32> -> vector<1x40xf32>
    %c2_152 = arith.constant 2 : index
    %c0_153 = arith.constant 0 : index
    %c0_154 = arith.constant 0 : index
    %239 = vector.load %arg24[%c2_152, %c0_153, %c0_154] : memref<4x256x40xf32, #tpu.memory_space<vmem>>, vector<1x256x40xf32>
    %240 = vector.shape_cast %239 : vector<1x256x40xf32> to vector<256x40xf32>
    %cst_155 = arith.constant dense<0.000000e+00> : vector<1x40xf32>
    %241 = tpu.matmul %219, %240, %cst_155 {dimension_numbers = #tpu.dot_dimension_numbers<[1], [0], [0], [1], [0, 0, 1, 1], [], []>} : vector<1x256xf32>, vector<256x40xf32>, vector<1x40xf32> -> vector<1x40xf32>
    %c3_156 = arith.constant 3 : index
    %c0_157 = arith.constant 0 : index
    %c0_158 = arith.constant 0 : index
    %242 = vector.load %arg24[%c3_156, %c0_157, %c0_158] : memref<4x256x40xf32, #tpu.memory_space<vmem>>, vector<1x256x40xf32>
    %243 = vector.shape_cast %242 : vector<1x256x40xf32> to vector<256x40xf32>
    %cst_159 = arith.constant dense<0.000000e+00> : vector<1x40xf32>
    %244 = tpu.matmul %219, %243, %cst_159 {dimension_numbers = #tpu.dot_dimension_numbers<[1], [0], [0], [1], [0, 0, 1, 1], [], []>} : vector<1x256xf32>, vector<256x40xf32>, vector<1x40xf32> -> vector<1x40xf32>
    %245 = tpu.concatenate %235, %238, %241, %244 in 0 : vector<1x40xf32>, vector<1x40xf32>, vector<1x40xf32>, vector<1x40xf32> -> vector<4x40xf32>
    %246 = vector.extract_strided_slice %186 {offsets = [0, 0], sizes = [8, 4], strides = [1, 1]} : vector<8x8xf32> to vector<8x4xf32>
    %cst_160 = arith.constant dense<0.000000e+00> : vector<8x40xf32>
    %247 = tpu.matmul %246, %232, %cst_160 {dimension_numbers = #tpu.dot_dimension_numbers<[1], [0], [0], [1], [0, 0, 1, 1], [], []>} : vector<8x4xf32>, vector<4x40xf32>, vector<8x40xf32> -> vector<8x40xf32>
    %248 = vector.extract_strided_slice %186 {offsets = [0, 4], sizes = [8, 4], strides = [1, 1]} : vector<8x8xf32> to vector<8x4xf32>
    %cst_161 = arith.constant dense<0.000000e+00> : vector<8x40xf32>
    %249 = tpu.matmul %248, %245, %cst_161 {dimension_numbers = #tpu.dot_dimension_numbers<[1], [0], [0], [1], [0, 0, 1, 1], [], []>} : vector<8x4xf32>, vector<4x40xf32>, vector<8x40xf32> -> vector<8x40xf32>
    %250 = arith.addf %247, %249 : vector<8x40xf32>
    %c0_162 = arith.constant 0 : index
    %c0_163 = arith.constant 0 : index
    %251 = vector.load %arg15[%c0_162, %c0_163] : memref<8x1xf32, #tpu.memory_space<vmem>>, vector<8x1xf32>
    %c0_164 = arith.constant 0 : index
    %c0_165 = arith.constant 0 : index
    %252 = vector.load %arg16[%c0_164, %c0_165] : memref<8x1xf32, #tpu.memory_space<vmem>>, vector<8x1xf32>
    %cst_166 = arith.constant dense<0.000000e+00> : vector<8xf32>
    %253 = vector.multi_reduction <add>, %218, %cst_166 [1] : vector<8x40xf32> to vector<8xf32>
    %254 = vector.shape_cast %253 : vector<8xf32> to vector<8x1xf32>
    %cst_167 = arith.constant 0.000000e+00 : f32
    %255 = vector.broadcast %cst_167 : f32 to vector<8x1xf32>
    %256 = arith.addf %255, %254 : vector<8x1xf32>
    %cst_168 = arith.constant dense<0.000000e+00> : vector<8xf32>
    %257 = vector.multi_reduction <add>, %250, %cst_168 [1] : vector<8x40xf32> to vector<8xf32>
    %258 = vector.shape_cast %257 : vector<8xf32> to vector<8x1xf32>
    %259 = arith.addf %256, %258 : vector<8x1xf32>
    %cst_169 = arith.constant 1.250000e-02 : f32
    %260 = vector.broadcast %cst_169 : f32 to vector<8x1xf32>
    %261 = arith.mulf %259, %260 : vector<8x1xf32>
    %262 = vector.broadcast %261 : vector<8x1xf32> to vector<8x40xf32>
    %263 = arith.subf %218, %262 : vector<8x40xf32>
    %264 = arith.mulf %263, %263 : vector<8x40xf32>
    %cst_170 = arith.constant dense<0.000000e+00> : vector<8xf32>
    %265 = vector.multi_reduction <add>, %264, %cst_170 [1] : vector<8x40xf32> to vector<8xf32>
    %266 = vector.shape_cast %265 : vector<8xf32> to vector<8x1xf32>
    %cst_171 = arith.constant 0.000000e+00 : f32
    %267 = vector.broadcast %cst_171 : f32 to vector<8x1xf32>
    %268 = arith.addf %267, %266 : vector<8x1xf32>
    %269 = vector.broadcast %261 : vector<8x1xf32> to vector<8x40xf32>
    %270 = arith.subf %250, %269 : vector<8x40xf32>
    %271 = arith.mulf %270, %270 : vector<8x40xf32>
    %cst_172 = arith.constant dense<0.000000e+00> : vector<8xf32>
    %272 = vector.multi_reduction <add>, %271, %cst_172 [1] : vector<8x40xf32> to vector<8xf32>
    %273 = vector.shape_cast %272 : vector<8xf32> to vector<8x1xf32>
    %274 = arith.addf %268, %273 : vector<8x1xf32>
    %cst_173 = arith.constant 1.250000e-02 : f32
    %275 = vector.broadcast %cst_173 : f32 to vector<8x1xf32>
    %276 = arith.mulf %274, %275 : vector<8x1xf32>
    %cst_174 = arith.constant 9.99999974E-6 : f32
    %277 = vector.broadcast %cst_174 : f32 to vector<8x1xf32>
    %278 = arith.addf %276, %277 : vector<8x1xf32>
    %279 = math.rsqrt %278 : vector<8x1xf32>
    %280 = arith.mulf %251, %279 : vector<8x1xf32>
    %281 = arith.mulf %261, %280 : vector<8x1xf32>
    %282 = arith.subf %252, %281 : vector<8x1xf32>
    %283 = vector.broadcast %280 : vector<8x1xf32> to vector<8x40xf32>
    %284 = arith.mulf %218, %283 : vector<8x40xf32>
    %285 = vector.broadcast %282 : vector<8x1xf32> to vector<8x40xf32>
    %286 = arith.addf %284, %285 : vector<8x40xf32>
    %cst_175 = arith.constant 0.000000e+00 : f32
    %287 = vector.broadcast %cst_175 : f32 to vector<8x40xf32>
    %288 = arith.maximumf %286, %287 : vector<8x40xf32>
    %289 = vector.broadcast %280 : vector<8x1xf32> to vector<8x40xf32>
    %290 = arith.mulf %250, %289 : vector<8x40xf32>
    %291 = vector.broadcast %282 : vector<8x1xf32> to vector<8x40xf32>
    %292 = arith.addf %290, %291 : vector<8x40xf32>
    %cst_176 = arith.constant 0.000000e+00 : f32
    %293 = vector.broadcast %cst_176 : f32 to vector<8x40xf32>
    %294 = arith.maximumf %292, %293 : vector<8x40xf32>
    %c0_177 = arith.constant 0 : index
    %c0_178 = arith.constant 0 : index
    %295 = vector.load %arg25[%c0_177, %c0_178] : memref<40x256xf32, #tpu.memory_space<vmem>>, vector<40x256xf32>
    %c0_179 = arith.constant 0 : index
    %c0_180 = arith.constant 0 : index
    %296 = vector.load %arg26[%c0_179, %c0_180] : memref<40x256xf32, #tpu.memory_space<vmem>>, vector<40x256xf32>
    %297 = vector.extract_strided_slice %288 {offsets = [0, 0], sizes = [4, 40], strides = [1, 1]} : vector<8x40xf32> to vector<4x40xf32>
    %cst_181 = arith.constant dense<0.000000e+00> : vector<4x256xf32>
    %298 = tpu.matmul %297, %295, %cst_181 {dimension_numbers = #tpu.dot_dimension_numbers<[1], [0], [0], [1], [0, 0, 1, 1], [], []>} : vector<4x40xf32>, vector<40x256xf32>, vector<4x256xf32> -> vector<4x256xf32>
    %299 = vector.extract_strided_slice %288 {offsets = [4, 0], sizes = [4, 40], strides = [1, 1]} : vector<8x40xf32> to vector<4x40xf32>
    %cst_182 = arith.constant dense<0.000000e+00> : vector<4x256xf32>
    %300 = tpu.matmul %299, %296, %cst_182 {dimension_numbers = #tpu.dot_dimension_numbers<[1], [0], [0], [1], [0, 0, 1, 1], [], []>} : vector<4x40xf32>, vector<40x256xf32>, vector<4x256xf32> -> vector<4x256xf32>
    %301 = arith.addf %298, %300 : vector<4x256xf32>
    %302 = vector.extract_strided_slice %294 {offsets = [0, 0], sizes = [4, 40], strides = [1, 1]} : vector<8x40xf32> to vector<4x40xf32>
    %cst_183 = arith.constant dense<0.000000e+00> : vector<4x256xf32>
    %303 = tpu.matmul %302, %295, %cst_183 {dimension_numbers = #tpu.dot_dimension_numbers<[1], [0], [0], [1], [0, 0, 1, 1], [], []>} : vector<4x40xf32>, vector<40x256xf32>, vector<4x256xf32> -> vector<4x256xf32>
    %304 = vector.extract_strided_slice %294 {offsets = [4, 0], sizes = [4, 40], strides = [1, 1]} : vector<8x40xf32> to vector<4x40xf32>
    %cst_184 = arith.constant dense<0.000000e+00> : vector<4x256xf32>
    %305 = tpu.matmul %304, %296, %cst_184 {dimension_numbers = #tpu.dot_dimension_numbers<[1], [0], [0], [1], [0, 0, 1, 1], [], []>} : vector<4x40xf32>, vector<40x256xf32>, vector<4x256xf32> -> vector<4x256xf32>
    %306 = arith.addf %303, %305 : vector<4x256xf32>
    %c0_185 = arith.constant 0 : index
    %c0_186 = arith.constant 0 : index
    %307 = vector.load %arg7[%c0_185, %c0_186] : memref<8x4xf32, #tpu.memory_space<vmem>>, vector<8x4xf32>
    %c0_187 = arith.constant 0 : index
    %c0_188 = arith.constant 0 : index
    %308 = vector.load %arg8[%c0_187, %c0_188] : memref<8x4xf32, #tpu.memory_space<vmem>>, vector<8x4xf32>
    %cst_189 = arith.constant dense<0.000000e+00> : vector<8x256xf32>
    %309 = tpu.matmul %307, %1, %cst_189 {dimension_numbers = #tpu.dot_dimension_numbers<[1], [0], [0], [1], [0, 0, 1, 1], [], []>} : vector<8x4xf32>, vector<4x256xf32>, vector<8x256xf32> -> vector<8x256xf32>
    %310 = arith.addf %106, %180 : vector<4x256xf32>
    %311 = arith.addf %310, %301 : vector<4x256xf32>
    %cst_190 = arith.constant dense<0.000000e+00> : vector<8x256xf32>
    %312 = tpu.matmul %308, %311, %cst_190 {dimension_numbers = #tpu.dot_dimension_numbers<[1], [0], [0], [1], [0, 0, 1, 1], [], []>} : vector<8x4xf32>, vector<4x256xf32>, vector<8x256xf32> -> vector<8x256xf32>
    %313 = arith.addf %309, %312 : vector<8x256xf32>
    %cst_191 = arith.constant dense<0.000000e+00> : vector<8x256xf32>
    %314 = tpu.matmul %307, %3, %cst_191 {dimension_numbers = #tpu.dot_dimension_numbers<[1], [0], [0], [1], [0, 0, 1, 1], [], []>} : vector<8x4xf32>, vector<4x256xf32>, vector<8x256xf32> -> vector<8x256xf32>
    %315 = arith.addf %112, %185 : vector<4x256xf32>
    %316 = arith.addf %315, %306 : vector<4x256xf32>
    %cst_192 = arith.constant dense<0.000000e+00> : vector<8x256xf32>
    %317 = tpu.matmul %308, %316, %cst_192 {dimension_numbers = #tpu.dot_dimension_numbers<[1], [0], [0], [1], [0, 0, 1, 1], [], []>} : vector<8x4xf32>, vector<4x256xf32>, vector<8x256xf32> -> vector<8x256xf32>
    %318 = arith.addf %314, %317 : vector<8x256xf32>
    %c0_193 = arith.constant 0 : index
    %c0_194 = arith.constant 0 : index
    %319 = vector.load %arg17[%c0_193, %c0_194] : memref<8x1xf32, #tpu.memory_space<vmem>>, vector<8x1xf32>
    %c0_195 = arith.constant 0 : index
    %c0_196 = arith.constant 0 : index
    %320 = vector.load %arg18[%c0_195, %c0_196] : memref<8x1xf32, #tpu.memory_space<vmem>>, vector<8x1xf32>
    %cst_197 = arith.constant dense<0.000000e+00> : vector<8xf32>
    %321 = vector.multi_reduction <add>, %313, %cst_197 [1] : vector<8x256xf32> to vector<8xf32>
    %322 = vector.shape_cast %321 : vector<8xf32> to vector<8x1xf32>
    %cst_198 = arith.constant 0.000000e+00 : f32
    %323 = vector.broadcast %cst_198 : f32 to vector<8x1xf32>
    %324 = arith.addf %323, %322 : vector<8x1xf32>
    %cst_199 = arith.constant dense<0.000000e+00> : vector<8xf32>
    %325 = vector.multi_reduction <add>, %318, %cst_199 [1] : vector<8x256xf32> to vector<8xf32>
    %326 = vector.shape_cast %325 : vector<8xf32> to vector<8x1xf32>
    %327 = arith.addf %324, %326 : vector<8x1xf32>
    %cst_200 = arith.constant 0.001953125 : f32
    %328 = vector.broadcast %cst_200 : f32 to vector<8x1xf32>
    %329 = arith.mulf %327, %328 : vector<8x1xf32>
    %330 = vector.broadcast %329 : vector<8x1xf32> to vector<8x256xf32>
    %331 = arith.subf %313, %330 : vector<8x256xf32>
    %332 = arith.mulf %331, %331 : vector<8x256xf32>
    %cst_201 = arith.constant dense<0.000000e+00> : vector<8xf32>
    %333 = vector.multi_reduction <add>, %332, %cst_201 [1] : vector<8x256xf32> to vector<8xf32>
    %334 = vector.shape_cast %333 : vector<8xf32> to vector<8x1xf32>
    %cst_202 = arith.constant 0.000000e+00 : f32
    %335 = vector.broadcast %cst_202 : f32 to vector<8x1xf32>
    %336 = arith.addf %335, %334 : vector<8x1xf32>
    %337 = vector.broadcast %329 : vector<8x1xf32> to vector<8x256xf32>
    %338 = arith.subf %318, %337 : vector<8x256xf32>
    %339 = arith.mulf %338, %338 : vector<8x256xf32>
    %cst_203 = arith.constant dense<0.000000e+00> : vector<8xf32>
    %340 = vector.multi_reduction <add>, %339, %cst_203 [1] : vector<8x256xf32> to vector<8xf32>
    %341 = vector.shape_cast %340 : vector<8xf32> to vector<8x1xf32>
    %342 = arith.addf %336, %341 : vector<8x1xf32>
    %cst_204 = arith.constant 0.001953125 : f32
    %343 = vector.broadcast %cst_204 : f32 to vector<8x1xf32>
    %344 = arith.mulf %342, %343 : vector<8x1xf32>
    %cst_205 = arith.constant 9.99999974E-6 : f32
    %345 = vector.broadcast %cst_205 : f32 to vector<8x1xf32>
    %346 = arith.addf %344, %345 : vector<8x1xf32>
    %347 = math.rsqrt %346 : vector<8x1xf32>
    %348 = arith.mulf %319, %347 : vector<8x1xf32>
    %349 = arith.mulf %329, %348 : vector<8x1xf32>
    %350 = arith.subf %320, %349 : vector<8x1xf32>
    %351 = vector.broadcast %348 : vector<8x1xf32> to vector<8x256xf32>
    %352 = arith.mulf %313, %351 : vector<8x256xf32>
    %353 = vector.broadcast %350 : vector<8x1xf32> to vector<8x256xf32>
    %354 = arith.addf %352, %353 : vector<8x256xf32>
    %cst_206 = arith.constant 0.000000e+00 : f32
    %355 = vector.broadcast %cst_206 : f32 to vector<8x256xf32>
    %356 = arith.maximumf %354, %355 : vector<8x256xf32>
    %357 = vector.broadcast %348 : vector<8x1xf32> to vector<8x256xf32>
    %358 = arith.mulf %318, %357 : vector<8x256xf32>
    %359 = vector.broadcast %350 : vector<8x1xf32> to vector<8x256xf32>
    %360 = arith.addf %358, %359 : vector<8x256xf32>
    %cst_207 = arith.constant 0.000000e+00 : f32
    %361 = vector.broadcast %cst_207 : f32 to vector<8x256xf32>
    %362 = arith.maximumf %360, %361 : vector<8x256xf32>
    %c0_208 = arith.constant 0 : index
    %c0_209 = arith.constant 0 : index
    %c0_210 = arith.constant 0 : index
    %363 = vector.load %arg28[%c0_208, %c0_209, %c0_210] : memref<2x8x256xf32, #tpu.memory_space<vmem>>, vector<1x8x256xf32>
    %364 = vector.shape_cast %363 : vector<1x8x256xf32> to vector<8x256xf32>
    %365 = vector.shape_cast %356 : vector<8x256xf32> to vector<1x8x256xf32>
    tpu.vector_store %arg28[%c0_208, %c0_209, %c0_210], %365 {strides = array<i32>} : memref<2x8x256xf32, #tpu.memory_space<vmem>>, vector<1x8x256xf32>,
    %c1_211 = arith.constant 1 : index
    %c0_212 = arith.constant 0 : index
    %c0_213 = arith.constant 0 : index
    %366 = vector.load %arg28[%c1_211, %c0_212, %c0_213] : memref<2x8x256xf32, #tpu.memory_space<vmem>>, vector<1x8x256xf32>
    %367 = vector.shape_cast %366 : vector<1x8x256xf32> to vector<8x256xf32>
    %368 = vector.shape_cast %362 : vector<8x256xf32> to vector<1x8x256xf32>
    tpu.vector_store %arg28[%c1_211, %c0_212, %c0_213], %368 {strides = array<i32>} : memref<2x8x256xf32, #tpu.memory_space<vmem>>, vector<1x8x256xf32>,
    return
  }
}

</mosaic_0001>

<llo_original>
// kernel: ffconvset_forward.1
$region0: #{ffconvset_forward.1}
  #allocation0 [shape = 'u32[]', space=smem, size = 0x4, offset = 0x4, fixed_abs, tag = 'smem constant byte address 0x4 - core index']
  #allocation1 [shape = 'u32[72,128]{1,0:T(1,128)}', space=vmem, size = 0x9000, scoped, tag = 'internal scratch']
  %s0 = inlined_call_operand.vmem [shape: f32[2,4,256], index: 0, kind: input, shape index: {}]
  %s1 = inlined_call_operand.vmem [shape: f32[2,4,256], index: 1, kind: input, shape index: {}]
  %s2 = inlined_call_operand.vmem [shape: f32[8,4], index: 2, kind: input, shape index: {}]
  %s3 = inlined_call_operand.vmem [shape: f32[8,4], index: 3, kind: input, shape index: {}]
  %s4 = inlined_call_operand.vmem [shape: f32[4,4], index: 4, kind: input, shape index: {}]
  %s5 = inlined_call_operand.vmem [shape: f32[8,8], index: 5, kind: input, shape index: {}]
  %s6 = inlined_call_operand.vmem [shape: f32[8,8], index: 6, kind: input, shape index: {}]
  %s7 = inlined_call_operand.vmem [shape: f32[8,4], index: 7, kind: input, shape index: {}]
  %s8 = inlined_call_operand.vmem [shape: f32[8,4], index: 8, kind: input, shape index: {}]
  %s9 = inlined_call_operand.vmem [shape: f32[8,1], index: 9, kind: input, shape index: {}]
  %s10 = inlined_call_operand.vmem [shape: f32[8,1], index: 10, kind: input, shape index: {}]
  %s11 = inlined_call_operand.vmem [shape: f32[4,1], index: 11, kind: input, shape index: {}]
  %s12 = inlined_call_operand.vmem [shape: f32[4,1], index: 12, kind: input, shape index: {}]
  %s13 = inlined_call_operand.vmem [shape: f32[8,1], index: 13, kind: input, shape index: {}]
  %s14 = inlined_call_operand.vmem [shape: f32[8,1], index: 14, kind: input, shape index: {}]
  %s15 = inlined_call_operand.vmem [shape: f32[8,1], index: 15, kind: input, shape index: {}]
  %s16 = inlined_call_operand.vmem [shape: f32[8,1], index: 16, kind: input, shape index: {}]
  %s17 = inlined_call_operand.vmem [shape: f32[8,1], index: 17, kind: input, shape index: {}]
  %s18 = inlined_call_operand.vmem [shape: f32[8,1], index: 18, kind: input, shape index: {}]
  %s19 = inlined_call_operand.hbm [shape: f32[256,144], index: 19, kind: input, shape index: {}]
  %s20 = inlined_call_operand.hbm [shape: f32[256,144], index: 20, kind: input, shape index: {}]
  %s21 = inlined_call_operand.hbm [shape: f32[144,256], index: 21, kind: input, shape index: {}]
  %s22 = inlined_call_operand.hbm [shape: f32[144,256], index: 22, kind: input, shape index: {}]
  %s23 = inlined_call_operand.hbm [shape: f32[4,256,40], index: 23, kind: input, shape index: {}]
  %s24 = inlined_call_operand.hbm [shape: f32[4,256,40], index: 24, kind: input, shape index: {}]
  %s25 = inlined_call_operand.vmem [shape: f32[40,256], index: 25, kind: input, shape index: {}]
  %s26 = inlined_call_operand.vmem [shape: f32[40,256], index: 26, kind: input, shape index: {}]
  %s27 = inlined_call_operand.vmem [shape: f32[2,8,256], index: 27, kind: output, shape index: {0}]
  %s28 = inlined_call_operand.vmem [shape: f32[2,8,256], index: 28, kind: output, shape index: {1}]
  %29 = xla_tuple %s27, %s28
  %s30 = sld [smem:[#allocation0]]
  $region150: #{ffconvset_forward.1} parent=0
    _
  %s32 = ssub.s32 1, %s30
  %s33 = scalar_select 0, %s32, %s30
  $region1: #{ffconvset_forward.1} parent=0
    #allocation2 [shape = 'u8[262144]{0}', space=vmem, size = 0x40000, scoped, tag = 'input window, operand 19, single buffered']
    #allocation3 [shape = 's32[1]{0}', space=sflag, size = 0x4, scoped, tag = 'scoped memory for ffconvset_forward.1']
    #allocation4 [shape = 'u8[262144]{0}', space=vmem, size = 0x40000, scoped, tag = 'input window, operand 20, single buffered']
    #allocation5 [shape = 's32[1]{0}', space=sflag, size = 0x4, scoped, tag = 'scoped memory for ffconvset_forward.1']
    #allocation6 [shape = 'u8[147456]{0}', space=vmem, size = 0x24000, scoped, tag = 'input window, operand 21, single buffered']
    #allocation7 [shape = 'u8[147456]{0}', space=vmem, size = 0x24000, scoped, tag = 'input window, operand 22, single buffered']
    #allocation8 [shape = 's32[1]{0}', space=sflag, size = 0x4, scoped, tag = 'scoped memory for ffconvset_forward.1']
    #allocation9 [shape = 'u8[524288]{0}', space=vmem, size = 0x80000, scoped, tag = 'input window, operand 23, single buffered']
    #allocation10 [shape = 'u8[524288]{0}', space=vmem, size = 0x80000, scoped, tag = 'input window, operand 24, single buffered']
    #allocation11 [shape = 's32[1]{0}', space=sflag, size = 0x4, scoped, tag = 'scoped memory for ffconvset_forward.1']
    %34 = vsyncpa [#allocation3], 0
    %35 = vsyncpa [#allocation5], 0
    %36 = vsyncpa [#allocation8], 0
    %37 = vsyncpa [#allocation11], 0
    // Predicated region
    $region2: #{ffconvset_forward.1} parent=1 // pred_check
      _
    $region3: #{ffconvset_forward.1} parent=1 // pred_check_branch
      %39 = sbr.rel (0) target = $region5
    $region4: #{ffconvset_forward.1} parent=1 // pred_region
      _
    $region5: #{ffconvset_forward.1} parent=1 // pred_fallthru
      _
    // Predicated region
    $region6: #{ffconvset_forward.1} parent=1 // pred_check
      _
    $region7: #{ffconvset_forward.1} parent=1 // pred_check_branch
      %41 = sbr.rel (0) target = $region9
    $region8: #{ffconvset_forward.1} parent=1 // pred_region
      _
    $region9: #{ffconvset_forward.1} parent=1 // pred_fallthru
      _
    // Predicated region
    $region10: #{ffconvset_forward.1} parent=1 // pred_check
      _
    $region11: #{ffconvset_forward.1} parent=1 // pred_check_branch
      %43 = sbr.rel (0) target = $region13
    $region12: #{ffconvset_forward.1} parent=1 // pred_region
      _
    $region13: #{ffconvset_forward.1} parent=1 // pred_fallthru
      _
    // Predicated region
    $region14: #{ffconvset_forward.1} parent=1 // pred_check
      _
    $region15: #{ffconvset_forward.1} parent=1 // pred_check_branch
      %45 = sbr.rel (0) target = $region17
    $region16: #{ffconvset_forward.1} parent=1 // pred_region
      _
    $region17: #{ffconvset_forward.1} parent=1 // pred_fallthru
      _
    // Predicated region
    $region18: #{ffconvset_forward.1} parent=1 // pred_check
      _
    $region19: #{ffconvset_forward.1} parent=1 // pred_check_branch
      %47 = sbr.rel (0) target = $region21
    $region20: #{ffconvset_forward.1} parent=1 // pred_region
      _
    $region21: #{ffconvset_forward.1} parent=1 // pred_fallthru
      _
    // Predicated region
    $region22: #{ffconvset_forward.1} parent=1 // pred_check
      _
    $region23: #{ffconvset_forward.1} parent=1 // pred_check_branch
      %49 = sbr.rel (0) target = $region25
    $region24: #{ffconvset_forward.1} parent=1 // pred_region
      _
    $region25: #{ffconvset_forward.1} parent=1 // pred_fallthru
      _
    // Predicated region
    $region26: #{ffconvset_forward.1} parent=1 // pred_check
      _
    $region27: #{ffconvset_forward.1} parent=1 // pred_check_branch
      %51 = sbr.rel (0) target = $region29
    $region28: #{ffconvset_forward.1} parent=1 // pred_region
      _
    $region29: #{ffconvset_forward.1} parent=1 // pred_fallthru
      _
    // Predicated region
    $region30: #{ffconvset_forward.1} parent=1 // pred_check
      _
    $region31: #{ffconvset_forward.1} parent=1 // pred_check_branch
      %53 = sbr.rel (0) target = $region33
    $region32: #{ffconvset_forward.1} parent=1 // pred_region
      _
    $region33: #{ffconvset_forward.1} parent=1 // pred_fallthru
      _
    // Predicated region
    $region34: #{ffconvset_forward.1} parent=1 // pred_check
      _
    $region35: #{ffconvset_forward.1} parent=1 // pred_check_branch
      %55 = sbr.rel (0) target = $region37
    $region36: #{ffconvset_forward.1} parent=1 // pred_region
      _
    $region37: #{ffconvset_forward.1} parent=1 // pred_fallthru
      _
    // Predicated region
    $region38: #{ffconvset_forward.1} parent=1 // pred_check
      _
    $region39: #{ffconvset_forward.1} parent=1 // pred_check_branch
      %57 = sbr.rel (0) target = $region41
    $region40: #{ffconvset_forward.1} parent=1 // pred_region
      _
    $region41: #{ffconvset_forward.1} parent=1 // pred_fallthru
      _
    // Predicated region
    $region42: #{ffconvset_forward.1} parent=1 // pred_check
      _
    $region43: #{ffconvset_forward.1} parent=1 // pred_check_branch
      %59 = sbr.rel (0) target = $region45
    $region44: #{ffconvset_forward.1} parent=1 // pred_region
      _
    $region45: #{ffconvset_forward.1} parent=1 // pred_fallthru
      _
    // Predicated region
    $region46: #{ffconvset_forward.1} parent=1 // pred_check
      _
    $region47: #{ffconvset_forward.1} parent=1 // pred_check_branch
      %61 = sbr.rel (0) target = $region49
    $region48: #{ffconvset_forward.1} parent=1 // pred_region
      _
    $region49: #{ffconvset_forward.1} parent=1 // pred_fallthru
      _
    // Predicated region
    $region50: #{ffconvset_forward.1} parent=1 // pred_check
      _
    $region51: #{ffconvset_forward.1} parent=1 // pred_check_branch
      %63 = sbr.rel (0) target = $region53
    $region52: #{ffconvset_forward.1} parent=1 // pred_region
      _
    $region53: #{ffconvset_forward.1} parent=1 // pred_fallthru
      _
    // Predicated region
    $region54: #{ffconvset_forward.1} parent=1 // pred_check
      _
    $region55: #{ffconvset_forward.1} parent=1 // pred_check_branch
      %65 = sbr.rel (0) target = $region57
    $region56: #{ffconvset_forward.1} parent=1 // pred_region
      _
    $region57: #{ffconvset_forward.1} parent=1 // pred_fallthru
      _
    // Predicated region
    $region58: #{ffconvset_forward.1} parent=1 // pred_check
      _
    $region59: #{ffconvset_forward.1} parent=1 // pred_check_branch
      %67 = sbr.rel (0) target = $region61
    $region60: #{ffconvset_forward.1} parent=1 // pred_region
      _
    $region61: #{ffconvset_forward.1} parent=1 // pred_fallthru
      _
    // Predicated region
    $region62: #{ffconvset_forward.1} parent=1 // pred_check
      _
    $region63: #{ffconvset_forward.1} parent=1 // pred_check_branch
      %69 = sbr.rel (0) target = $region65
    $region64: #{ffconvset_forward.1} parent=1 // pred_region
      _
    $region65: #{ffconvset_forward.1} parent=1 // pred_fallthru
      _
    // Predicated region
    $region66: #{ffconvset_forward.1} parent=1 // pred_check
      _
    $region67: #{ffconvset_forward.1} parent=1 // pred_check_branch
      %71 = sbr.rel (0) target = $region69
    $region68: #{ffconvset_forward.1} parent=1 // pred_region
      _
    $region69: #{ffconvset_forward.1} parent=1 // pred_fallthru
      _
    // Predicated region
    $region70: #{ffconvset_forward.1} parent=1 // pred_check
      _
    $region71: #{ffconvset_forward.1} parent=1 // pred_check_branch
      %73 = sbr.rel (0) target = $region73
    $region72: #{ffconvset_forward.1} parent=1 // pred_region
      _
    $region73: #{ffconvset_forward.1} parent=1 // pred_fallthru
      _
    // Predicated region
    $region74: #{ffconvset_forward.1} parent=1 // pred_check
      _
    $region75: #{ffconvset_forward.1} parent=1 // pred_check_branch
      %75 = sbr.rel (0) target = $region77
    $region76: #{ffconvset_forward.1} parent=1 // pred_region
      _
    $region77: #{ffconvset_forward.1} parent=1 // pred_fallthru
      _
    // Predicated region
    $region78: #{ffconvset_forward.1} parent=1 // pred_check
      _
    $region79: #{ffconvset_forward.1} parent=1 // pred_check_branch
      %77 = sbr.rel (0) target = $region81
    $region80: #{ffconvset_forward.1} parent=1 // pred_region
      %79 = vsyncadd [#allocation3], 0
      %s80 = sshll.u32 %s19, 4
      %s81 = int_to_ptr.hbm [resolvable:$true] %s80
      %s82 = sshll.u32 [#allocation2], 4
      %s83 = int_to_ptr.vmem [resolvable:$true] %s82
      %88 = dma.hbm_to_vmem [thread:$0]  %s81, 8192, %s83, [#allocation3], 256, 256, 16
    $region81: #{ffconvset_forward.1} parent=1 // pred_fallthru
      _
    // Predicated region
    $region82: #{ffconvset_forward.1} parent=1 // pred_check
      _
    $region83: #{ffconvset_forward.1} parent=1 // pred_check_branch
      %90 = sbr.rel (0) target = $region85
    $region84: #{ffconvset_forward.1} parent=1 // pred_region
      %92 = vsyncadd [#allocation5], 0
      %s93 = sshll.u32 %s20, 4
      %s94 = int_to_ptr.hbm [resolvable:$true] %s93
      %s95 = sshll.u32 [#allocation4], 4
      %s96 = int_to_ptr.vmem [resolvable:$true] %s95
      %101 = dma.hbm_to_vmem [thread:$0]  %s94, 8192, %s96, [#allocation5], 256, 256, 16
    $region85: #{ffconvset_forward.1} parent=1 // pred_fallthru
      _
    // Predicated region
    $region86: #{ffconvset_forward.1} parent=1 // pred_check
      _
    $region87: #{ffconvset_forward.1} parent=1 // pred_check_branch
      %103 = sbr.rel (0) target = $region89
    $region88: #{ffconvset_forward.1} parent=1 // pred_region
      %105 = vsyncadd [#allocation5], 0
      %s106 = sshll.u32 %s21, 4
      %s107 = int_to_ptr.hbm [resolvable:$true] %s106
      %s108 = sshll.u32 [#allocation6], 4
      %s109 = int_to_ptr.vmem [resolvable:$true] %s108
      %114 = dma.hbm_to_vmem [thread:$0]  %s107, 4608, %s109, [#allocation5], 256, 256, 16
    $region89: #{ffconvset_forward.1} parent=1 // pred_fallthru
      _
    // Predicated region
    $region90: #{ffconvset_forward.1} parent=1 // pred_check
      _
    $region91: #{ffconvset_forward.1} parent=1 // pred_check_branch
      %116 = sbr.rel (0) target = $region93
    $region92: #{ffconvset_forward.1} parent=1 // pred_region
      %118 = vsyncadd [#allocation8], 0
      %s119 = sshll.u32 %s22, 4
      %s120 = int_to_ptr.hbm [resolvable:$true] %s119
      %s121 = sshll.u32 [#allocation7], 4
      %s122 = int_to_ptr.vmem [resolvable:$true] %s121
      %127 = dma.hbm_to_vmem [thread:$0]  %s120, 4608, %s122, [#allocation8], 256, 256, 16
    $region93: #{ffconvset_forward.1} parent=1 // pred_fallthru
      _
    // Predicated region
    $region94: #{ffconvset_forward.1} parent=1 // pred_check
      _
    $region95: #{ffconvset_forward.1} parent=1 // pred_check_branch
      %129 = sbr.rel (0) target = $region97
    $region96: #{ffconvset_forward.1} parent=1 // pred_region
      %131 = vsyncadd [#allocation8], 0
      %s132 = sshll.u32 %s23, 4
      %s133 = int_to_ptr.hbm [resolvable:$true] %s132
      %s134 = sshll.u32 [#allocation9], 4
      %s135 = int_to_ptr.vmem [resolvable:$true] %s134
      %140 = dma.hbm_to_vmem [thread:$0]  %s133, 16384, %s135, [#allocation8], 128, 128, 8
    $region97: #{ffconvset_forward.1} parent=1 // pred_fallthru
      _
    // Predicated region
    $region98: #{ffconvset_forward.1} parent=1 // pred_check
      _
    $region99: #{ffconvset_forward.1} parent=1 // pred_check_branch
      %142 = sbr.rel (0) target = $region101
    $region100: #{ffconvset_forward.1} parent=1 // pred_region
      %144 = vsyncadd [#allocation11], 0
      %s145 = sshll.u32 %s24, 4
      %s146 = int_to_ptr.hbm [resolvable:$true] %s145
      %s147 = sshll.u32 [#allocation10], 4
      %s148 = int_to_ptr.vmem [resolvable:$true] %s147
      %153 = dma.hbm_to_vmem [thread:$0]  %s146, 16384, %s148, [#allocation11], 128, 128, 8
    $region101: #{ffconvset_forward.1} parent=1 // pred_fallthru
      _
    // Predicated region
    $region102: #{ffconvset_forward.1} parent=1 // pred_check
      _
    $region103: #{ffconvset_forward.1} parent=1 // pred_check_branch
      %155 = sbr.rel (0) target = $region105
    $region104: #{ffconvset_forward.1} parent=1 // pred_region
      _
    $region105: #{ffconvset_forward.1} parent=1 // pred_fallthru
      _
    // Predicated region
    $region106: #{ffconvset_forward.1} parent=1 // pred_check
      _
    $region107: #{ffconvset_forward.1} parent=1 // pred_check_branch
      %157 = sbr.rel (0) target = $region109
    $region108: #{ffconvset_forward.1} parent=1 // pred_region
      _
    $region109: #{ffconvset_forward.1} parent=1 // pred_fallthru
      _
    // Predicated region
    $region110: #{ffconvset_forward.1} parent=1 // pred_check
      _
    $region111: #{ffconvset_forward.1} parent=1 // pred_check_branch
      %159 = sbr.rel (0) target = $region113
    $region112: #{ffconvset_forward.1} parent=1 // pred_region
      %161 = dma.done [#allocation3], 8192
    $region113: #{ffconvset_forward.1} parent=1 // pred_fallthru
      _
    // Predicated region
    $region114: #{ffconvset_forward.1} parent=1 // pred_check
      _
    $region115: #{ffconvset_forward.1} parent=1 // pred_check_branch
      %163 = sbr.rel (0) target = $region117
    $region116: #{ffconvset_forward.1} parent=1 // pred_region
      %165 = dma.done [#allocation5], 8192
    $region117: #{ffconvset_forward.1} parent=1 // pred_fallthru
      _
    // Predicated region
    $region118: #{ffconvset_forward.1} parent=1 // pred_check
      _
    $region119: #{ffconvset_forward.1} parent=1 // pred_check_branch
      %167 = sbr.rel (0) target = $region121
    $region120: #{ffconvset_forward.1} parent=1 // pred_region
      %169 = dma.done [#allocation5], 4608
    $region121: #{ffconvset_forward.1} parent=1 // pred_fallthru
      _
    // Predicated region
    $region122: #{ffconvset_forward.1} parent=1 // pred_check
      _
    $region123: #{ffconvset_forward.1} parent=1 // pred_check_branch
      %171 = sbr.rel (0) target = $region125
    $region124: #{ffconvset_forward.1} parent=1 // pred_region
      %173 = dma.done [#allocation8], 4608
    $region125: #{ffconvset_forward.1} parent=1 // pred_fallthru
      _
    // Predicated region
    $region126: #{ffconvset_forward.1} parent=1 // pred_check
      _
    $region127: #{ffconvset_forward.1} parent=1 // pred_check_branch
      %175 = sbr.rel (0) target = $region129
    $region128: #{ffconvset_forward.1} parent=1 // pred_region
      %177 = dma.done [#allocation8], 16384
    $region129: #{ffconvset_forward.1} parent=1 // pred_fallthru
      _
    // Predicated region
    $region130: #{ffconvset_forward.1} parent=1 // pred_check
      _
    $region131: #{ffconvset_forward.1} parent=1 // pred_check_branch
      %179 = sbr.rel (0) target = $region133
    $region132: #{ffconvset_forward.1} parent=1 // pred_region
      %181 = dma.done [#allocation11], 16384
    $region133: #{ffconvset_forward.1} parent=1 // pred_fallthru
      _
    %v182 = vld [vmem:[%s0] sm:$0xff]
    %s183 = scalar_lea.vmem %s0, 8
    %v184 = vld [vmem:[%s183] sm:$0xff]
    %v185 = vld [vmem:[%s1] sm:$0xff]
    %s186 = scalar_lea.vmem %s1, 8
    %v187 = vld [vmem:[%s186] sm:$0xff]
    %v188 = vld [vmem:[%s2] sm:$0xff]
    %v189 = vld [vmem:[%s3] sm:$0xff]
    %191 = vst [vmem:[#allocation1] ss:$2 sm:$0xff] %v185
    %v192 = vld.sshfl [vmem:[#allocation1] sm:$0xff pattern:$0x75316420]
    %v193 = vld.sshfl [vmem:[#allocation1 + $0x8] sm:$0xff pattern:$0x75316420]
    %vm194 = vcmask 31744
    %v196 = vsel %vm194, %v189, 0
    %vm198 = vcmask 1043456
    %v199 = vsel %vm198, %v192, 0
    %v201 = vsel %vm198, %v193, 0
    %203 = vmatpush.msra.mxu0 0.0
    %204 = vmatpush.msra.mxu0 0.0
    %205 = vmatpush.msra.mxu0 0.0
    %206 = vmatpush.msra.mxu0 0.0
    %207 = vmatpush.msra.mxu0 0.0
    %208 = vmatpush.msra.mxu0 0.0
    %209 = vmatpush.msra.mxu0 0.0
    %210 = vmatpush.msra.mxu0 0.0
    %211 = vmatpush.msra.mxu0 0.0
    %212 = vmatpush.msra.mxu0 0.0
    %213 = vmatpush.msra.mxu0 0.0
    %214 = vmatpush.msra.mxu0 0.0
    %215 = vmatpush.msra.mxu0 0.0
    %216 = vmatpush.msra.mxu0 0.0
    %217 = vmatpush.msra.mxu0 0.0
    %218 = vmatpush.msra.mxu0 %v199
    %219 = vmatmul.f32.gmra.mxu0 %v196
    %v220 = vpop.f32.mrf.mxu0
    %v221 = vadd.f32 0.0, %v220
    %222 = vdwg.mxu0
    %223 = vmatpush.msra.mxu0 0.0
    %224 = vmatpush.msra.mxu0 0.0
    %225 = vmatpush.msra.mxu0 0.0
    %226 = vmatpush.msra.mxu0 0.0
    %227 = vmatpush.msra.mxu0 0.0
    %228 = vmatpush.msra.mxu0 0.0
    %229 = vmatpush.msra.mxu0 0.0
    %230 = vmatpush.msra.mxu0 0.0
    %231 = vmatpush.msra.mxu0 0.0
    %232 = vmatpush.msra.mxu0 0.0
    %233 = vmatpush.msra.mxu0 0.0
    %234 = vmatpush.msra.mxu0 0.0
    %235 = vmatpush.msra.mxu0 0.0
    %236 = vmatpush.msra.mxu0 0.0
    %237 = vmatpush.msra.mxu0 0.0
    %238 = vmatpush.msra.mxu0 %v201
    %239 = vmatmul.f32.gmra.mxu0 %v196
    %v240 = vpop.f32.mrf.mxu0
    %v241 = vadd.f32 0.0, %v240
    %242 = vdwg.mxu0
    %244 = vst [vmem:[#allocation1] ss:$2 sm:$0xff] %v182
    %v245 = vld.sshfl [vmem:[#allocation1] sm:$0xff pattern:$0x75316420]
    %v246 = vld.sshfl [vmem:[#allocation1 + $0x8] sm:$0xff pattern:$0x75316420]
    %v248 = vsel %vm194, %v188, 0
    %v250 = vsel %vm198, %v245, 0
    %v252 = vsel %vm198, %v246, 0
    %254 = vmatpush.msra.mxu0 0.0
    %255 = vmatpush.msra.mxu0 0.0
    %256 = vmatpush.msra.mxu0 0.0
    %257 = vmatpush.msra.mxu0 0.0
    %258 = vmatpush.msra.mxu0 0.0
    %259 = vmatpush.msra.mxu0 0.0
    %260 = vmatpush.msra.mxu0 0.0
    %261 = vmatpush.msra.mxu0 0.0
    %262 = vmatpush.msra.mxu0 0.0
    %263 = vmatpush.msra.mxu0 0.0
    %264 = vmatpush.msra.mxu0 0.0
    %265 = vmatpush.msra.mxu0 0.0
    %266 = vmatpush.msra.mxu0 0.0
    %267 = vmatpush.msra.mxu0 0.0
    %268 = vmatpush.msra.mxu0 0.0
    %269 = vmatpush.msra.mxu0 %v250
    %270 = vmatmul.f32.gmra.mxu0 %v248
    %v271 = vpop.f32.mrf.mxu0
    %v272 = vadd.f32 %v221, %v271
    %273 = vdwg.mxu0
    %274 = vmatpush.msra.mxu0 0.0
    %275 = vmatpush.msra.mxu0 0.0
    %276 = vmatpush.msra.mxu0 0.0
    %277 = vmatpush.msra.mxu0 0.0
    %278 = vmatpush.msra.mxu0 0.0
    %279 = vmatpush.msra.mxu0 0.0
    %280 = vmatpush.msra.mxu0 0.0
    %281 = vmatpush.msra.mxu0 0.0
    %282 = vmatpush.msra.mxu0 0.0
    %283 = vmatpush.msra.mxu0 0.0
    %284 = vmatpush.msra.mxu0 0.0
    %285 = vmatpush.msra.mxu0 0.0
    %286 = vmatpush.msra.mxu0 0.0
    %287 = vmatpush.msra.mxu0 0.0
    %288 = vmatpush.msra.mxu0 0.0
    %289 = vmatpush.msra.mxu0 %v252
    %290 = vmatmul.f32.gmra.mxu0 %v248
    %v291 = vpop.f32.mrf.mxu0
    %v292 = vadd.f32 %v241, %v291
    %293 = vdwg.mxu0
    %295 = vst [vmem:[#allocation1] ss:$2 sm:$0xff] %v187
    %v296 = vld.sshfl [vmem:[#allocation1] sm:$0xff pattern:$0x75316420]
    %v297 = vld.sshfl [vmem:[#allocation1 + $0x8] sm:$0xff pattern:$0x75316420]
    %v298 = vsel %vm198, %v296, 0
    %v300 = vsel %vm198, %v297, 0
    %302 = vmatpush.msra.mxu0 0.0
    %303 = vmatpush.msra.mxu0 0.0
    %304 = vmatpush.msra.mxu0 0.0
    %305 = vmatpush.msra.mxu0 0.0
    %306 = vmatpush.msra.mxu0 0.0
    %307 = vmatpush.msra.mxu0 0.0
    %308 = vmatpush.msra.mxu0 0.0
    %309 = vmatpush.msra.mxu0 0.0
    %310 = vmatpush.msra.mxu0 0.0
    %311 = vmatpush.msra.mxu0 0.0
    %312 = vmatpush.msra.mxu0 0.0
    %313 = vmatpush.msra.mxu0 0.0
    %314 = vmatpush.msra.mxu0 0.0
    %315 = vmatpush.msra.mxu0 0.0
    %316 = vmatpush.msra.mxu0 0.0
    %317 = vmatpush.msra.mxu0 %v298
    %318 = vmatmul.f32.gmra.mxu0 %v196
    %v319 = vpop.f32.mrf.mxu0
    %v320 = vadd.f32 0.0, %v319
    %321 = vdwg.mxu0
    %322 = vmatpush.msra.mxu0 0.0
    %323 = vmatpush.msra.mxu0 0.0
    %324 = vmatpush.msra.mxu0 0.0
    %325 = vmatpush.msra.mxu0 0.0
    %326 = vmatpush.msra.mxu0 0.0
    %327 = vmatpush.msra.mxu0 0.0
    %328 = vmatpush.msra.mxu0 0.0
    %329 = vmatpush.msra.mxu0 0.0
    %330 = vmatpush.msra.mxu0 0.0
    %331 = vmatpush.msra.mxu0 0.0
    %332 = vmatpush.msra.mxu0 0.0
    %333 = vmatpush.msra.mxu0 0.0
    %334 = vmatpush.msra.mxu0 0.0
    %335 = vmatpush.msra.mxu0 0.0
    %336 = vmatpush.msra.mxu0 0.0
    %337 = vmatpush.msra.mxu0 %v300
    %338 = vmatmul.f32.gmra.mxu0 %v196
    %v339 = vpop.f32.mrf.mxu0
    %v340 = vadd.f32 0.0, %v339
    %341 = vdwg.mxu0
    %343 = vst [vmem:[#allocation1] ss:$2 sm:$0xff] %v184
    %v344 = vld.sshfl [vmem:[#allocation1] sm:$0xff pattern:$0x75316420]
    %v345 = vld.sshfl [vmem:[#allocation1 + $0x8] sm:$0xff pattern:$0x75316420]
    %v346 = vsel %vm198, %v344, 0
    %v348 = vsel %vm198, %v345, 0
    %350 = vmatpush.msra.mxu0 0.0
    %351 = vmatpush.msra.mxu0 0.0
    %352 = vmatpush.msra.mxu0 0.0
    %353 = vmatpush.msra.mxu0 0.0
    %354 = vmatpush.msra.mxu0 0.0
    %355 = vmatpush.msra.mxu0 0.0
    %356 = vmatpush.msra.mxu0 0.0
    %357 = vmatpush.msra.mxu0 0.0
    %358 = vmatpush.msra.mxu0 0.0
    %359 = vmatpush.msra.mxu0 0.0
    %360 = vmatpush.msra.mxu0 0.0
    %361 = vmatpush.msra.mxu0 0.0
    %362 = vmatpush.msra.mxu0 0.0
    %363 = vmatpush.msra.mxu0 0.0
    %364 = vmatpush.msra.mxu0 0.0
    %365 = vmatpush.msra.mxu0 %v346
    %366 = vmatmul.f32.gmra.mxu0 %v248
    %v367 = vpop.f32.mrf.mxu0
    %v368 = vadd.f32 %v320, %v367
    %369 = vdwg.mxu0
    %370 = vmatpush.msra.mxu0 0.0
    %371 = vmatpush.msra.mxu0 0.0
    %372 = vmatpush.msra.mxu0 0.0
    %373 = vmatpush.msra.mxu0 0.0
    %374 = vmatpush.msra.mxu0 0.0
    %375 = vmatpush.msra.mxu0 0.0
    %376 = vmatpush.msra.mxu0 0.0
    %377 = vmatpush.msra.mxu0 0.0
    %378 = vmatpush.msra.mxu0 0.0
    %379 = vmatpush.msra.mxu0 0.0
    %380 = vmatpush.msra.mxu0 0.0
    %381 = vmatpush.msra.mxu0 0.0
    %382 = vmatpush.msra.mxu0 0.0
    %383 = vmatpush.msra.mxu0 0.0
    %384 = vmatpush.msra.mxu0 0.0
    %385 = vmatpush.msra.mxu0 %v348
    %386 = vmatmul.f32.gmra.mxu0 %v248
    %v387 = vpop.f32.mrf.mxu0
    %v388 = vadd.f32 %v340, %v387
    %389 = vdwg.mxu0
    %v390 = vld [vmem:[%s9] sm:$0xff]
    %v391 = vld [vmem:[%s10] sm:$0xff]
    %v392 = vadd.f32 %v272, %v292
    %393 = vadd.xlane.f32.xlu0 %v392
    %v394 = vpop.xlane.xlu0 %393
    %v395 = vadd.f32 %v394, 0.0
    %v396 = vadd.f32 %v368, %v388
    %397 = vadd.xlane.f32.xlu0 %v396
    %v398 = vpop.xlane.xlu0 %397
    %v399 = vadd.f32 %v395, %v398
    %v400 = vmul.f32 %v399, 0.001953125
    %v401 = vsub.f32 %v272, %v400
    %v402 = vsub.f32 %v292, %v400
    %v403 = vmul.f32 %v401, %v401
    %v404 = vmul.f32 %v402, %v402
    %v405 = vadd.f32 %v403, %v404
    %406 = vadd.xlane.f32.xlu0 %v405
    %v407 = vpop.xlane.xlu0 %406
    %v408 = vadd.f32 %v407, 0.0
    %v409 = vsub.f32 %v368, %v400
    %v410 = vsub.f32 %v388, %v400
    %v411 = vmul.f32 %v409, %v409
    %v412 = vmul.f32 %v410, %v410
    %v413 = vadd.f32 %v411, %v412
    %414 = vadd.xlane.f32.xlu0 %v413
    %v415 = vpop.xlane.xlu0 %414
    %v416 = vadd.f32 %v408, %v415
    %v417 = vmul.f32 %v416, 0.001953125
    %v418 = vadd.f32 %v417, 1e-05
    %v419 = vrsqrt.pop %v418
    %v420 = vmul.f32 %v419, %v418
    %v421 = vmul.f32 %v420, %v419
    %v422 = vmul.f32 0.5, %v421
    %v423 = vsub.f32 1.5, %v422
    %v424 = vmul.f32 %v419, %v423
    %vm425 = vweird.f32 %v418
    %vm426 = vweird.f32 %v419
    %vm427 = vmor %vm425, %vm426
    %v428 = vsel %vm427, %v419, %v424
    %v429 = vmul.f32 %v390, %v428
    %v430 = vmul.f32 %v400, %v429
    %v431 = vsub.f32 %v391, %v430
    %433 = vset.pattern.permute.xlu0 0
    %434 = vperm.xlu0 %433, %v429
    %v435 = vpop.permute.xlu0 %434
    %v437 = vmul.f32 %v272, %v435
    %v438 = vmul.f32 %v292, %v435
    %440 = vset.pattern.permute.xlu0 0
    %441 = vperm.xlu0 %440, %v431
    %v442 = vpop.permute.xlu0 %441
    %v444 = vadd.f32 %v437, %v442
    %v445 = vadd.f32 %v438, %v442
    %v446 = vmax.f32 %v444, 0.0
    %v447 = vmax.f32 %v445, 0.0
    %v448 = vmul.f32 %v368, %v435
    %v449 = vmul.f32 %v388, %v435
    %v450 = vadd.f32 %v448, %v442
    %v451 = vadd.f32 %v449, %v442
    %v452 = vmax.f32 %v450, 0.0
    %v453 = vmax.f32 %v451, 0.0
    %454 = vst [vmem:[%s27] sm:$0xff] %v446
    %455 = vst [vmem:[%s27 + $0x8] sm:$0xff] %v447
    %s456 = scalar_lea.vmem %s27, 16
    %457 = vst [vmem:[%s456] sm:$0xff] %v452
    %458 = vst [vmem:[%s456 + $0x8] sm:$0xff] %v453
    %v459 = vld [vmem:[%s4] sm:$0xf]
    %460 = vst [vmem:[#allocation1] ss:$2 sm:$0xff] %v185
    %v461 = vld.sshfl [vmem:[#allocation1] sm:$0xff pattern:$0x75316420]
    %v462 = vld.sshfl [vmem:[#allocation1 + $0x8] sm:$0xff pattern:$0x75316420]
    %v464 = vsel %vm194, %v459, 0
    %v466 = vsel %vm198, %v461, 0
    %v468 = vsel %vm198, %v462, 0
    %470 = vmatpush.msra.mxu0 0.0
    %471 = vmatpush.msra.mxu0 0.0
    %472 = vmatpush.msra.mxu0 0.0
    %473 = vmatpush.msra.mxu0 0.0
    %474 = vmatpush.msra.mxu0 0.0
    %475 = vmatpush.msra.mxu0 0.0
    %476 = vmatpush.msra.mxu0 0.0
    %477 = vmatpush.msra.mxu0 0.0
    %478 = vmatpush.msra.mxu0 0.0
    %479 = vmatpush.msra.mxu0 0.0
    %480 = vmatpush.msra.mxu0 0.0
    %481 = vmatpush.msra.mxu0 0.0
    %482 = vmatpush.msra.mxu0 0.0
    %483 = vmatpush.msra.mxu0 0.0
    %484 = vmatpush.msra.mxu0 0.0
    %485 = vmatpush.msra.mxu0 %v466
    %486 = vmatmul.f32.gmra.mxu0 %v464
    %v487 = vpop.f32.mrf.mxu0
    %v488 = vadd.f32 0.0, %v487
    %489 = vdwg.mxu0
    %490 = vmatpush.msra.mxu0 0.0
    %491 = vmatpush.msra.mxu0 0.0
    %492 = vmatpush.msra.mxu0 0.0
    %493 = vmatpush.msra.mxu0 0.0
    %494 = vmatpush.msra.mxu0 0.0
    %495 = vmatpush.msra.mxu0 0.0
    %496 = vmatpush.msra.mxu0 0.0
    %497 = vmatpush.msra.mxu0 0.0
    %498 = vmatpush.msra.mxu0 0.0
    %499 = vmatpush.msra.mxu0 0.0
    %500 = vmatpush.msra.mxu0 0.0
    %501 = vmatpush.msra.mxu0 0.0
    %502 = vmatpush.msra.mxu0 0.0
    %503 = vmatpush.msra.mxu0 0.0
    %504 = vmatpush.msra.mxu0 0.0
    %505 = vmatpush.msra.mxu0 %v468
    %506 = vmatmul.f32.gmra.mxu0 %v464
    %v507 = vpop.f32.mrf.mxu0
    %v508 = vadd.f32 0.0, %v507
    %509 = vdwg.mxu0
    %510 = vst [vmem:[#allocation1] ss:$2 sm:$0xff] %v187
    %v511 = vld.sshfl [vmem:[#allocation1] sm:$0xff pattern:$0x75316420]
    %v512 = vld.sshfl [vmem:[#allocation1 + $0x8] sm:$0xff pattern:$0x75316420]
    %v513 = vsel %vm198, %v511, 0
    %v515 = vsel %vm198, %v512, 0
    %517 = vmatpush.msra.mxu0 0.0
    %518 = vmatpush.msra.mxu0 0.0
    %519 = vmatpush.msra.mxu0 0.0
    %520 = vmatpush.msra.mxu0 0.0
    %521 = vmatpush.msra.mxu0 0.0
    %522 = vmatpush.msra.mxu0 0.0
    %523 = vmatpush.msra.mxu0 0.0
    %524 = vmatpush.msra.mxu0 0.0
    %525 = vmatpush.msra.mxu0 0.0
    %526 = vmatpush.msra.mxu0 0.0
    %527 = vmatpush.msra.mxu0 0.0
    %528 = vmatpush.msra.mxu0 0.0
    %529 = vmatpush.msra.mxu0 0.0
    %530 = vmatpush.msra.mxu0 0.0
    %531 = vmatpush.msra.mxu0 0.0
    %532 = vmatpush.msra.mxu0 %v513
    %533 = vmatmul.f32.gmra.mxu0 %v464
    %v534 = vpop.f32.mrf.mxu0
    %v535 = vadd.f32 0.0, %v534
    %536 = vdwg.mxu0
    %537 = vmatpush.msra.mxu0 0.0
    %538 = vmatpush.msra.mxu0 0.0
    %539 = vmatpush.msra.mxu0 0.0
    %540 = vmatpush.msra.mxu0 0.0
    %541 = vmatpush.msra.mxu0 0.0
    %542 = vmatpush.msra.mxu0 0.0
    %543 = vmatpush.msra.mxu0 0.0
    %544 = vmatpush.msra.mxu0 0.0
    %545 = vmatpush.msra.mxu0 0.0
    %546 = vmatpush.msra.mxu0 0.0
    %547 = vmatpush.msra.mxu0 0.0
    %548 = vmatpush.msra.mxu0 0.0
    %549 = vmatpush.msra.mxu0 0.0
    %550 = vmatpush.msra.mxu0 0.0
    %551 = vmatpush.msra.mxu0 0.0
    %552 = vmatpush.msra.mxu0 %v515
    %553 = vmatmul.f32.gmra.mxu0 %v464
    %v554 = vpop.f32.mrf.mxu0
    %v555 = vadd.f32 0.0, %v554
    %556 = vdwg.mxu0
    %v557 = vld [vmem:[%s11] sm:$0xf]
    %v558 = vld [vmem:[%s12] sm:$0xf]
    %v559 = vsel %vm198, %v488, 0.0
    %v560 = vsel %vm198, %v508, 0.0
    %v561 = vadd.f32 %v559, %v560
    %562 = vadd.xlane.f32.xlu0 %v561
    %v563 = vpop.xlane.xlu0 %562
    %v564 = vadd.f32 %v563, 0.0
    %v565 = vsel %vm198, %v535, 0.0
    %v566 = vsel %vm198, %v555, 0.0
    %v567 = vadd.f32 %v565, %v566
    %568 = vadd.xlane.f32.xlu0 %v567
    %v569 = vpop.xlane.xlu0 %568
    %v570 = vadd.f32 %v564, %v569
    %v571 = vmul.f32 %v570, 0.001953125
    %v572 = vsub.f32 %v488, %v571
    %v573 = vsub.f32 %v508, %v571
    %v574 = vmul.f32 %v572, %v572
    %v575 = vmul.f32 %v573, %v573
    %v576 = vsel %vm198, %v574, 0.0
    %v577 = vsel %vm198, %v575, 0.0
    %v578 = vadd.f32 %v576, %v577
    %579 = vadd.xlane.f32.xlu0 %v578
    %v580 = vpop.xlane.xlu0 %579
    %v581 = vadd.f32 %v580, 0.0
    %v582 = vsub.f32 %v535, %v571
    %v583 = vsub.f32 %v555, %v571
    %v584 = vmul.f32 %v582, %v582
    %v585 = vmul.f32 %v583, %v583
    %v586 = vsel %vm198, %v584, 0.0
    %v587 = vsel %vm198, %v585, 0.0
    %v588 = vadd.f32 %v586, %v587
    %589 = vadd.xlane.f32.xlu0 %v588
    %v590 = vpop.xlane.xlu0 %589
    %v591 = vadd.f32 %v581, %v590
    %v592 = vmul.f32 %v591, 0.001953125
    %v593 = vadd.f32 %v592, 1e-05
    %v594 = vrsqrt.pop %v593
    %v595 = vmul.f32 %v594, %v593
    %v596 = vmul.f32 %v595, %v594
    %v597 = vmul.f32 0.5, %v596
    %v598 = vsub.f32 1.5, %v597
    %v599 = vmul.f32 %v594, %v598
    %vm600 = vweird.f32 %v593
    %vm601 = vweird.f32 %v594
    %vm602 = vmor %vm600, %vm601
    %v603 = vsel %vm602, %v594, %v599
    %v604 = vmul.f32 %v557, %v603
    %v605 = vmul.f32 %v571, %v604
    %v606 = vsub.f32 %v558, %v605
    %608 = vset.pattern.permute.xlu0 0
    %609 = vperm.xlu0 %608, %v604
    %v610 = vpop.permute.xlu0 %609
    %v612 = vmul.f32 %v488, %v610
    %v613 = vmul.f32 %v508, %v610
    %615 = vset.pattern.permute.xlu0 0
    %616 = vperm.xlu0 %615, %v606
    %v617 = vpop.permute.xlu0 %616
    %v619 = vadd.f32 %v612, %v617
    %v620 = vadd.f32 %v613, %v617
    %v621 = vmax.f32 %v619, 0.0
    %v622 = vmax.f32 %v620, 0.0
    %v623 = vmul.f32 %v535, %v610
    %v624 = vmul.f32 %v555, %v610
    %v625 = vadd.f32 %v623, %v617
    %v626 = vadd.f32 %v624, %v617
    %v627 = vmax.f32 %v625, 0.0
    %v628 = vmax.f32 %v626, 0.0
    %v629 = vld [vmem:[#allocation2] sm:$0xff]
    %v630 = vld [vmem:[#allocation2 + $0x8] sm:$0xff]
    %v631 = vld [vmem:[#allocation2 + $0x10] sm:$0xff]
    %v632 = vld [vmem:[#allocation2 + $0x18] sm:$0xff]
    %v633 = vld [vmem:[#allocation2 + $0x20] sm:$0xff]
    %v634 = vld [vmem:[#allocation2 + $0x28] sm:$0xff]
    %v635 = vld [vmem:[#allocation2 + $0x30] sm:$0xff]
    %v636 = vld [vmem:[#allocation2 + $0x38] sm:$0xff]
    %v637 = vld [vmem:[#allocation2 + $0x40] sm:$0xff]
    %v638 = vld [vmem:[#allocation2 + $0x48] sm:$0xff]
    %v639 = vld [vmem:[#allocation2 + $0x50] sm:$0xff]
    %v640 = vld [vmem:[#allocation2 + $0x58] sm:$0xff]
    %v641 = vld [vmem:[#allocation2 + $0x60] sm:$0xff]
    %v642 = vld [vmem:[#allocation2 + $0x68] sm:$0xff]
    %v643 = vld [vmem:[#allocation2 + $0x70] sm:$0xff]
    %v644 = vld [vmem:[#allocation2 + $0x78] sm:$0xff]
    %v645 = vld [vmem:[#allocation2 + $0x80] sm:$0xff]
    %v646 = vld [vmem:[#allocation2 + $0x88] sm:$0xff]
    %v647 = vld [vmem:[#allocation2 + $0x90] sm:$0xff]
    %v648 = vld [vmem:[#allocation2 + $0x98] sm:$0xff]
    %v649 = vld [vmem:[#allocation2 + $0xa0] sm:$0xff]
    %v650 = vld [vmem:[#allocation2 + $0xa8] sm:$0xff]
    %v651 = vld [vmem:[#allocation2 + $0xb0] sm:$0xff]
    %v652 = vld [vmem:[#allocation2 + $0xb8] sm:$0xff]
    %v653 = vld [vmem:[#allocation2 + $0xc0] sm:$0xff]
    %v654 = vld [vmem:[#allocation2 + $0xc8] sm:$0xff]
    %v655 = vld [vmem:[#allocation2 + $0xd0] sm:$0xff]
    %v656 = vld [vmem:[#allocation2 + $0xd8] sm:$0xff]
    %v657 = vld [vmem:[#allocation2 + $0xe0] sm:$0xff]
    %v658 = vld [vmem:[#allocation2 + $0xe8] sm:$0xff]
    %v659 = vld [vmem:[#allocation2 + $0xf0] sm:$0xff]
    %v660 = vld [vmem:[#allocation2 + $0xf8] sm:$0xff]
    %v661 = vld [vmem:[#allocation2 + $0x100] sm:$0xff]
    %v662 = vld [vmem:[#allocation2 + $0x108] sm:$0xff]
    %v663 = vld [vmem:[#allocation2 + $0x110] sm:$0xff]
    %v664 = vld [vmem:[#allocation2 + $0x118] sm:$0xff]
    %v665 = vld [vmem:[#allocation2 + $0x120] sm:$0xff]
    %v666 = vld [vmem:[#allocation2 + $0x128] sm:$0xff]
    %v667 = vld [vmem:[#allocation2 + $0x130] sm:$0xff]
    %v668 = vld [vmem:[#allocation2 + $0x138] sm:$0xff]
    %v669 = vld [vmem:[#allocation2 + $0x140] sm:$0xff]
    %v670 = vld [vmem:[#allocation2 + $0x148] sm:$0xff]
    %v671 = vld [vmem:[#allocation2 + $0x150] sm:$0xff]
    %v672 = vld [vmem:[#allocation2 + $0x158] sm:$0xff]
    %v673 = vld [vmem:[#allocation2 + $0x160] sm:$0xff]
    %v674 = vld [vmem:[#allocation2 + $0x168] sm:$0xff]
    %v675 = vld [vmem:[#allocation2 + $0x170] sm:$0xff]
    %v676 = vld [vmem:[#allocation2 + $0x178] sm:$0xff]
    %v677 = vld [vmem:[#allocation2 + $0x180] sm:$0xff]
    %v678 = vld [vmem:[#allocation2 + $0x188] sm:$0xff]
    %v679 = vld [vmem:[#allocation2 + $0x190] sm:$0xff]
    %v680 = vld [vmem:[#allocation2 + $0x198] sm:$0xff]
    %v681 = vld [vmem:[#allocation2 + $0x1a0] sm:$0xff]
    %v682 = vld [vmem:[#allocation2 + $0x1a8] sm:$0xff]
    %v683 = vld [vmem:[#allocation2 + $0x1b0] sm:$0xff]
    %v684 = vld [vmem:[#allocation2 + $0x1b8] sm:$0xff]
    %v685 = vld [vmem:[#allocation2 + $0x1c0] sm:$0xff]
    %v686 = vld [vmem:[#allocation2 + $0x1c8] sm:$0xff]
    %v687 = vld [vmem:[#allocation2 + $0x1d0] sm:$0xff]
    %v688 = vld [vmem:[#allocation2 + $0x1d8] sm:$0xff]
    %v689 = vld [vmem:[#allocation2 + $0x1e0] sm:$0xff]
    %v690 = vld [vmem:[#allocation2 + $0x1e8] sm:$0xff]
    %v691 = vld [vmem:[#allocation2 + $0x1f0] sm:$0xff]
    %v692 = vld [vmem:[#allocation2 + $0x1f8] sm:$0xff]
    %v693 = vld [vmem:[#allocation4] sm:$0xff]
    %v694 = vld [vmem:[#allocation4 + $0x8] sm:$0xff]
    %v695 = vld [vmem:[#allocation4 + $0x10] sm:$0xff]
    %v696 = vld [vmem:[#allocation4 + $0x18] sm:$0xff]
    %v697 = vld [vmem:[#allocation4 + $0x20] sm:$0xff]
    %v698 = vld [vmem:[#allocation4 + $0x28] sm:$0xff]
    %v699 = vld [vmem:[#allocation4 + $0x30] sm:$0xff]
    %v700 = vld [vmem:[#allocation4 + $0x38] sm:$0xff]
    %v701 = vld [vmem:[#allocation4 + $0x40] sm:$0xff]
    %v702 = vld [vmem:[#allocation4 + $0x48] sm:$0xff]
    %v703 = vld [vmem:[#allocation4 + $0x50] sm:$0xff]
    %v704 = vld [vmem:[#allocation4 + $0x58] sm:$0xff]
    %v705 = vld [vmem:[#allocation4 + $0x60] sm:$0xff]
    %v706 = vld [vmem:[#allocation4 + $0x68] sm:$0xff]
    %v707 = vld [vmem:[#allocation4 + $0x70] sm:$0xff]
    %v708 = vld [vmem:[#allocation4 + $0x78] sm:$0xff]
    %v709 = vld [vmem:[#allocation4 + $0x80] sm:$0xff]
    %v710 = vld [vmem:[#allocation4 + $0x88] sm:$0xff]
    %v711 = vld [vmem:[#allocation4 + $0x90] sm:$0xff]
    %v712 = vld [vmem:[#allocation4 + $0x98] sm:$0xff]
    %v713 = vld [vmem:[#allocation4 + $0xa0] sm:$0xff]
    %v714 = vld [vmem:[#allocation4 + $0xa8] sm:$0xff]
    %v715 = vld [vmem:[#allocation4 + $0xb0] sm:$0xff]
    %v716 = vld [vmem:[#allocation4 + $0xb8] sm:$0xff]
    %v717 = vld [vmem:[#allocation4 + $0xc0] sm:$0xff]
    %v718 = vld [vmem:[#allocation4 + $0xc8] sm:$0xff]
    %v719 = vld [vmem:[#allocation4 + $0xd0] sm:$0xff]
    %v720 = vld [vmem:[#allocation4 + $0xd8] sm:$0xff]
    %v721 = vld [vmem:[#allocation4 + $0xe0] sm:$0xff]
    %v722 = vld [vmem:[#allocation4 + $0xe8] sm:$0xff]
    %v723 = vld [vmem:[#allocation4 + $0xf0] sm:$0xff]
    %v724 = vld [vmem:[#allocation4 + $0xf8] sm:$0xff]
    %v725 = vld [vmem:[#allocation4 + $0x100] sm:$0xff]
    %v726 = vld [vmem:[#allocation4 + $0x108] sm:$0xff]
    %v727 = vld [vmem:[#allocation4 + $0x110] sm:$0xff]
    %v728 = vld [vmem:[#allocation4 + $0x118] sm:$0xff]
    %v729 = vld [vmem:[#allocation4 + $0x120] sm:$0xff]
    %v730 = vld [vmem:[#allocation4 + $0x128] sm:$0xff]
    %v731 = vld [vmem:[#allocation4 + $0x130] sm:$0xff]
    %v732 = vld [vmem:[#allocation4 + $0x138] sm:$0xff]
    %v733 = vld [vmem:[#allocation4 + $0x140] sm:$0xff]
    %v734 = vld [vmem:[#allocation4 + $0x148] sm:$0xff]
    %v735 = vld [vmem:[#allocation4 + $0x150] sm:$0xff]
    %v736 = vld [vmem:[#allocation4 + $0x158] sm:$0xff]
    %v737 = vld [vmem:[#allocation4 + $0x160] sm:$0xff]
    %v738 = vld [vmem:[#allocation4 + $0x168] sm:$0xff]
    %v739 = vld [vmem:[#allocation4 + $0x170] sm:$0xff]
    %v740 = vld [vmem:[#allocation4 + $0x178] sm:$0xff]
    %v741 = vld [vmem:[#allocation4 + $0x180] sm:$0xff]
    %v742 = vld [vmem:[#allocation4 + $0x188] sm:$0xff]
    %v743 = vld [vmem:[#allocation4 + $0x190] sm:$0xff]
    %v744 = vld [vmem:[#allocation4 + $0x198] sm:$0xff]
    %v745 = vld [vmem:[#allocation4 + $0x1a0] sm:$0xff]
    %v746 = vld [vmem:[#allocation4 + $0x1a8] sm:$0xff]
    %v747 = vld [vmem:[#allocation4 + $0x1b0] sm:$0xff]
    %v748 = vld [vmem:[#allocation4 + $0x1b8] sm:$0xff]
    %v749 = vld [vmem:[#allocation4 + $0x1c0] sm:$0xff]
    %v750 = vld [vmem:[#allocation4 + $0x1c8] sm:$0xff]
    %v751 = vld [vmem:[#allocation4 + $0x1d0] sm:$0xff]
    %v752 = vld [vmem:[#allocation4 + $0x1d8] sm:$0xff]
    %v753 = vld [vmem:[#allocation4 + $0x1e0] sm:$0xff]
    %v754 = vld [vmem:[#allocation4 + $0x1e8] sm:$0xff]
    %v755 = vld [vmem:[#allocation4 + $0x1f0] sm:$0xff]
    %v756 = vld [vmem:[#allocation4 + $0x1f8] sm:$0xff]
    %v757 = vld [vmem:[%s5] sm:$0xff]
    %758 = vmatpush.msra.mxu0 %v659
    %759 = vmatpush.msra.mxu0 %v657
    %760 = vmatpush.msra.mxu0 %v655
    %761 = vmatpush.msra.mxu0 %v653
    %762 = vmatpush.msra.mxu0 %v651
    %763 = vmatpush.msra.mxu0 %v649
    %764 = vmatpush.msra.mxu0 %v647
    %765 = vmatpush.msra.mxu0 %v645
    %766 = vmatpush.msra.mxu0 %v643
    %767 = vmatpush.msra.mxu0 %v641
    %768 = vmatpush.msra.mxu0 %v639
    %769 = vmatpush.msra.mxu0 %v637
    %770 = vmatpush.msra.mxu0 %v635
    %771 = vmatpush.msra.mxu0 %v633
    %772 = vmatpush.msra.mxu0 %v631
    %773 = vmatpush.msra.mxu0 %v629
    %774 = vmatmul.f32.gmra.mxu0 %v621
    %v775 = vpop.f32.mrf.mxu0
    %v776 = vadd.f32 0.0, %v775
    %777 = vdwg.mxu0
    %778 = vmatpush.msra.mxu0 %v691
    %779 = vmatpush.msra.mxu0 %v689
    %780 = vmatpush.msra.mxu0 %v687
    %781 = vmatpush.msra.mxu0 %v685
    %782 = vmatpush.msra.mxu0 %v683
    %783 = vmatpush.msra.mxu0 %v681
    %784 = vmatpush.msra.mxu0 %v679
    %785 = vmatpush.msra.mxu0 %v677
    %786 = vmatpush.msra.mxu0 %v675
    %787 = vmatpush.msra.mxu0 %v673
    %788 = vmatpush.msra.mxu0 %v671
    %789 = vmatpush.msra.mxu0 %v669
    %790 = vmatpush.msra.mxu0 %v667
    %791 = vmatpush.msra.mxu0 %v665
    %792 = vmatpush.msra.mxu0 %v663
    %793 = vmatpush.msra.mxu0 %v661
    %794 = vmatmul.f32.gmra.mxu0 %v622
    %v795 = vpop.f32.mrf.mxu0
    %v796 = vadd.f32 %v776, %v795
    %797 = vdwg.mxu0
    %798 = vmatpush.msra.mxu0 %v660
    %799 = vmatpush.msra.mxu0 %v658
    %800 = vmatpush.msra.mxu0 %v656
    %801 = vmatpush.msra.mxu0 %v654
    %802 = vmatpush.msra.mxu0 %v652
    %803 = vmatpush.msra.mxu0 %v650
    %804 = vmatpush.msra.mxu0 %v648
    %805 = vmatpush.msra.mxu0 %v646
    %806 = vmatpush.msra.mxu0 %v644
    %807 = vmatpush.msra.mxu0 %v642
    %808 = vmatpush.msra.mxu0 %v640
    %809 = vmatpush.msra.mxu0 %v638
    %810 = vmatpush.msra.mxu0 %v636
    %811 = vmatpush.msra.mxu0 %v634
    %812 = vmatpush.msra.mxu0 %v632
    %813 = vmatpush.msra.mxu0 %v630
    %814 = vmatmul.f32.gmra.mxu0 %v621
    %v815 = vpop.f32.mrf.mxu0
    %v816 = vadd.f32 0.0, %v815
    %817 = vdwg.mxu0
    %818 = vmatpush.msra.mxu0 %v692
    %819 = vmatpush.msra.mxu0 %v690
    %820 = vmatpush.msra.mxu0 %v688
    %821 = vmatpush.msra.mxu0 %v686
    %822 = vmatpush.msra.mxu0 %v684
    %823 = vmatpush.msra.mxu0 %v682
    %824 = vmatpush.msra.mxu0 %v680
    %825 = vmatpush.msra.mxu0 %v678
    %826 = vmatpush.msra.mxu0 %v676
    %827 = vmatpush.msra.mxu0 %v674
    %828 = vmatpush.msra.mxu0 %v672
    %829 = vmatpush.msra.mxu0 %v670
    %830 = vmatpush.msra.mxu0 %v668
    %831 = vmatpush.msra.mxu0 %v666
    %832 = vmatpush.msra.mxu0 %v664
    %833 = vmatpush.msra.mxu0 %v662
    %834 = vmatmul.f32.gmra.mxu0 %v622
    %v835 = vpop.f32.mrf.mxu0
    %v836 = vadd.f32 %v816, %v835
    %837 = vdwg.mxu0
    %838 = vmatpush.msra.mxu0 %v723
    %839 = vmatpush.msra.mxu0 %v721
    %840 = vmatpush.msra.mxu0 %v719
    %841 = vmatpush.msra.mxu0 %v717
    %842 = vmatpush.msra.mxu0 %v715
    %843 = vmatpush.msra.mxu0 %v713
    %844 = vmatpush.msra.mxu0 %v711
    %845 = vmatpush.msra.mxu0 %v709
    %846 = vmatpush.msra.mxu0 %v707
    %847 = vmatpush.msra.mxu0 %v705
    %848 = vmatpush.msra.mxu0 %v703
    %849 = vmatpush.msra.mxu0 %v701
    %850 = vmatpush.msra.mxu0 %v699
    %851 = vmatpush.msra.mxu0 %v697
    %852 = vmatpush.msra.mxu0 %v695
    %853 = vmatpush.msra.mxu0 %v693
    %854 = vmatmul.f32.gmra.mxu0 %v621
    %v855 = vpop.f32.mrf.mxu0
    %v856 = vadd.f32 0.0, %v855
    %857 = vdwg.mxu0
    %858 = vmatpush.msra.mxu0 %v755
    %859 = vmatpush.msra.mxu0 %v753
    %860 = vmatpush.msra.mxu0 %v751
    %861 = vmatpush.msra.mxu0 %v749
    %862 = vmatpush.msra.mxu0 %v747
    %863 = vmatpush.msra.mxu0 %v745
    %864 = vmatpush.msra.mxu0 %v743
    %865 = vmatpush.msra.mxu0 %v741
    %866 = vmatpush.msra.mxu0 %v739
    %867 = vmatpush.msra.mxu0 %v737
    %868 = vmatpush.msra.mxu0 %v735
    %869 = vmatpush.msra.mxu0 %v733
    %870 = vmatpush.msra.mxu0 %v731
    %871 = vmatpush.msra.mxu0 %v729
    %872 = vmatpush.msra.mxu0 %v727
    %873 = vmatpush.msra.mxu0 %v725
    %874 = vmatmul.f32.gmra.mxu0 %v622
    %v875 = vpop.f32.mrf.mxu0
    %v876 = vadd.f32 %v856, %v875
    %877 = vdwg.mxu0
    %878 = vmatpush.msra.mxu0 %v724
    %879 = vmatpush.msra.mxu0 %v722
    %880 = vmatpush.msra.mxu0 %v720
    %881 = vmatpush.msra.mxu0 %v718
    %882 = vmatpush.msra.mxu0 %v716
    %883 = vmatpush.msra.mxu0 %v714
    %884 = vmatpush.msra.mxu0 %v712
    %885 = vmatpush.msra.mxu0 %v710
    %886 = vmatpush.msra.mxu0 %v708
    %887 = vmatpush.msra.mxu0 %v706
    %888 = vmatpush.msra.mxu0 %v704
    %889 = vmatpush.msra.mxu0 %v702
    %890 = vmatpush.msra.mxu0 %v700
    %891 = vmatpush.msra.mxu0 %v698
    %892 = vmatpush.msra.mxu0 %v696
    %893 = vmatpush.msra.mxu0 %v694
    %894 = vmatmul.f32.gmra.mxu0 %v621
    %v895 = vpop.f32.mrf.mxu0
    %v896 = vadd.f32 0.0, %v895
    %897 = vdwg.mxu0
    %898 = vmatpush.msra.mxu0 %v756
    %899 = vmatpush.msra.mxu0 %v754
    %900 = vmatpush.msra.mxu0 %v752
    %901 = vmatpush.msra.mxu0 %v750
    %902 = vmatpush.msra.mxu0 %v748
    %903 = vmatpush.msra.mxu0 %v746
    %904 = vmatpush.msra.mxu0 %v744
    %905 = vmatpush.msra.mxu0 %v742
    %906 = vmatpush.msra.mxu0 %v740
    %907 = vmatpush.msra.mxu0 %v738
    %908 = vmatpush.msra.mxu0 %v736
    %909 = vmatpush.msra.mxu0 %v734
    %910 = vmatpush.msra.mxu0 %v732
    %911 = vmatpush.msra.mxu0 %v730
    %912 = vmatpush.msra.mxu0 %v728
    %913 = vmatpush.msra.mxu0 %v726
    %914 = vmatmul.f32.gmra.mxu0 %v622
    %v915 = vpop.f32.mrf.mxu0
    %v916 = vadd.f32 %v896, %v915
    %917 = vdwg.mxu0
    %919 = vrot.lane.b32.xlu0 %v757, 124
    %v920 = vpop.permute.xlu0 %919
    %v921 = vsel %vm194, %v920, 0
    %v924 = vsel %vm198, %v876, 0
    %v927 = vsel %vm198, %v916, 0
    %929 = vmatpush.msra.mxu0 0.0
    %930 = vmatpush.msra.mxu0 0.0
    %931 = vmatpush.msra.mxu0 0.0
    %932 = vmatpush.msra.mxu0 0.0
    %933 = vmatpush.msra.mxu0 0.0
    %934 = vmatpush.msra.mxu0 0.0
    %935 = vmatpush.msra.mxu0 0.0
    %936 = vmatpush.msra.mxu0 0.0
    %937 = vmatpush.msra.mxu0 0.0
    %938 = vmatpush.msra.mxu0 0.0
    %939 = vmatpush.msra.mxu0 0.0
    %940 = vmatpush.msra.mxu0 0.0
    %941 = vmatpush.msra.mxu0 0.0
    %942 = vmatpush.msra.mxu0 0.0
    %943 = vmatpush.msra.mxu0 0.0
    %944 = vmatpush.msra.mxu0 %v924
    %945 = vmatmul.f32.gmra.mxu0 %v921
    %v946 = vpop.f32.mrf.mxu0
    %v947 = vadd.f32 0.0, %v946
    %948 = vdwg.mxu0
    %949 = vmatpush.msra.mxu0 0.0
    %950 = vmatpush.msra.mxu0 0.0
    %951 = vmatpush.msra.mxu0 0.0
    %952 = vmatpush.msra.mxu0 0.0
    %953 = vmatpush.msra.mxu0 0.0
    %954 = vmatpush.msra.mxu0 0.0
    %955 = vmatpush.msra.mxu0 0.0
    %956 = vmatpush.msra.mxu0 0.0
    %957 = vmatpush.msra.mxu0 0.0
    %958 = vmatpush.msra.mxu0 0.0
    %959 = vmatpush.msra.mxu0 0.0
    %960 = vmatpush.msra.mxu0 0.0
    %961 = vmatpush.msra.mxu0 0.0
    %962 = vmatpush.msra.mxu0 0.0
    %963 = vmatpush.msra.mxu0 0.0
    %964 = vmatpush.msra.mxu0 %v927
    %965 = vmatmul.f32.gmra.mxu0 %v921
    %v966 = vpop.f32.mrf.mxu0
    %v967 = vadd.f32 0.0, %v966
    %968 = vdwg.mxu0
    %v969 = vsel %vm194, %v757, 0
    %v972 = vsel %vm198, %v796, 0
    %v975 = vsel %vm198, %v836, 0
    %977 = vmatpush.msra.mxu0 0.0
    %978 = vmatpush.msra.mxu0 0.0
    %979 = vmatpush.msra.mxu0 0.0
    %980 = vmatpush.msra.mxu0 0.0
    %981 = vmatpush.msra.mxu0 0.0
    %982 = vmatpush.msra.mxu0 0.0
    %983 = vmatpush.msra.mxu0 0.0
    %984 = vmatpush.msra.mxu0 0.0
    %985 = vmatpush.msra.mxu0 0.0
    %986 = vmatpush.msra.mxu0 0.0
    %987 = vmatpush.msra.mxu0 0.0
    %988 = vmatpush.msra.mxu0 0.0
    %989 = vmatpush.msra.mxu0 0.0
    %990 = vmatpush.msra.mxu0 0.0
    %991 = vmatpush.msra.mxu0 0.0
    %992 = vmatpush.msra.mxu0 %v972
    %993 = vmatmul.f32.gmra.mxu0 %v969
    %v994 = vpop.f32.mrf.mxu0
    %v995 = vadd.f32 %v947, %v994
    %996 = vdwg.mxu0
    %997 = vmatpush.msra.mxu0 0.0
    %998 = vmatpush.msra.mxu0 0.0
    %999 = vmatpush.msra.mxu0 0.0
    %1000 = vmatpush.msra.mxu0 0.0
    %1001 = vmatpush.msra.mxu0 0.0
    %1002 = vmatpush.msra.mxu0 0.0
    %1003 = vmatpush.msra.mxu0 0.0
    %1004 = vmatpush.msra.mxu0 0.0
    %1005 = vmatpush.msra.mxu0 0.0
    %1006 = vmatpush.msra.mxu0 0.0
    %1007 = vmatpush.msra.mxu0 0.0
    %1008 = vmatpush.msra.mxu0 0.0
    %1009 = vmatpush.msra.mxu0 0.0
    %1010 = vmatpush.msra.mxu0 0.0
    %1011 = vmatpush.msra.mxu0 0.0
    %1012 = vmatpush.msra.mxu0 %v975
    %1013 = vmatmul.f32.gmra.mxu0 %v969
    %v1014 = vpop.f32.mrf.mxu0
    %v1015 = vadd.f32 %v967, %v1014
    %1016 = vdwg.mxu0
    %1017 = vmatpush.msra.mxu0 %v659
    %1018 = vmatpush.msra.mxu0 %v657
    %1019 = vmatpush.msra.mxu0 %v655
    %1020 = vmatpush.msra.mxu0 %v653
    %1021 = vmatpush.msra.mxu0 %v651
    %1022 = vmatpush.msra.mxu0 %v649
    %1023 = vmatpush.msra.mxu0 %v647
    %1024 = vmatpush.msra.mxu0 %v645
    %1025 = vmatpush.msra.mxu0 %v643
    %1026 = vmatpush.msra.mxu0 %v641
    %1027 = vmatpush.msra.mxu0 %v639
    %1028 = vmatpush.msra.mxu0 %v637
    %1029 = vmatpush.msra.mxu0 %v635
    %1030 = vmatpush.msra.mxu0 %v633
    %1031 = vmatpush.msra.mxu0 %v631
    %1032 = vmatpush.msra.mxu0 %v629
    %1033 = vmatmul.f32.gmra.mxu0 %v627
    %v1034 = vpop.f32.mrf.mxu0
    %v1035 = vadd.f32 0.0, %v1034
    %1036 = vdwg.mxu0
    %1037 = vmatpush.msra.mxu0 %v691
    %1038 = vmatpush.msra.mxu0 %v689
    %1039 = vmatpush.msra.mxu0 %v687
    %1040 = vmatpush.msra.mxu0 %v685
    %1041 = vmatpush.msra.mxu0 %v683
    %1042 = vmatpush.msra.mxu0 %v681
    %1043 = vmatpush.msra.mxu0 %v679
    %1044 = vmatpush.msra.mxu0 %v677
    %1045 = vmatpush.msra.mxu0 %v675
    %1046 = vmatpush.msra.mxu0 %v673
    %1047 = vmatpush.msra.mxu0 %v671
    %1048 = vmatpush.msra.mxu0 %v669
    %1049 = vmatpush.msra.mxu0 %v667
    %1050 = vmatpush.msra.mxu0 %v665
    %1051 = vmatpush.msra.mxu0 %v663
    %1052 = vmatpush.msra.mxu0 %v661
    %1053 = vmatmul.f32.gmra.mxu0 %v628
    %v1054 = vpop.f32.mrf.mxu0
    %v1055 = vadd.f32 %v1035, %v1054
    %1056 = vdwg.mxu0
    %1057 = vmatpush.msra.mxu0 %v660
    %1058 = vmatpush.msra.mxu0 %v658
    %1059 = vmatpush.msra.mxu0 %v656
    %1060 = vmatpush.msra.mxu0 %v654
    %1061 = vmatpush.msra.mxu0 %v652
    %1062 = vmatpush.msra.mxu0 %v650
    %1063 = vmatpush.msra.mxu0 %v648
    %1064 = vmatpush.msra.mxu0 %v646
    %1065 = vmatpush.msra.mxu0 %v644
    %1066 = vmatpush.msra.mxu0 %v642
    %1067 = vmatpush.msra.mxu0 %v640
    %1068 = vmatpush.msra.mxu0 %v638
    %1069 = vmatpush.msra.mxu0 %v636
    %1070 = vmatpush.msra.mxu0 %v634
    %1071 = vmatpush.msra.mxu0 %v632
    %1072 = vmatpush.msra.mxu0 %v630
    %1073 = vmatmul.f32.gmra.mxu0 %v627
    %v1074 = vpop.f32.mrf.mxu0
    %v1075 = vadd.f32 0.0, %v1074
    %1076 = vdwg.mxu0
    %1077 = vmatpush.msra.mxu0 %v692
    %1078 = vmatpush.msra.mxu0 %v690
    %1079 = vmatpush.msra.mxu0 %v688
    %1080 = vmatpush.msra.mxu0 %v686
    %1081 = vmatpush.msra.mxu0 %v684
    %1082 = vmatpush.msra.mxu0 %v682
    %1083 = vmatpush.msra.mxu0 %v680
    %1084 = vmatpush.msra.mxu0 %v678
    %1085 = vmatpush.msra.mxu0 %v676
    %1086 = vmatpush.msra.mxu0 %v674
    %1087 = vmatpush.msra.mxu0 %v672
    %1088 = vmatpush.msra.mxu0 %v670
    %1089 = vmatpush.msra.mxu0 %v668
    %1090 = vmatpush.msra.mxu0 %v666
    %1091 = vmatpush.msra.mxu0 %v664
    %1092 = vmatpush.msra.mxu0 %v662
    %1093 = vmatmul.f32.gmra.mxu0 %v628
    %v1094 = vpop.f32.mrf.mxu0
    %v1095 = vadd.f32 %v1075, %v1094
    %1096 = vdwg.mxu0
    %1097 = vmatpush.msra.mxu0 %v723
    %1098 = vmatpush.msra.mxu0 %v721
    %1099 = vmatpush.msra.mxu0 %v719
    %1100 = vmatpush.msra.mxu0 %v717
    %1101 = vmatpush.msra.mxu0 %v715
    %1102 = vmatpush.msra.mxu0 %v713
    %1103 = vmatpush.msra.mxu0 %v711
    %1104 = vmatpush.msra.mxu0 %v709
    %1105 = vmatpush.msra.mxu0 %v707
    %1106 = vmatpush.msra.mxu0 %v705
    %1107 = vmatpush.msra.mxu0 %v703
    %1108 = vmatpush.msra.mxu0 %v701
    %1109 = vmatpush.msra.mxu0 %v699
    %1110 = vmatpush.msra.mxu0 %v697
    %1111 = vmatpush.msra.mxu0 %v695
    %1112 = vmatpush.msra.mxu0 %v693
    %1113 = vmatmul.f32.gmra.mxu0 %v627
    %v1114 = vpop.f32.mrf.mxu0
    %v1115 = vadd.f32 0.0, %v1114
    %1116 = vdwg.mxu0
    %1117 = vmatpush.msra.mxu0 %v755
    %1118 = vmatpush.msra.mxu0 %v753
    %1119 = vmatpush.msra.mxu0 %v751
    %1120 = vmatpush.msra.mxu0 %v749
    %1121 = vmatpush.msra.mxu0 %v747
    %1122 = vmatpush.msra.mxu0 %v745
    %1123 = vmatpush.msra.mxu0 %v743
    %1124 = vmatpush.msra.mxu0 %v741
    %1125 = vmatpush.msra.mxu0 %v739
    %1126 = vmatpush.msra.mxu0 %v737
    %1127 = vmatpush.msra.mxu0 %v735
    %1128 = vmatpush.msra.mxu0 %v733
    %1129 = vmatpush.msra.mxu0 %v731
    %1130 = vmatpush.msra.mxu0 %v729
    %1131 = vmatpush.msra.mxu0 %v727
    %1132 = vmatpush.msra.mxu0 %v725
    %1133 = vmatmul.f32.gmra.mxu0 %v628
    %v1134 = vpop.f32.mrf.mxu0
    %v1135 = vadd.f32 %v1115, %v1134
    %1136 = vdwg.mxu0
    %1137 = vmatpush.msra.mxu0 %v724
    %1138 = vmatpush.msra.mxu0 %v722
    %1139 = vmatpush.msra.mxu0 %v720
    %1140 = vmatpush.msra.mxu0 %v718
    %1141 = vmatpush.msra.mxu0 %v716
    %1142 = vmatpush.msra.mxu0 %v714
    %1143 = vmatpush.msra.mxu0 %v712
    %1144 = vmatpush.msra.mxu0 %v710
    %1145 = vmatpush.msra.mxu0 %v708
    %1146 = vmatpush.msra.mxu0 %v706
    %1147 = vmatpush.msra.mxu0 %v704
    %1148 = vmatpush.msra.mxu0 %v702
    %1149 = vmatpush.msra.mxu0 %v700
    %1150 = vmatpush.msra.mxu0 %v698
    %1151 = vmatpush.msra.mxu0 %v696
    %1152 = vmatpush.msra.mxu0 %v694
    %1153 = vmatmul.f32.gmra.mxu0 %v627
    %v1154 = vpop.f32.mrf.mxu0
    %v1155 = vadd.f32 0.0, %v1154
    %1156 = vdwg.mxu0
    %1157 = vmatpush.msra.mxu0 %v756
    %1158 = vmatpush.msra.mxu0 %v754
    %1159 = vmatpush.msra.mxu0 %v752
    %1160 = vmatpush.msra.mxu0 %v750
    %1161 = vmatpush.msra.mxu0 %v748
    %1162 = vmatpush.msra.mxu0 %v746
    %1163 = vmatpush.msra.mxu0 %v744
    %1164 = vmatpush.msra.mxu0 %v742
    %1165 = vmatpush.msra.mxu0 %v740
    %1166 = vmatpush.msra.mxu0 %v738
    %1167 = vmatpush.msra.mxu0 %v736
    %1168 = vmatpush.msra.mxu0 %v734
    %1169 = vmatpush.msra.mxu0 %v732
    %1170 = vmatpush.msra.mxu0 %v730
    %1171 = vmatpush.msra.mxu0 %v728
    %1172 = vmatpush.msra.mxu0 %v726
    %1173 = vmatmul.f32.gmra.mxu0 %v628
    %v1174 = vpop.f32.mrf.mxu0
    %v1175 = vadd.f32 %v1155, %v1174
    %1176 = vdwg.mxu0
    %v1178 = vsel %vm198, %v1135, 0
    %v1181 = vsel %vm198, %v1175, 0
    %1183 = vmatpush.msra.mxu0 0.0
    %1184 = vmatpush.msra.mxu0 0.0
    %1185 = vmatpush.msra.mxu0 0.0
    %1186 = vmatpush.msra.mxu0 0.0
    %1187 = vmatpush.msra.mxu0 0.0
    %1188 = vmatpush.msra.mxu0 0.0
    %1189 = vmatpush.msra.mxu0 0.0
    %1190 = vmatpush.msra.mxu0 0.0
    %1191 = vmatpush.msra.mxu0 0.0
    %1192 = vmatpush.msra.mxu0 0.0
    %1193 = vmatpush.msra.mxu0 0.0
    %1194 = vmatpush.msra.mxu0 0.0
    %1195 = vmatpush.msra.mxu0 0.0
    %1196 = vmatpush.msra.mxu0 0.0
    %1197 = vmatpush.msra.mxu0 0.0
    %1198 = vmatpush.msra.mxu0 %v1178
    %1199 = vmatmul.f32.gmra.mxu0 %v921
    %v1200 = vpop.f32.mrf.mxu0
    %v1201 = vadd.f32 0.0, %v1200
    %1202 = vdwg.mxu0
    %1203 = vmatpush.msra.mxu0 0.0
    %1204 = vmatpush.msra.mxu0 0.0
    %1205 = vmatpush.msra.mxu0 0.0
    %1206 = vmatpush.msra.mxu0 0.0
    %1207 = vmatpush.msra.mxu0 0.0
    %1208 = vmatpush.msra.mxu0 0.0
    %1209 = vmatpush.msra.mxu0 0.0
    %1210 = vmatpush.msra.mxu0 0.0
    %1211 = vmatpush.msra.mxu0 0.0
    %1212 = vmatpush.msra.mxu0 0.0
    %1213 = vmatpush.msra.mxu0 0.0
    %1214 = vmatpush.msra.mxu0 0.0
    %1215 = vmatpush.msra.mxu0 0.0
    %1216 = vmatpush.msra.mxu0 0.0
    %1217 = vmatpush.msra.mxu0 0.0
    %1218 = vmatpush.msra.mxu0 %v1181
    %1219 = vmatmul.f32.gmra.mxu0 %v921
    %v1220 = vpop.f32.mrf.mxu0
    %v1221 = vadd.f32 0.0, %v1220
    %1222 = vdwg.mxu0
    %v1224 = vsel %vm198, %v1055, 0
    %v1227 = vsel %vm198, %v1095, 0
    %1229 = vmatpush.msra.mxu0 0.0
    %1230 = vmatpush.msra.mxu0 0.0
    %1231 = vmatpush.msra.mxu0 0.0
    %1232 = vmatpush.msra.mxu0 0.0
    %1233 = vmatpush.msra.mxu0 0.0
    %1234 = vmatpush.msra.mxu0 0.0
    %1235 = vmatpush.msra.mxu0 0.0
    %1236 = vmatpush.msra.mxu0 0.0
    %1237 = vmatpush.msra.mxu0 0.0
    %1238 = vmatpush.msra.mxu0 0.0
    %1239 = vmatpush.msra.mxu0 0.0
    %1240 = vmatpush.msra.mxu0 0.0
    %1241 = vmatpush.msra.mxu0 0.0
    %1242 = vmatpush.msra.mxu0 0.0
    %1243 = vmatpush.msra.mxu0 0.0
    %1244 = vmatpush.msra.mxu0 %v1224
    %1245 = vmatmul.f32.gmra.mxu0 %v969
    %v1246 = vpop.f32.mrf.mxu0
    %v1247 = vadd.f32 %v1201, %v1246
    %1248 = vdwg.mxu0
    %1249 = vmatpush.msra.mxu0 0.0
    %1250 = vmatpush.msra.mxu0 0.0
    %1251 = vmatpush.msra.mxu0 0.0
    %1252 = vmatpush.msra.mxu0 0.0
    %1253 = vmatpush.msra.mxu0 0.0
    %1254 = vmatpush.msra.mxu0 0.0
    %1255 = vmatpush.msra.mxu0 0.0
    %1256 = vmatpush.msra.mxu0 0.0
    %1257 = vmatpush.msra.mxu0 0.0
    %1258 = vmatpush.msra.mxu0 0.0
    %1259 = vmatpush.msra.mxu0 0.0
    %1260 = vmatpush.msra.mxu0 0.0
    %1261 = vmatpush.msra.mxu0 0.0
    %1262 = vmatpush.msra.mxu0 0.0
    %1263 = vmatpush.msra.mxu0 0.0
    %1264 = vmatpush.msra.mxu0 %v1227
    %1265 = vmatmul.f32.gmra.mxu0 %v969
    %v1266 = vpop.f32.mrf.mxu0
    %v1267 = vadd.f32 %v1221, %v1266
    %1268 = vdwg.mxu0
    %v1269 = vld [vmem:[%s13] sm:$0xff]
    %v1270 = vld [vmem:[%s14] sm:$0xff]
    %vm1271 = vcmask 130048
    %v1272 = vsel %vm1271, %v1015, 0.0
    %v1273 = vadd.f32 %v995, %v1272
    %1274 = vadd.xlane.f32.xlu0 %v1273
    %v1275 = vpop.xlane.xlu0 %1274
    %v1276 = vadd.f32 %v1275, 0.0
    %v1277 = vsel %vm1271, %v1267, 0.0
    %v1278 = vadd.f32 %v1247, %v1277
    %1279 = vadd.xlane.f32.xlu0 %v1278
    %v1280 = vpop.xlane.xlu0 %1279
    %v1281 = vadd.f32 %v1276, %v1280
    %v1282 = vmul.f32 %v1281, 0.0034722222
    %v1283 = vsub.f32 %v995, %v1282
    %v1284 = vsub.f32 %v1015, %v1282
    %v1285 = vmul.f32 %v1283, %v1283
    %v1286 = vmul.f32 %v1284, %v1284
    %v1287 = vsel %vm1271, %v1286, 0.0
    %v1288 = vadd.f32 %v1285, %v1287
    %1289 = vadd.xlane.f32.xlu0 %v1288
    %v1290 = vpop.xlane.xlu0 %1289
    %v1291 = vadd.f32 %v1290, 0.0
    %v1292 = vsub.f32 %v1247, %v1282
    %v1293 = vsub.f32 %v1267, %v1282
    %v1294 = vmul.f32 %v1292, %v1292
    %v1295 = vmul.f32 %v1293, %v1293
    %v1296 = vsel %vm1271, %v1295, 0.0
    %v1297 = vadd.f32 %v1294, %v1296
    %1298 = vadd.xlane.f32.xlu0 %v1297
    %v1299 = vpop.xlane.xlu0 %1298
    %v1300 = vadd.f32 %v1291, %v1299
    %v1301 = vmul.f32 %v1300, 0.0034722222
    %v1302 = vadd.f32 %v1301, 1e-05
    %v1303 = vrsqrt.pop %v1302
    %v1304 = vmul.f32 %v1303, %v1302
    %v1305 = vmul.f32 %v1304, %v1303
    %v1306 = vmul.f32 0.5, %v1305
    %v1307 = vsub.f32 1.5, %v1306
    %v1308 = vmul.f32 %v1303, %v1307
    %vm1309 = vweird.f32 %v1302
    %vm1310 = vweird.f32 %v1303
    %vm1311 = vmor %vm1309, %vm1310
    %v1312 = vsel %vm1311, %v1303, %v1308
    %v1313 = vmul.f32 %v1269, %v1312
    %v1314 = vmul.f32 %v1282, %v1313
    %v1315 = vsub.f32 %v1270, %v1314
    %1317 = vset.pattern.permute.xlu0 0
    %1318 = vperm.xlu0 %1317, %v1313
    %v1319 = vpop.permute.xlu0 %1318
    %v1321 = vmul.f32 %v995, %v1319
    %v1322 = vmul.f32 %v1015, %v1319
    %1324 = vset.pattern.permute.xlu0 0
    %1325 = vperm.xlu0 %1324, %v1315
    %v1326 = vpop.permute.xlu0 %1325
    %v1328 = vadd.f32 %v1321, %v1326
    %v1329 = vadd.f32 %v1322, %v1326
    %v1330 = vmax.f32 %v1328, 0.0
    %v1331 = vmax.f32 %v1329, 0.0
    %v1332 = vmul.f32 %v1247, %v1319
    %v1333 = vmul.f32 %v1267, %v1319
    %v1334 = vadd.f32 %v1332, %v1326
    %v1335 = vadd.f32 %v1333, %v1326
    %v1336 = vmax.f32 %v1334, 0.0
    %v1337 = vmax.f32 %v1335, 0.0
    %v1338 = vld [vmem:[#allocation6] sm:$0xff]
    %v1339 = vld [vmem:[#allocation6 + $0x8] sm:$0xff]
    %v1340 = vld [vmem:[#allocation6 + $0x10] sm:$0xff]
    %v1341 = vld [vmem:[#allocation6 + $0x18] sm:$0xff]
    %v1342 = vld [vmem:[#allocation6 + $0x20] sm:$0xff]
    %v1343 = vld [vmem:[#allocation6 + $0x28] sm:$0xff]
    %v1344 = vld [vmem:[#allocation6 + $0x30] sm:$0xff]
    %v1345 = vld [vmem:[#allocation6 + $0x38] sm:$0xff]
    %v1346 = vld [vmem:[#allocation6 + $0x40] sm:$0xff]
    %v1347 = vld [vmem:[#allocation6 + $0x48] sm:$0xff]
    %v1348 = vld [vmem:[#allocation6 + $0x50] sm:$0xff]
    %v1349 = vld [vmem:[#allocation6 + $0x58] sm:$0xff]
    %v1350 = vld [vmem:[#allocation6 + $0x60] sm:$0xff]
    %v1351 = vld [vmem:[#allocation6 + $0x68] sm:$0xff]
    %v1352 = vld [vmem:[#allocation6 + $0x70] sm:$0xff]
    %v1353 = vld [vmem:[#allocation6 + $0x78] sm:$0xff]
    %v1354 = vld [vmem:[#allocation6 + $0x80] sm:$0xff]
    %v1355 = vld [vmem:[#allocation6 + $0x88] sm:$0xff]
    %v1356 = vld [vmem:[#allocation6 + $0x90] sm:$0xff]
    %v1357 = vld [vmem:[#allocation6 + $0x98] sm:$0xff]
    %v1358 = vld [vmem:[#allocation6 + $0xa0] sm:$0xff]
    %v1359 = vld [vmem:[#allocation6 + $0xa8] sm:$0xff]
    %v1360 = vld [vmem:[#allocation6 + $0xb0] sm:$0xff]
    %v1361 = vld [vmem:[#allocation6 + $0xb8] sm:$0xff]
    %v1362 = vld [vmem:[#allocation6 + $0xc0] sm:$0xff]
    %v1363 = vld [vmem:[#allocation6 + $0xc8] sm:$0xff]
    %v1364 = vld [vmem:[#allocation6 + $0xd0] sm:$0xff]
    %v1365 = vld [vmem:[#allocation6 + $0xd8] sm:$0xff]
    %v1366 = vld [vmem:[#allocation6 + $0xe0] sm:$0xff]
    %v1367 = vld [vmem:[#allocation6 + $0xe8] sm:$0xff]
    %v1368 = vld [vmem:[#allocation6 + $0xf0] sm:$0xff]
    %v1369 = vld [vmem:[#allocation6 + $0xf8] sm:$0xff]
    %v1370 = vld [vmem:[#allocation6 + $0x100] sm:$0xff]
    %v1371 = vld [vmem:[#allocation6 + $0x108] sm:$0xff]
    %v1372 = vld [vmem:[#allocation6 + $0x110] sm:$0xff]
    %v1373 = vld [vmem:[#allocation6 + $0x118] sm:$0xff]
    %v1374 = vld [vmem:[#allocation7] sm:$0xff]
    %v1375 = vld [vmem:[#allocation7 + $0x8] sm:$0xff]
    %v1376 = vld [vmem:[#allocation7 + $0x10] sm:$0xff]
    %v1377 = vld [vmem:[#allocation7 + $0x18] sm:$0xff]
    %v1378 = vld [vmem:[#allocation7 + $0x20] sm:$0xff]
    %v1379 = vld [vmem:[#allocation7 + $0x28] sm:$0xff]
    %v1380 = vld [vmem:[#allocation7 + $0x30] sm:$0xff]
    %v1381 = vld [vmem:[#allocation7 + $0x38] sm:$0xff]
    %v1382 = vld [vmem:[#allocation7 + $0x40] sm:$0xff]
    %v1383 = vld [vmem:[#allocation7 + $0x48] sm:$0xff]
    %v1384 = vld [vmem:[#allocation7 + $0x50] sm:$0xff]
    %v1385 = vld [vmem:[#allocation7 + $0x58] sm:$0xff]
    %v1386 = vld [vmem:[#allocation7 + $0x60] sm:$0xff]
    %v1387 = vld [vmem:[#allocation7 + $0x68] sm:$0xff]
    %v1388 = vld [vmem:[#allocation7 + $0x70] sm:$0xff]
    %v1389 = vld [vmem:[#allocation7 + $0x78] sm:$0xff]
    %v1390 = vld [vmem:[#allocation7 + $0x80] sm:$0xff]
    %v1391 = vld [vmem:[#allocation7 + $0x88] sm:$0xff]
    %v1392 = vld [vmem:[#allocation7 + $0x90] sm:$0xff]
    %v1393 = vld [vmem:[#allocation7 + $0x98] sm:$0xff]
    %v1394 = vld [vmem:[#allocation7 + $0xa0] sm:$0xff]
    %v1395 = vld [vmem:[#allocation7 + $0xa8] sm:$0xff]
    %v1396 = vld [vmem:[#allocation7 + $0xb0] sm:$0xff]
    %v1397 = vld [vmem:[#allocation7 + $0xb8] sm:$0xff]
    %v1398 = vld [vmem:[#allocation7 + $0xc0] sm:$0xff]
    %v1399 = vld [vmem:[#allocation7 + $0xc8] sm:$0xff]
    %v1400 = vld [vmem:[#allocation7 + $0xd0] sm:$0xff]
    %v1401 = vld [vmem:[#allocation7 + $0xd8] sm:$0xff]
    %v1402 = vld [vmem:[#allocation7 + $0xe0] sm:$0xff]
    %v1403 = vld [vmem:[#allocation7 + $0xe8] sm:$0xff]
    %v1404 = vld [vmem:[#allocation7 + $0xf0] sm:$0xff]
    %v1405 = vld [vmem:[#allocation7 + $0xf8] sm:$0xff]
    %v1406 = vld [vmem:[#allocation7 + $0x100] sm:$0xff]
    %v1407 = vld [vmem:[#allocation7 + $0x108] sm:$0xff]
    %v1408 = vld [vmem:[#allocation7 + $0x110] sm:$0xff]
    %v1409 = vld [vmem:[#allocation7 + $0x118] sm:$0xff]
    %v1412 = vrot.slane %v1330, 4
    %v1413 = vrot.slane %v1331, 4
    %v1415 = vsel %vm1271, %v1413, 0
    %1417 = vmatpush.msra.mxu0 %v1404
    %1418 = vmatpush.msra.mxu0 %v1402
    %1419 = vmatpush.msra.mxu0 %v1400
    %1420 = vmatpush.msra.mxu0 %v1398
    %1421 = vmatpush.msra.mxu0 %v1396
    %1422 = vmatpush.msra.mxu0 %v1394
    %1423 = vmatpush.msra.mxu0 %v1392
    %1424 = vmatpush.msra.mxu0 %v1390
    %1425 = vmatpush.msra.mxu0 %v1388
    %1426 = vmatpush.msra.mxu0 %v1386
    %1427 = vmatpush.msra.mxu0 %v1384
    %1428 = vmatpush.msra.mxu0 %v1382
    %1429 = vmatpush.msra.mxu0 %v1380
    %1430 = vmatpush.msra.mxu0 %v1378
    %1431 = vmatpush.msra.mxu0 %v1376
    %1432 = vmatpush.msra.mxu0 %v1374
    %1433 = vmatmul.f32.gmra.mxu0 %v1412
    %v1434 = vpop.f32.mrf.mxu0
    %v1435 = vadd.f32 0.0, %v1434
    %1436 = vdwg.mxu0
    %1437 = vmatpush.msra.mxu0 0.0
    %1438 = vmatpush.msra.mxu0 0.0
    %1439 = vmatpush.msra.mxu0 0.0
    %1440 = vmatpush.msra.mxu0 0.0
    %1441 = vmatpush.msra.mxu0 0.0
    %1442 = vmatpush.msra.mxu0 0.0
    %1443 = vmatpush.msra.mxu0 0.0
    %1444 = vmatpush.msra.mxu0 0.0
    %1445 = vmatpush.msra.mxu0 0.0
    %1446 = vmatpush.msra.mxu0 0.0
    %1447 = vmatpush.msra.mxu0 0.0
    %1448 = vmatpush.msra.mxu0 0.0
    %1449 = vmatpush.msra.mxu0 0.0
    %1450 = vmatpush.msra.mxu0 0.0
    %1451 = vmatpush.msra.mxu0 %v1408
    %1452 = vmatpush.msra.mxu0 %v1406
    %1453 = vmatmul.f32.gmra.mxu0 %v1415
    %v1454 = vpop.f32.mrf.mxu0
    %v1455 = vadd.f32 %v1435, %v1454
    %1456 = vdwg.mxu0
    %1457 = vmatpush.msra.mxu0 %v1405
    %1458 = vmatpush.msra.mxu0 %v1403
    %1459 = vmatpush.msra.mxu0 %v1401
    %1460 = vmatpush.msra.mxu0 %v1399
    %1461 = vmatpush.msra.mxu0 %v1397
    %1462 = vmatpush.msra.mxu0 %v1395
    %1463 = vmatpush.msra.mxu0 %v1393
    %1464 = vmatpush.msra.mxu0 %v1391
    %1465 = vmatpush.msra.mxu0 %v1389
    %1466 = vmatpush.msra.mxu0 %v1387
    %1467 = vmatpush.msra.mxu0 %v1385
    %1468 = vmatpush.msra.mxu0 %v1383
    %1469 = vmatpush.msra.mxu0 %v1381
    %1470 = vmatpush.msra.mxu0 %v1379
    %1471 = vmatpush.msra.mxu0 %v1377
    %1472 = vmatpush.msra.mxu0 %v1375
    %1473 = vmatmul.f32.gmra.mxu0 %v1412
    %v1474 = vpop.f32.mrf.mxu0
    %v1475 = vadd.f32 0.0, %v1474
    %1476 = vdwg.mxu0
    %1477 = vmatpush.msra.mxu0 0.0
    %1478 = vmatpush.msra.mxu0 0.0
    %1479 = vmatpush.msra.mxu0 0.0
    %1480 = vmatpush.msra.mxu0 0.0
    %1481 = vmatpush.msra.mxu0 0.0
    %1482 = vmatpush.msra.mxu0 0.0
    %1483 = vmatpush.msra.mxu0 0.0
    %1484 = vmatpush.msra.mxu0 0.0
    %1485 = vmatpush.msra.mxu0 0.0
    %1486 = vmatpush.msra.mxu0 0.0
    %1487 = vmatpush.msra.mxu0 0.0
    %1488 = vmatpush.msra.mxu0 0.0
    %1489 = vmatpush.msra.mxu0 0.0
    %1490 = vmatpush.msra.mxu0 0.0
    %1491 = vmatpush.msra.mxu0 %v1409
    %1492 = vmatpush.msra.mxu0 %v1407
    %1493 = vmatmul.f32.gmra.mxu0 %v1415
    %v1494 = vpop.f32.mrf.mxu0
    %v1495 = vadd.f32 %v1475, %v1494
    %1496 = vdwg.mxu0
    %v1497 = vsel %vm1271, %v1331, 0
    %1499 = vmatpush.msra.mxu0 %v1368
    %1500 = vmatpush.msra.mxu0 %v1366
    %1501 = vmatpush.msra.mxu0 %v1364
    %1502 = vmatpush.msra.mxu0 %v1362
    %1503 = vmatpush.msra.mxu0 %v1360
    %1504 = vmatpush.msra.mxu0 %v1358
    %1505 = vmatpush.msra.mxu0 %v1356
    %1506 = vmatpush.msra.mxu0 %v1354
    %1507 = vmatpush.msra.mxu0 %v1352
    %1508 = vmatpush.msra.mxu0 %v1350
    %1509 = vmatpush.msra.mxu0 %v1348
    %1510 = vmatpush.msra.mxu0 %v1346
    %1511 = vmatpush.msra.mxu0 %v1344
    %1512 = vmatpush.msra.mxu0 %v1342
    %1513 = vmatpush.msra.mxu0 %v1340
    %1514 = vmatpush.msra.mxu0 %v1338
    %1515 = vmatmul.f32.gmra.mxu0 %v1330
    %v1516 = vpop.f32.mrf.mxu0
    %v1517 = vadd.f32 %v1455, %v1516
    %1518 = vdwg.mxu0
    %1519 = vmatpush.msra.mxu0 0.0
    %1520 = vmatpush.msra.mxu0 0.0
    %1521 = vmatpush.msra.mxu0 0.0
    %1522 = vmatpush.msra.mxu0 0.0
    %1523 = vmatpush.msra.mxu0 0.0
    %1524 = vmatpush.msra.mxu0 0.0
    %1525 = vmatpush.msra.mxu0 0.0
    %1526 = vmatpush.msra.mxu0 0.0
    %1527 = vmatpush.msra.mxu0 0.0
    %1528 = vmatpush.msra.mxu0 0.0
    %1529 = vmatpush.msra.mxu0 0.0
    %1530 = vmatpush.msra.mxu0 0.0
    %1531 = vmatpush.msra.mxu0 0.0
    %1532 = vmatpush.msra.mxu0 0.0
    %1533 = vmatpush.msra.mxu0 %v1372
    %1534 = vmatpush.msra.mxu0 %v1370
    %1535 = vmatmul.f32.gmra.mxu0 %v1497
    %v1536 = vpop.f32.mrf.mxu0
    %v1537 = vadd.f32 %v1517, %v1536
    %1538 = vdwg.mxu0
    %1539 = vmatpush.msra.mxu0 %v1369
    %1540 = vmatpush.msra.mxu0 %v1367
    %1541 = vmatpush.msra.mxu0 %v1365
    %1542 = vmatpush.msra.mxu0 %v1363
    %1543 = vmatpush.msra.mxu0 %v1361
    %1544 = vmatpush.msra.mxu0 %v1359
    %1545 = vmatpush.msra.mxu0 %v1357
    %1546 = vmatpush.msra.mxu0 %v1355
    %1547 = vmatpush.msra.mxu0 %v1353
    %1548 = vmatpush.msra.mxu0 %v1351
    %1549 = vmatpush.msra.mxu0 %v1349
    %1550 = vmatpush.msra.mxu0 %v1347
    %1551 = vmatpush.msra.mxu0 %v1345
    %1552 = vmatpush.msra.mxu0 %v1343
    %1553 = vmatpush.msra.mxu0 %v1341
    %1554 = vmatpush.msra.mxu0 %v1339
    %1555 = vmatmul.f32.gmra.mxu0 %v1330
    %v1556 = vpop.f32.mrf.mxu0
    %v1557 = vadd.f32 %v1495, %v1556
    %1558 = vdwg.mxu0
    %1559 = vmatpush.msra.mxu0 0.0
    %1560 = vmatpush.msra.mxu0 0.0
    %1561 = vmatpush.msra.mxu0 0.0
    %1562 = vmatpush.msra.mxu0 0.0
    %1563 = vmatpush.msra.mxu0 0.0
    %1564 = vmatpush.msra.mxu0 0.0
    %1565 = vmatpush.msra.mxu0 0.0
    %1566 = vmatpush.msra.mxu0 0.0
    %1567 = vmatpush.msra.mxu0 0.0
    %1568 = vmatpush.msra.mxu0 0.0
    %1569 = vmatpush.msra.mxu0 0.0
    %1570 = vmatpush.msra.mxu0 0.0
    %1571 = vmatpush.msra.mxu0 0.0
    %1572 = vmatpush.msra.mxu0 0.0
    %1573 = vmatpush.msra.mxu0 %v1373
    %1574 = vmatpush.msra.mxu0 %v1371
    %1575 = vmatmul.f32.gmra.mxu0 %v1497
    %v1576 = vpop.f32.mrf.mxu0
    %v1577 = vadd.f32 %v1557, %v1576
    %1578 = vdwg.mxu0
    %v1581 = vrot.slane %v1336, 4
    %v1582 = vrot.slane %v1337, 4
    %v1584 = vsel %vm1271, %v1582, 0
    %1586 = vmatpush.msra.mxu0 %v1404
    %1587 = vmatpush.msra.mxu0 %v1402
    %1588 = vmatpush.msra.mxu0 %v1400
    %1589 = vmatpush.msra.mxu0 %v1398
    %1590 = vmatpush.msra.mxu0 %v1396
    %1591 = vmatpush.msra.mxu0 %v1394
    %1592 = vmatpush.msra.mxu0 %v1392
    %1593 = vmatpush.msra.mxu0 %v1390
    %1594 = vmatpush.msra.mxu0 %v1388
    %1595 = vmatpush.msra.mxu0 %v1386
    %1596 = vmatpush.msra.mxu0 %v1384
    %1597 = vmatpush.msra.mxu0 %v1382
    %1598 = vmatpush.msra.mxu0 %v1380
    %1599 = vmatpush.msra.mxu0 %v1378
    %1600 = vmatpush.msra.mxu0 %v1376
    %1601 = vmatpush.msra.mxu0 %v1374
    %1602 = vmatmul.f32.gmra.mxu0 %v1581
    %v1603 = vpop.f32.mrf.mxu0
    %v1604 = vadd.f32 0.0, %v1603
    %1605 = vdwg.mxu0
    %1606 = vmatpush.msra.mxu0 0.0
    %1607 = vmatpush.msra.mxu0 0.0
    %1608 = vmatpush.msra.mxu0 0.0
    %1609 = vmatpush.msra.mxu0 0.0
    %1610 = vmatpush.msra.mxu0 0.0
    %1611 = vmatpush.msra.mxu0 0.0
    %1612 = vmatpush.msra.mxu0 0.0
    %1613 = vmatpush.msra.mxu0 0.0
    %1614 = vmatpush.msra.mxu0 0.0
    %1615 = vmatpush.msra.mxu0 0.0
    %1616 = vmatpush.msra.mxu0 0.0
    %1617 = vmatpush.msra.mxu0 0.0
    %1618 = vmatpush.msra.mxu0 0.0
    %1619 = vmatpush.msra.mxu0 0.0
    %1620 = vmatpush.msra.mxu0 %v1408
    %1621 = vmatpush.msra.mxu0 %v1406
    %1622 = vmatmul.f32.gmra.mxu0 %v1584
    %v1623 = vpop.f32.mrf.mxu0
    %v1624 = vadd.f32 %v1604, %v1623
    %1625 = vdwg.mxu0
    %1626 = vmatpush.msra.mxu0 %v1405
    %1627 = vmatpush.msra.mxu0 %v1403
    %1628 = vmatpush.msra.mxu0 %v1401
    %1629 = vmatpush.msra.mxu0 %v1399
    %1630 = vmatpush.msra.mxu0 %v1397
    %1631 = vmatpush.msra.mxu0 %v1395
    %1632 = vmatpush.msra.mxu0 %v1393
    %1633 = vmatpush.msra.mxu0 %v1391
    %1634 = vmatpush.msra.mxu0 %v1389
    %1635 = vmatpush.msra.mxu0 %v1387
    %1636 = vmatpush.msra.mxu0 %v1385
    %1637 = vmatpush.msra.mxu0 %v1383
    %1638 = vmatpush.msra.mxu0 %v1381
    %1639 = vmatpush.msra.mxu0 %v1379
    %1640 = vmatpush.msra.mxu0 %v1377
    %1641 = vmatpush.msra.mxu0 %v1375
    %1642 = vmatmul.f32.gmra.mxu0 %v1581
    %v1643 = vpop.f32.mrf.mxu0
    %v1644 = vadd.f32 0.0, %v1643
    %1645 = vdwg.mxu0
    %1646 = vmatpush.msra.mxu0 0.0
    %1647 = vmatpush.msra.mxu0 0.0
    %1648 = vmatpush.msra.mxu0 0.0
    %1649 = vmatpush.msra.mxu0 0.0
    %1650 = vmatpush.msra.mxu0 0.0
    %1651 = vmatpush.msra.mxu0 0.0
    %1652 = vmatpush.msra.mxu0 0.0
    %1653 = vmatpush.msra.mxu0 0.0
    %1654 = vmatpush.msra.mxu0 0.0
    %1655 = vmatpush.msra.mxu0 0.0
    %1656 = vmatpush.msra.mxu0 0.0
    %1657 = vmatpush.msra.mxu0 0.0
    %1658 = vmatpush.msra.mxu0 0.0
    %1659 = vmatpush.msra.mxu0 0.0
    %1660 = vmatpush.msra.mxu0 %v1409
    %1661 = vmatpush.msra.mxu0 %v1407
    %1662 = vmatmul.f32.gmra.mxu0 %v1584
    %v1663 = vpop.f32.mrf.mxu0
    %v1664 = vadd.f32 %v1644, %v1663
    %1665 = vdwg.mxu0
    %v1666 = vsel %vm1271, %v1337, 0
    %1668 = vmatpush.msra.mxu0 %v1368
    %1669 = vmatpush.msra.mxu0 %v1366
    %1670 = vmatpush.msra.mxu0 %v1364
    %1671 = vmatpush.msra.mxu0 %v1362
    %1672 = vmatpush.msra.mxu0 %v1360
    %1673 = vmatpush.msra.mxu0 %v1358
    %1674 = vmatpush.msra.mxu0 %v1356
    %1675 = vmatpush.msra.mxu0 %v1354
    %1676 = vmatpush.msra.mxu0 %v1352
    %1677 = vmatpush.msra.mxu0 %v1350
    %1678 = vmatpush.msra.mxu0 %v1348
    %1679 = vmatpush.msra.mxu0 %v1346
    %1680 = vmatpush.msra.mxu0 %v1344
    %1681 = vmatpush.msra.mxu0 %v1342
    %1682 = vmatpush.msra.mxu0 %v1340
    %1683 = vmatpush.msra.mxu0 %v1338
    %1684 = vmatmul.f32.gmra.mxu0 %v1336
    %v1685 = vpop.f32.mrf.mxu0
    %v1686 = vadd.f32 %v1624, %v1685
    %1687 = vdwg.mxu0
    %1688 = vmatpush.msra.mxu0 0.0
    %1689 = vmatpush.msra.mxu0 0.0
    %1690 = vmatpush.msra.mxu0 0.0
    %1691 = vmatpush.msra.mxu0 0.0
    %1692 = vmatpush.msra.mxu0 0.0
    %1693 = vmatpush.msra.mxu0 0.0
    %1694 = vmatpush.msra.mxu0 0.0
    %1695 = vmatpush.msra.mxu0 0.0
    %1696 = vmatpush.msra.mxu0 0.0
    %1697 = vmatpush.msra.mxu0 0.0
    %1698 = vmatpush.msra.mxu0 0.0
    %1699 = vmatpush.msra.mxu0 0.0
    %1700 = vmatpush.msra.mxu0 0.0
    %1701 = vmatpush.msra.mxu0 0.0
    %1702 = vmatpush.msra.mxu0 %v1372
    %1703 = vmatpush.msra.mxu0 %v1370
    %1704 = vmatmul.f32.gmra.mxu0 %v1666
    %v1705 = vpop.f32.mrf.mxu0
    %v1706 = vadd.f32 %v1686, %v1705
    %1707 = vdwg.mxu0
    %1708 = vmatpush.msra.mxu0 %v1369
    %1709 = vmatpush.msra.mxu0 %v1367
    %1710 = vmatpush.msra.mxu0 %v1365
    %1711 = vmatpush.msra.mxu0 %v1363
    %1712 = vmatpush.msra.mxu0 %v1361
    %1713 = vmatpush.msra.mxu0 %v1359
    %1714 = vmatpush.msra.mxu0 %v1357
    %1715 = vmatpush.msra.mxu0 %v1355
    %1716 = vmatpush.msra.mxu0 %v1353
    %1717 = vmatpush.msra.mxu0 %v1351
    %1718 = vmatpush.msra.mxu0 %v1349
    %1719 = vmatpush.msra.mxu0 %v1347
    %1720 = vmatpush.msra.mxu0 %v1345
    %1721 = vmatpush.msra.mxu0 %v1343
    %1722 = vmatpush.msra.mxu0 %v1341
    %1723 = vmatpush.msra.mxu0 %v1339
    %1724 = vmatmul.f32.gmra.mxu0 %v1336
    %v1725 = vpop.f32.mrf.mxu0
    %v1726 = vadd.f32 %v1664, %v1725
    %1727 = vdwg.mxu0
    %1728 = vmatpush.msra.mxu0 0.0
    %1729 = vmatpush.msra.mxu0 0.0
    %1730 = vmatpush.msra.mxu0 0.0
    %1731 = vmatpush.msra.mxu0 0.0
    %1732 = vmatpush.msra.mxu0 0.0
    %1733 = vmatpush.msra.mxu0 0.0
    %1734 = vmatpush.msra.mxu0 0.0
    %1735 = vmatpush.msra.mxu0 0.0
    %1736 = vmatpush.msra.mxu0 0.0
    %1737 = vmatpush.msra.mxu0 0.0
    %1738 = vmatpush.msra.mxu0 0.0
    %1739 = vmatpush.msra.mxu0 0.0
    %1740 = vmatpush.msra.mxu0 0.0
    %1741 = vmatpush.msra.mxu0 0.0
    %1742 = vmatpush.msra.mxu0 %v1373
    %1743 = vmatpush.msra.mxu0 %v1371
    %1744 = vmatmul.f32.gmra.mxu0 %v1666
    %v1745 = vpop.f32.mrf.mxu0
    %v1746 = vadd.f32 %v1726, %v1745
    %1747 = vdwg.mxu0
    %v1748 = vld [vmem:[%s6] sm:$0xff]
    %v1749 = vld [vmem:[#allocation9] sm:$0xff]
    %v1750 = vld [vmem:[#allocation9 + $0x8] sm:$0xff]
    %v1751 = vld [vmem:[#allocation9 + $0x10] sm:$0xff]
    %v1752 = vld [vmem:[#allocation9 + $0x18] sm:$0xff]
    %v1753 = vld [vmem:[#allocation9 + $0x20] sm:$0xff]
    %v1754 = vld [vmem:[#allocation9 + $0x28] sm:$0xff]
    %v1755 = vld [vmem:[#allocation9 + $0x30] sm:$0xff]
    %v1756 = vld [vmem:[#allocation9 + $0x38] sm:$0xff]
    %v1757 = vld [vmem:[#allocation9 + $0x40] sm:$0xff]
    %v1758 = vld [vmem:[#allocation9 + $0x48] sm:$0xff]
    %v1759 = vld [vmem:[#allocation9 + $0x50] sm:$0xff]
    %v1760 = vld [vmem:[#allocation9 + $0x58] sm:$0xff]
    %v1761 = vld [vmem:[#allocation9 + $0x60] sm:$0xff]
    %v1762 = vld [vmem:[#allocation9 + $0x68] sm:$0xff]
    %v1763 = vld [vmem:[#allocation9 + $0x70] sm:$0xff]
    %v1764 = vld [vmem:[#allocation9 + $0x78] sm:$0xff]
    %v1765 = vld [vmem:[#allocation9 + $0x80] sm:$0xff]
    %v1766 = vld [vmem:[#allocation9 + $0x88] sm:$0xff]
    %v1767 = vld [vmem:[#allocation9 + $0x90] sm:$0xff]
    %v1768 = vld [vmem:[#allocation9 + $0x98] sm:$0xff]
    %v1769 = vld [vmem:[#allocation9 + $0xa0] sm:$0xff]
    %v1770 = vld [vmem:[#allocation9 + $0xa8] sm:$0xff]
    %v1771 = vld [vmem:[#allocation9 + $0xb0] sm:$0xff]
    %v1772 = vld [vmem:[#allocation9 + $0xb8] sm:$0xff]
    %v1773 = vld [vmem:[#allocation9 + $0xc0] sm:$0xff]
    %v1774 = vld [vmem:[#allocation9 + $0xc8] sm:$0xff]
    %v1775 = vld [vmem:[#allocation9 + $0xd0] sm:$0xff]
    %v1776 = vld [vmem:[#allocation9 + $0xd8] sm:$0xff]
    %v1777 = vld [vmem:[#allocation9 + $0xe0] sm:$0xff]
    %v1778 = vld [vmem:[#allocation9 + $0xe8] sm:$0xff]
    %v1779 = vld [vmem:[#allocation9 + $0xf0] sm:$0xff]
    %v1780 = vld [vmem:[#allocation9 + $0xf8] sm:$0xff]
    %1781 = vmatpush.msra.mxu0 %v1764
    %1782 = vmatpush.msra.mxu0 %v1763
    %1783 = vmatpush.msra.mxu0 %v1762
    %1784 = vmatpush.msra.mxu0 %v1761
    %1785 = vmatpush.msra.mxu0 %v1760
    %1786 = vmatpush.msra.mxu0 %v1759
    %1787 = vmatpush.msra.mxu0 %v1758
    %1788 = vmatpush.msra.mxu0 %v1757
    %1789 = vmatpush.msra.mxu0 %v1756
    %1790 = vmatpush.msra.mxu0 %v1755
    %1791 = vmatpush.msra.mxu0 %v1754
    %1792 = vmatpush.msra.mxu0 %v1753
    %1793 = vmatpush.msra.mxu0 %v1752
    %1794 = vmatpush.msra.mxu0 %v1751
    %1795 = vmatpush.msra.mxu0 %v1750
    %1796 = vmatpush.msra.mxu0 %v1749
    %1797 = vmatmul.f32.gmra.mxu0 %v621
    %v1798 = vpop.f32.mrf.mxu0
    %v1799 = vadd.f32 0.0, %v1798
    %1800 = vdwg.mxu0
    %1801 = vmatpush.msra.mxu0 %v1780
    %1802 = vmatpush.msra.mxu0 %v1779
    %1803 = vmatpush.msra.mxu0 %v1778
    %1804 = vmatpush.msra.mxu0 %v1777
    %1805 = vmatpush.msra.mxu0 %v1776
    %1806 = vmatpush.msra.mxu0 %v1775
    %1807 = vmatpush.msra.mxu0 %v1774
    %1808 = vmatpush.msra.mxu0 %v1773
    %1809 = vmatpush.msra.mxu0 %v1772
    %1810 = vmatpush.msra.mxu0 %v1771
    %1811 = vmatpush.msra.mxu0 %v1770
    %1812 = vmatpush.msra.mxu0 %v1769
    %1813 = vmatpush.msra.mxu0 %v1768
    %1814 = vmatpush.msra.mxu0 %v1767
    %1815 = vmatpush.msra.mxu0 %v1766
    %1816 = vmatpush.msra.mxu0 %v1765
    %1817 = vmatmul.f32.gmra.mxu0 %v622
    %v1818 = vpop.f32.mrf.mxu0
    %v1819 = vadd.f32 %v1799, %v1818
    %1820 = vdwg.mxu0
    %s1821 = scalar_lea.vmem [#allocation9], 256
    %v1822 = vld [vmem:[%s1821] sm:$0xff]
    %v1823 = vld [vmem:[%s1821 + $0x8] sm:$0xff]
    %v1824 = vld [vmem:[%s1821 + $0x10] sm:$0xff]
    %v1825 = vld [vmem:[%s1821 + $0x18] sm:$0xff]
    %v1826 = vld [vmem:[%s1821 + $0x20] sm:$0xff]
    %v1827 = vld [vmem:[%s1821 + $0x28] sm:$0xff]
    %v1828 = vld [vmem:[%s1821 + $0x30] sm:$0xff]
    %v1829 = vld [vmem:[%s1821 + $0x38] sm:$0xff]
    %v1830 = vld [vmem:[%s1821 + $0x40] sm:$0xff]
    %v1831 = vld [vmem:[%s1821 + $0x48] sm:$0xff]
    %v1832 = vld [vmem:[%s1821 + $0x50] sm:$0xff]
    %v1833 = vld [vmem:[%s1821 + $0x58] sm:$0xff]
    %v1834 = vld [vmem:[%s1821 + $0x60] sm:$0xff]
    %v1835 = vld [vmem:[%s1821 + $0x68] sm:$0xff]
    %v1836 = vld [vmem:[%s1821 + $0x70] sm:$0xff]
    %v1837 = vld [vmem:[%s1821 + $0x78] sm:$0xff]
    %v1838 = vld [vmem:[%s1821 + $0x80] sm:$0xff]
    %v1839 = vld [vmem:[%s1821 + $0x88] sm:$0xff]
    %v1840 = vld [vmem:[%s1821 + $0x90] sm:$0xff]
    %v1841 = vld [vmem:[%s1821 + $0x98] sm:$0xff]
    %v1842 = vld [vmem:[%s1821 + $0xa0] sm:$0xff]
    %v1843 = vld [vmem:[%s1821 + $0xa8] sm:$0xff]
    %v1844 = vld [vmem:[%s1821 + $0xb0] sm:$0xff]
    %v1845 = vld [vmem:[%s1821 + $0xb8] sm:$0xff]
    %v1846 = vld [vmem:[%s1821 + $0xc0] sm:$0xff]
    %v1847 = vld [vmem:[%s1821 + $0xc8] sm:$0xff]
    %v1848 = vld [vmem:[%s1821 + $0xd0] sm:$0xff]
    %v1849 = vld [vmem:[%s1821 + $0xd8] sm:$0xff]
    %v1850 = vld [vmem:[%s1821 + $0xe0] sm:$0xff]
    %v1851 = vld [vmem:[%s1821 + $0xe8] sm:$0xff]
    %v1852 = vld [vmem:[%s1821 + $0xf0] sm:$0xff]
    %v1853 = vld [vmem:[%s1821 + $0xf8] sm:$0xff]
    %1854 = vmatpush.msra.mxu0 %v1837
    %1855 = vmatpush.msra.mxu0 %v1836
    %1856 = vmatpush.msra.mxu0 %v1835
    %1857 = vmatpush.msra.mxu0 %v1834
    %1858 = vmatpush.msra.mxu0 %v1833
    %1859 = vmatpush.msra.mxu0 %v1832
    %1860 = vmatpush.msra.mxu0 %v1831
    %1861 = vmatpush.msra.mxu0 %v1830
    %1862 = vmatpush.msra.mxu0 %v1829
    %1863 = vmatpush.msra.mxu0 %v1828
    %1864 = vmatpush.msra.mxu0 %v1827
    %1865 = vmatpush.msra.mxu0 %v1826
    %1866 = vmatpush.msra.mxu0 %v1825
    %1867 = vmatpush.msra.mxu0 %v1824
    %1868 = vmatpush.msra.mxu0 %v1823
    %1869 = vmatpush.msra.mxu0 %v1822
    %1870 = vmatmul.f32.gmra.mxu0 %v621
    %v1871 = vpop.f32.mrf.mxu0
    %v1872 = vadd.f32 0.0, %v1871
    %1873 = vdwg.mxu0
    %1874 = vmatpush.msra.mxu0 %v1853
    %1875 = vmatpush.msra.mxu0 %v1852
    %1876 = vmatpush.msra.mxu0 %v1851
    %1877 = vmatpush.msra.mxu0 %v1850
    %1878 = vmatpush.msra.mxu0 %v1849
    %1879 = vmatpush.msra.mxu0 %v1848
    %1880 = vmatpush.msra.mxu0 %v1847
    %1881 = vmatpush.msra.mxu0 %v1846
    %1882 = vmatpush.msra.mxu0 %v1845
    %1883 = vmatpush.msra.mxu0 %v1844
    %1884 = vmatpush.msra.mxu0 %v1843
    %1885 = vmatpush.msra.mxu0 %v1842
    %1886 = vmatpush.msra.mxu0 %v1841
    %1887 = vmatpush.msra.mxu0 %v1840
    %1888 = vmatpush.msra.mxu0 %v1839
    %1889 = vmatpush.msra.mxu0 %v1838
    %1890 = vmatmul.f32.gmra.mxu0 %v622
    %v1891 = vpop.f32.mrf.mxu0
    %v1892 = vadd.f32 %v1872, %v1891
    %1893 = vdwg.mxu0
    %s1894 = scalar_lea.vmem [#allocation9], 512
    %v1895 = vld [vmem:[%s1894] sm:$0xff]
    %v1896 = vld [vmem:[%s1894 + $0x8] sm:$0xff]
    %v1897 = vld [vmem:[%s1894 + $0x10] sm:$0xff]
    %v1898 = vld [vmem:[%s1894 + $0x18] sm:$0xff]
    %v1899 = vld [vmem:[%s1894 + $0x20] sm:$0xff]
    %v1900 = vld [vmem:[%s1894 + $0x28] sm:$0xff]
    %v1901 = vld [vmem:[%s1894 + $0x30] sm:$0xff]
    %v1902 = vld [vmem:[%s1894 + $0x38] sm:$0xff]
    %v1903 = vld [vmem:[%s1894 + $0x40] sm:$0xff]
    %v1904 = vld [vmem:[%s1894 + $0x48] sm:$0xff]
    %v1905 = vld [vmem:[%s1894 + $0x50] sm:$0xff]
    %v1906 = vld [vmem:[%s1894 + $0x58] sm:$0xff]
    %v1907 = vld [vmem:[%s1894 + $0x60] sm:$0xff]
    %v1908 = vld [vmem:[%s1894 + $0x68] sm:$0xff]
    %v1909 = vld [vmem:[%s1894 + $0x70] sm:$0xff]
    %v1910 = vld [vmem:[%s1894 + $0x78] sm:$0xff]
    %v1911 = vld [vmem:[%s1894 + $0x80] sm:$0xff]
    %v1912 = vld [vmem:[%s1894 + $0x88] sm:$0xff]
    %v1913 = vld [vmem:[%s1894 + $0x90] sm:$0xff]
    %v1914 = vld [vmem:[%s1894 + $0x98] sm:$0xff]
    %v1915 = vld [vmem:[%s1894 + $0xa0] sm:$0xff]
    %v1916 = vld [vmem:[%s1894 + $0xa8] sm:$0xff]
    %v1917 = vld [vmem:[%s1894 + $0xb0] sm:$0xff]
    %v1918 = vld [vmem:[%s1894 + $0xb8] sm:$0xff]
    %v1919 = vld [vmem:[%s1894 + $0xc0] sm:$0xff]
    %v1920 = vld [vmem:[%s1894 + $0xc8] sm:$0xff]
    %v1921 = vld [vmem:[%s1894 + $0xd0] sm:$0xff]
    %v1922 = vld [vmem:[%s1894 + $0xd8] sm:$0xff]
    %v1923 = vld [vmem:[%s1894 + $0xe0] sm:$0xff]
    %v1924 = vld [vmem:[%s1894 + $0xe8] sm:$0xff]
    %v1925 = vld [vmem:[%s1894 + $0xf0] sm:$0xff]
    %v1926 = vld [vmem:[%s1894 + $0xf8] sm:$0xff]
    %1927 = vmatpush.msra.mxu0 %v1910
    %1928 = vmatpush.msra.mxu0 %v1909
    %1929 = vmatpush.msra.mxu0 %v1908
    %1930 = vmatpush.msra.mxu0 %v1907
    %1931 = vmatpush.msra.mxu0 %v1906
    %1932 = vmatpush.msra.mxu0 %v1905
    %1933 = vmatpush.msra.mxu0 %v1904
    %1934 = vmatpush.msra.mxu0 %v1903
    %1935 = vmatpush.msra.mxu0 %v1902
    %1936 = vmatpush.msra.mxu0 %v1901
    %1937 = vmatpush.msra.mxu0 %v1900
    %1938 = vmatpush.msra.mxu0 %v1899
    %1939 = vmatpush.msra.mxu0 %v1898
    %1940 = vmatpush.msra.mxu0 %v1897
    %1941 = vmatpush.msra.mxu0 %v1896
    %1942 = vmatpush.msra.mxu0 %v1895
    %1943 = vmatmul.f32.gmra.mxu0 %v621
    %v1944 = vpop.f32.mrf.mxu0
    %v1945 = vadd.f32 0.0, %v1944
    %1946 = vdwg.mxu0
    %1947 = vmatpush.msra.mxu0 %v1926
    %1948 = vmatpush.msra.mxu0 %v1925
    %1949 = vmatpush.msra.mxu0 %v1924
    %1950 = vmatpush.msra.mxu0 %v1923
    %1951 = vmatpush.msra.mxu0 %v1922
    %1952 = vmatpush.msra.mxu0 %v1921
    %1953 = vmatpush.msra.mxu0 %v1920
    %1954 = vmatpush.msra.mxu0 %v1919
    %1955 = vmatpush.msra.mxu0 %v1918
    %1956 = vmatpush.msra.mxu0 %v1917
    %1957 = vmatpush.msra.mxu0 %v1916
    %1958 = vmatpush.msra.mxu0 %v1915
    %1959 = vmatpush.msra.mxu0 %v1914
    %1960 = vmatpush.msra.mxu0 %v1913
    %1961 = vmatpush.msra.mxu0 %v1912
    %1962 = vmatpush.msra.mxu0 %v1911
    %1963 = vmatmul.f32.gmra.mxu0 %v622
    %v1964 = vpop.f32.mrf.mxu0
    %v1965 = vadd.f32 %v1945, %v1964
    %1966 = vdwg.mxu0
    %s1967 = scalar_lea.vmem [#allocation9], 768
    %v1968 = vld [vmem:[%s1967] sm:$0xff]
    %v1969 = vld [vmem:[%s1967 + $0x8] sm:$0xff]
    %v1970 = vld [vmem:[%s1967 + $0x10] sm:$0xff]
    %v1971 = vld [vmem:[%s1967 + $0x18] sm:$0xff]
    %v1972 = vld [vmem:[%s1967 + $0x20] sm:$0xff]
    %v1973 = vld [vmem:[%s1967 + $0x28] sm:$0xff]
    %v1974 = vld [vmem:[%s1967 + $0x30] sm:$0xff]
    %v1975 = vld [vmem:[%s1967 + $0x38] sm:$0xff]
    %v1976 = vld [vmem:[%s1967 + $0x40] sm:$0xff]
    %v1977 = vld [vmem:[%s1967 + $0x48] sm:$0xff]
    %v1978 = vld [vmem:[%s1967 + $0x50] sm:$0xff]
    %v1979 = vld [vmem:[%s1967 + $0x58] sm:$0xff]
    %v1980 = vld [vmem:[%s1967 + $0x60] sm:$0xff]
    %v1981 = vld [vmem:[%s1967 + $0x68] sm:$0xff]
    %v1982 = vld [vmem:[%s1967 + $0x70] sm:$0xff]
    %v1983 = vld [vmem:[%s1967 + $0x78] sm:$0xff]
    %v1984 = vld [vmem:[%s1967 + $0x80] sm:$0xff]
    %v1985 = vld [vmem:[%s1967 + $0x88] sm:$0xff]
    %v1986 = vld [vmem:[%s1967 + $0x90] sm:$0xff]
    %v1987 = vld [vmem:[%s1967 + $0x98] sm:$0xff]
    %v1988 = vld [vmem:[%s1967 + $0xa0] sm:$0xff]
    %v1989 = vld [vmem:[%s1967 + $0xa8] sm:$0xff]
    %v1990 = vld [vmem:[%s1967 + $0xb0] sm:$0xff]
    %v1991 = vld [vmem:[%s1967 + $0xb8] sm:$0xff]
    %v1992 = vld [vmem:[%s1967 + $0xc0] sm:$0xff]
    %v1993 = vld [vmem:[%s1967 + $0xc8] sm:$0xff]
    %v1994 = vld [vmem:[%s1967 + $0xd0] sm:$0xff]
    %v1995 = vld [vmem:[%s1967 + $0xd8] sm:$0xff]
    %v1996 = vld [vmem:[%s1967 + $0xe0] sm:$0xff]
    %v1997 = vld [vmem:[%s1967 + $0xe8] sm:$0xff]
    %v1998 = vld [vmem:[%s1967 + $0xf0] sm:$0xff]
    %v1999 = vld [vmem:[%s1967 + $0xf8] sm:$0xff]
    %2000 = vmatpush.msra.mxu0 %v1983
    %2001 = vmatpush.msra.mxu0 %v1982
    %2002 = vmatpush.msra.mxu0 %v1981
    %2003 = vmatpush.msra.mxu0 %v1980
    %2004 = vmatpush.msra.mxu0 %v1979
    %2005 = vmatpush.msra.mxu0 %v1978
    %2006 = vmatpush.msra.mxu0 %v1977
    %2007 = vmatpush.msra.mxu0 %v1976
    %2008 = vmatpush.msra.mxu0 %v1975
    %2009 = vmatpush.msra.mxu0 %v1974
    %2010 = vmatpush.msra.mxu0 %v1973
    %2011 = vmatpush.msra.mxu0 %v1972
    %2012 = vmatpush.msra.mxu0 %v1971
    %2013 = vmatpush.msra.mxu0 %v1970
    %2014 = vmatpush.msra.mxu0 %v1969
    %2015 = vmatpush.msra.mxu0 %v1968
    %2016 = vmatmul.f32.gmra.mxu0 %v621
    %v2017 = vpop.f32.mrf.mxu0
    %v2018 = vadd.f32 0.0, %v2017
    %2019 = vdwg.mxu0
    %2020 = vmatpush.msra.mxu0 %v1999
    %2021 = vmatpush.msra.mxu0 %v1998
    %2022 = vmatpush.msra.mxu0 %v1997
    %2023 = vmatpush.msra.mxu0 %v1996
    %2024 = vmatpush.msra.mxu0 %v1995
    %2025 = vmatpush.msra.mxu0 %v1994
    %2026 = vmatpush.msra.mxu0 %v1993
    %2027 = vmatpush.msra.mxu0 %v1992
    %2028 = vmatpush.msra.mxu0 %v1991
    %2029 = vmatpush.msra.mxu0 %v1990
    %2030 = vmatpush.msra.mxu0 %v1989
    %2031 = vmatpush.msra.mxu0 %v1988
    %2032 = vmatpush.msra.mxu0 %v1987
    %2033 = vmatpush.msra.mxu0 %v1986
    %2034 = vmatpush.msra.mxu0 %v1985
    %2035 = vmatpush.msra.mxu0 %v1984
    %2036 = vmatmul.f32.gmra.mxu0 %v622
    %v2037 = vpop.f32.mrf.mxu0
    %v2038 = vadd.f32 %v2018, %v2037
    %2039 = vdwg.mxu0
    %v2041 = vrot.slane %v1892, 7
    %v2044 = vrot.slane %v1965, 6
    %v2047 = vrot.slane %v2038, 5
    %vm2049 = vcmask 1040384
    %v2050 = vsel %vm2049, %v1819, %v2041
    %vm2051 = vcmask 1041408
    %v2052 = vsel %vm2051, %v2050, %v2044
    %vm2053 = vcmask 1042432
    %v2054 = vsel %vm2053, %v2052, %v2047
    %v2055 = vld [vmem:[#allocation10] sm:$0xff]
    %v2056 = vld [vmem:[#allocation10 + $0x8] sm:$0xff]
    %v2057 = vld [vmem:[#allocation10 + $0x10] sm:$0xff]
    %v2058 = vld [vmem:[#allocation10 + $0x18] sm:$0xff]
    %v2059 = vld [vmem:[#allocation10 + $0x20] sm:$0xff]
    %v2060 = vld [vmem:[#allocation10 + $0x28] sm:$0xff]
    %v2061 = vld [vmem:[#allocation10 + $0x30] sm:$0xff]
    %v2062 = vld [vmem:[#allocation10 + $0x38] sm:$0xff]
    %v2063 = vld [vmem:[#allocation10 + $0x40] sm:$0xff]
    %v2064 = vld [vmem:[#allocation10 + $0x48] sm:$0xff]
    %v2065 = vld [vmem:[#allocation10 + $0x50] sm:$0xff]
    %v2066 = vld [vmem:[#allocation10 + $0x58] sm:$0xff]
    %v2067 = vld [vmem:[#allocation10 + $0x60] sm:$0xff]
    %v2068 = vld [vmem:[#allocation10 + $0x68] sm:$0xff]
    %v2069 = vld [vmem:[#allocation10 + $0x70] sm:$0xff]
    %v2070 = vld [vmem:[#allocation10 + $0x78] sm:$0xff]
    %v2071 = vld [vmem:[#allocation10 + $0x80] sm:$0xff]
    %v2072 = vld [vmem:[#allocation10 + $0x88] sm:$0xff]
    %v2073 = vld [vmem:[#allocation10 + $0x90] sm:$0xff]
    %v2074 = vld [vmem:[#allocation10 + $0x98] sm:$0xff]
    %v2075 = vld [vmem:[#allocation10 + $0xa0] sm:$0xff]
    %v2076 = vld [vmem:[#allocation10 + $0xa8] sm:$0xff]
    %v2077 = vld [vmem:[#allocation10 + $0xb0] sm:$0xff]
    %v2078 = vld [vmem:[#allocation10 + $0xb8] sm:$0xff]
    %v2079 = vld [vmem:[#allocation10 + $0xc0] sm:$0xff]
    %v2080 = vld [vmem:[#allocation10 + $0xc8] sm:$0xff]
    %v2081 = vld [vmem:[#allocation10 + $0xd0] sm:$0xff]
    %v2082 = vld [vmem:[#allocation10 + $0xd8] sm:$0xff]
    %v2083 = vld [vmem:[#allocation10 + $0xe0] sm:$0xff]
    %v2084 = vld [vmem:[#allocation10 + $0xe8] sm:$0xff]
    %v2085 = vld [vmem:[#allocation10 + $0xf0] sm:$0xff]
    %v2086 = vld [vmem:[#allocation10 + $0xf8] sm:$0xff]
    %2087 = vmatpush.msra.mxu0 %v2070
    %2088 = vmatpush.msra.mxu0 %v2069
    %2089 = vmatpush.msra.mxu0 %v2068
    %2090 = vmatpush.msra.mxu0 %v2067
    %2091 = vmatpush.msra.mxu0 %v2066
    %2092 = vmatpush.msra.mxu0 %v2065
    %2093 = vmatpush.msra.mxu0 %v2064
    %2094 = vmatpush.msra.mxu0 %v2063
    %2095 = vmatpush.msra.mxu0 %v2062
    %2096 = vmatpush.msra.mxu0 %v2061
    %2097 = vmatpush.msra.mxu0 %v2060
    %2098 = vmatpush.msra.mxu0 %v2059
    %2099 = vmatpush.msra.mxu0 %v2058
    %2100 = vmatpush.msra.mxu0 %v2057
    %2101 = vmatpush.msra.mxu0 %v2056
    %2102 = vmatpush.msra.mxu0 %v2055
    %2103 = vmatmul.f32.gmra.mxu0 %v621
    %v2104 = vpop.f32.mrf.mxu0
    %v2105 = vadd.f32 0.0, %v2104
    %2106 = vdwg.mxu0
    %2107 = vmatpush.msra.mxu0 %v2086
    %2108 = vmatpush.msra.mxu0 %v2085
    %2109 = vmatpush.msra.mxu0 %v2084
    %2110 = vmatpush.msra.mxu0 %v2083
    %2111 = vmatpush.msra.mxu0 %v2082
    %2112 = vmatpush.msra.mxu0 %v2081
    %2113 = vmatpush.msra.mxu0 %v2080
    %2114 = vmatpush.msra.mxu0 %v2079
    %2115 = vmatpush.msra.mxu0 %v2078
    %2116 = vmatpush.msra.mxu0 %v2077
    %2117 = vmatpush.msra.mxu0 %v2076
    %2118 = vmatpush.msra.mxu0 %v2075
    %2119 = vmatpush.msra.mxu0 %v2074
    %2120 = vmatpush.msra.mxu0 %v2073
    %2121 = vmatpush.msra.mxu0 %v2072
    %2122 = vmatpush.msra.mxu0 %v2071
    %2123 = vmatmul.f32.gmra.mxu0 %v622
    %v2124 = vpop.f32.mrf.mxu0
    %v2125 = vadd.f32 %v2105, %v2124
    %2126 = vdwg.mxu0
    %s2127 = scalar_lea.vmem [#allocation10], 256
    %v2128 = vld [vmem:[%s2127] sm:$0xff]
    %v2129 = vld [vmem:[%s2127 + $0x8] sm:$0xff]
    %v2130 = vld [vmem:[%s2127 + $0x10] sm:$0xff]
    %v2131 = vld [vmem:[%s2127 + $0x18] sm:$0xff]
    %v2132 = vld [vmem:[%s2127 + $0x20] sm:$0xff]
    %v2133 = vld [vmem:[%s2127 + $0x28] sm:$0xff]
    %v2134 = vld [vmem:[%s2127 + $0x30] sm:$0xff]
    %v2135 = vld [vmem:[%s2127 + $0x38] sm:$0xff]
    %v2136 = vld [vmem:[%s2127 + $0x40] sm:$0xff]
    %v2137 = vld [vmem:[%s2127 + $0x48] sm:$0xff]
    %v2138 = vld [vmem:[%s2127 + $0x50] sm:$0xff]
    %v2139 = vld [vmem:[%s2127 + $0x58] sm:$0xff]
    %v2140 = vld [vmem:[%s2127 + $0x60] sm:$0xff]
    %v2141 = vld [vmem:[%s2127 + $0x68] sm:$0xff]
    %v2142 = vld [vmem:[%s2127 + $0x70] sm:$0xff]
    %v2143 = vld [vmem:[%s2127 + $0x78] sm:$0xff]
    %v2144 = vld [vmem:[%s2127 + $0x80] sm:$0xff]
    %v2145 = vld [vmem:[%s2127 + $0x88] sm:$0xff]
    %v2146 = vld [vmem:[%s2127 + $0x90] sm:$0xff]
    %v2147 = vld [vmem:[%s2127 + $0x98] sm:$0xff]
    %v2148 = vld [vmem:[%s2127 + $0xa0] sm:$0xff]
    %v2149 = vld [vmem:[%s2127 + $0xa8] sm:$0xff]
    %v2150 = vld [vmem:[%s2127 + $0xb0] sm:$0xff]
    %v2151 = vld [vmem:[%s2127 + $0xb8] sm:$0xff]
    %v2152 = vld [vmem:[%s2127 + $0xc0] sm:$0xff]
    %v2153 = vld [vmem:[%s2127 + $0xc8] sm:$0xff]
    %v2154 = vld [vmem:[%s2127 + $0xd0] sm:$0xff]
    %v2155 = vld [vmem:[%s2127 + $0xd8] sm:$0xff]
    %v2156 = vld [vmem:[%s2127 + $0xe0] sm:$0xff]
    %v2157 = vld [vmem:[%s2127 + $0xe8] sm:$0xff]
    %v2158 = vld [vmem:[%s2127 + $0xf0] sm:$0xff]
    %v2159 = vld [vmem:[%s2127 + $0xf8] sm:$0xff]
    %2160 = vmatpush.msra.mxu0 %v2143
    %2161 = vmatpush.msra.mxu0 %v2142
    %2162 = vmatpush.msra.mxu0 %v2141
    %2163 = vmatpush.msra.mxu0 %v2140
    %2164 = vmatpush.msra.mxu0 %v2139
    %2165 = vmatpush.msra.mxu0 %v2138
    %2166 = vmatpush.msra.mxu0 %v2137
    %2167 = vmatpush.msra.mxu0 %v2136
    %2168 = vmatpush.msra.mxu0 %v2135
    %2169 = vmatpush.msra.mxu0 %v2134
    %2170 = vmatpush.msra.mxu0 %v2133
    %2171 = vmatpush.msra.mxu0 %v2132
    %2172 = vmatpush.msra.mxu0 %v2131
    %2173 = vmatpush.msra.mxu0 %v2130
    %2174 = vmatpush.msra.mxu0 %v2129
    %2175 = vmatpush.msra.mxu0 %v2128
    %2176 = vmatmul.f32.gmra.mxu0 %v621
    %v2177 = vpop.f32.mrf.mxu0
    %v2178 = vadd.f32 0.0, %v2177
    %2179 = vdwg.mxu0
    %2180 = vmatpush.msra.mxu0 %v2159
    %2181 = vmatpush.msra.mxu0 %v2158
    %2182 = vmatpush.msra.mxu0 %v2157
    %2183 = vmatpush.msra.mxu0 %v2156
    %2184 = vmatpush.msra.mxu0 %v2155
    %2185 = vmatpush.msra.mxu0 %v2154
    %2186 = vmatpush.msra.mxu0 %v2153
    %2187 = vmatpush.msra.mxu0 %v2152
    %2188 = vmatpush.msra.mxu0 %v2151
    %2189 = vmatpush.msra.mxu0 %v2150
    %2190 = vmatpush.msra.mxu0 %v2149
    %2191 = vmatpush.msra.mxu0 %v2148
    %2192 = vmatpush.msra.mxu0 %v2147
    %2193 = vmatpush.msra.mxu0 %v2146
    %2194 = vmatpush.msra.mxu0 %v2145
    %2195 = vmatpush.msra.mxu0 %v2144
    %2196 = vmatmul.f32.gmra.mxu0 %v622
    %v2197 = vpop.f32.mrf.mxu0
    %v2198 = vadd.f32 %v2178, %v2197
    %2199 = vdwg.mxu0
    %s2200 = scalar_lea.vmem [#allocation10], 512
    %v2201 = vld [vmem:[%s2200] sm:$0xff]
    %v2202 = vld [vmem:[%s2200 + $0x8] sm:$0xff]
    %v2203 = vld [vmem:[%s2200 + $0x10] sm:$0xff]
    %v2204 = vld [vmem:[%s2200 + $0x18] sm:$0xff]
    %v2205 = vld [vmem:[%s2200 + $0x20] sm:$0xff]
    %v2206 = vld [vmem:[%s2200 + $0x28] sm:$0xff]
    %v2207 = vld [vmem:[%s2200 + $0x30] sm:$0xff]
    %v2208 = vld [vmem:[%s2200 + $0x38] sm:$0xff]
    %v2209 = vld [vmem:[%s2200 + $0x40] sm:$0xff]
    %v2210 = vld [vmem:[%s2200 + $0x48] sm:$0xff]
    %v2211 = vld [vmem:[%s2200 + $0x50] sm:$0xff]
    %v2212 = vld [vmem:[%s2200 + $0x58] sm:$0xff]
    %v2213 = vld [vmem:[%s2200 + $0x60] sm:$0xff]
    %v2214 = vld [vmem:[%s2200 + $0x68] sm:$0xff]
    %v2215 = vld [vmem:[%s2200 + $0x70] sm:$0xff]
    %v2216 = vld [vmem:[%s2200 + $0x78] sm:$0xff]
    %v2217 = vld [vmem:[%s2200 + $0x80] sm:$0xff]
    %v2218 = vld [vmem:[%s2200 + $0x88] sm:$0xff]
    %v2219 = vld [vmem:[%s2200 + $0x90] sm:$0xff]
    %v2220 = vld [vmem:[%s2200 + $0x98] sm:$0xff]
    %v2221 = vld [vmem:[%s2200 + $0xa0] sm:$0xff]
    %v2222 = vld [vmem:[%s2200 + $0xa8] sm:$0xff]
    %v2223 = vld [vmem:[%s2200 + $0xb0] sm:$0xff]
    %v2224 = vld [vmem:[%s2200 + $0xb8] sm:$0xff]
    %v2225 = vld [vmem:[%s2200 + $0xc0] sm:$0xff]
    %v2226 = vld [vmem:[%s2200 + $0xc8] sm:$0xff]
    %v2227 = vld [vmem:[%s2200 + $0xd0] sm:$0xff]
    %v2228 = vld [vmem:[%s2200 + $0xd8] sm:$0xff]
    %v2229 = vld [vmem:[%s2200 + $0xe0] sm:$0xff]
    %v2230 = vld [vmem:[%s2200 + $0xe8] sm:$0xff]
    %v2231 = vld [vmem:[%s2200 + $0xf0] sm:$0xff]
    %v2232 = vld [vmem:[%s2200 + $0xf8] sm:$0xff]
    %2233 = vmatpush.msra.mxu0 %v2216
    %2234 = vmatpush.msra.mxu0 %v2215
    %2235 = vmatpush.msra.mxu0 %v2214
    %2236 = vmatpush.msra.mxu0 %v2213
    %2237 = vmatpush.msra.mxu0 %v2212
    %2238 = vmatpush.msra.mxu0 %v2211
    %2239 = vmatpush.msra.mxu0 %v2210
    %2240 = vmatpush.msra.mxu0 %v2209
    %2241 = vmatpush.msra.mxu0 %v2208
    %2242 = vmatpush.msra.mxu0 %v2207
    %2243 = vmatpush.msra.mxu0 %v2206
    %2244 = vmatpush.msra.mxu0 %v2205
    %2245 = vmatpush.msra.mxu0 %v2204
    %2246 = vmatpush.msra.mxu0 %v2203
    %2247 = vmatpush.msra.mxu0 %v2202
    %2248 = vmatpush.msra.mxu0 %v2201
    %2249 = vmatmul.f32.gmra.mxu0 %v621
    %v2250 = vpop.f32.mrf.mxu0
    %v2251 = vadd.f32 0.0, %v2250
    %2252 = vdwg.mxu0
    %2253 = vmatpush.msra.mxu0 %v2232
    %2254 = vmatpush.msra.mxu0 %v2231
    %2255 = vmatpush.msra.mxu0 %v2230
    %2256 = vmatpush.msra.mxu0 %v2229
    %2257 = vmatpush.msra.mxu0 %v2228
    %2258 = vmatpush.msra.mxu0 %v2227
    %2259 = vmatpush.msra.mxu0 %v2226
    %2260 = vmatpush.msra.mxu0 %v2225
    %2261 = vmatpush.msra.mxu0 %v2224
    %2262 = vmatpush.msra.mxu0 %v2223
    %2263 = vmatpush.msra.mxu0 %v2222
    %2264 = vmatpush.msra.mxu0 %v2221
    %2265 = vmatpush.msra.mxu0 %v2220
    %2266 = vmatpush.msra.mxu0 %v2219
    %2267 = vmatpush.msra.mxu0 %v2218
    %2268 = vmatpush.msra.mxu0 %v2217
    %2269 = vmatmul.f32.gmra.mxu0 %v622
    %v2270 = vpop.f32.mrf.mxu0
    %v2271 = vadd.f32 %v2251, %v2270
    %2272 = vdwg.mxu0
    %s2273 = scalar_lea.vmem [#allocation10], 768
    %v2274 = vld [vmem:[%s2273] sm:$0xff]
    %v2275 = vld [vmem:[%s2273 + $0x8] sm:$0xff]
    %v2276 = vld [vmem:[%s2273 + $0x10] sm:$0xff]
    %v2277 = vld [vmem:[%s2273 + $0x18] sm:$0xff]
    %v2278 = vld [vmem:[%s2273 + $0x20] sm:$0xff]
    %v2279 = vld [vmem:[%s2273 + $0x28] sm:$0xff]
    %v2280 = vld [vmem:[%s2273 + $0x30] sm:$0xff]
    %v2281 = vld [vmem:[%s2273 + $0x38] sm:$0xff]
    %v2282 = vld [vmem:[%s2273 + $0x40] sm:$0xff]
    %v2283 = vld [vmem:[%s2273 + $0x48] sm:$0xff]
    %v2284 = vld [vmem:[%s2273 + $0x50] sm:$0xff]
    %v2285 = vld [vmem:[%s2273 + $0x58] sm:$0xff]
    %v2286 = vld [vmem:[%s2273 + $0x60] sm:$0xff]
    %v2287 = vld [vmem:[%s2273 + $0x68] sm:$0xff]
    %v2288 = vld [vmem:[%s2273 + $0x70] sm:$0xff]
    %v2289 = vld [vmem:[%s2273 + $0x78] sm:$0xff]
    %v2290 = vld [vmem:[%s2273 + $0x80] sm:$0xff]
    %v2291 = vld [vmem:[%s2273 + $0x88] sm:$0xff]
    %v2292 = vld [vmem:[%s2273 + $0x90] sm:$0xff]
    %v2293 = vld [vmem:[%s2273 + $0x98] sm:$0xff]
    %v2294 = vld [vmem:[%s2273 + $0xa0] sm:$0xff]
    %v2295 = vld [vmem:[%s2273 + $0xa8] sm:$0xff]
    %v2296 = vld [vmem:[%s2273 + $0xb0] sm:$0xff]
    %v2297 = vld [vmem:[%s2273 + $0xb8] sm:$0xff]
    %v2298 = vld [vmem:[%s2273 + $0xc0] sm:$0xff]
    %v2299 = vld [vmem:[%s2273 + $0xc8] sm:$0xff]
    %v2300 = vld [vmem:[%s2273 + $0xd0] sm:$0xff]
    %v2301 = vld [vmem:[%s2273 + $0xd8] sm:$0xff]
    %v2302 = vld [vmem:[%s2273 + $0xe0] sm:$0xff]
    %v2303 = vld [vmem:[%s2273 + $0xe8] sm:$0xff]
    %v2304 = vld [vmem:[%s2273 + $0xf0] sm:$0xff]
    %v2305 = vld [vmem:[%s2273 + $0xf8] sm:$0xff]
    %2306 = vmatpush.msra.mxu0 %v2289
    %2307 = vmatpush.msra.mxu0 %v2288
    %2308 = vmatpush.msra.mxu0 %v2287
    %2309 = vmatpush.msra.mxu0 %v2286
    %2310 = vmatpush.msra.mxu0 %v2285
    %2311 = vmatpush.msra.mxu0 %v2284
    %2312 = vmatpush.msra.mxu0 %v2283
    %2313 = vmatpush.msra.mxu0 %v2282
    %2314 = vmatpush.msra.mxu0 %v2281
    %2315 = vmatpush.msra.mxu0 %v2280
    %2316 = vmatpush.msra.mxu0 %v2279
    %2317 = vmatpush.msra.mxu0 %v2278
    %2318 = vmatpush.msra.mxu0 %v2277
    %2319 = vmatpush.msra.mxu0 %v2276
    %2320 = vmatpush.msra.mxu0 %v2275
    %2321 = vmatpush.msra.mxu0 %v2274
    %2322 = vmatmul.f32.gmra.mxu0 %v621
    %v2323 = vpop.f32.mrf.mxu0
    %v2324 = vadd.f32 0.0, %v2323
    %2325 = vdwg.mxu0
    %2326 = vmatpush.msra.mxu0 %v2305
    %2327 = vmatpush.msra.mxu0 %v2304
    %2328 = vmatpush.msra.mxu0 %v2303
    %2329 = vmatpush.msra.mxu0 %v2302
    %2330 = vmatpush.msra.mxu0 %v2301
    %2331 = vmatpush.msra.mxu0 %v2300
    %2332 = vmatpush.msra.mxu0 %v2299
    %2333 = vmatpush.msra.mxu0 %v2298
    %2334 = vmatpush.msra.mxu0 %v2297
    %2335 = vmatpush.msra.mxu0 %v2296
    %2336 = vmatpush.msra.mxu0 %v2295
    %2337 = vmatpush.msra.mxu0 %v2294
    %2338 = vmatpush.msra.mxu0 %v2293
    %2339 = vmatpush.msra.mxu0 %v2292
    %2340 = vmatpush.msra.mxu0 %v2291
    %2341 = vmatpush.msra.mxu0 %v2290
    %2342 = vmatmul.f32.gmra.mxu0 %v622
    %v2343 = vpop.f32.mrf.mxu0
    %v2344 = vadd.f32 %v2324, %v2343
    %2345 = vdwg.mxu0
    %v2347 = vrot.slane %v2198, 7
    %v2350 = vrot.slane %v2271, 6
    %v2353 = vrot.slane %v2344, 5
    %v2355 = vsel %vm2049, %v2125, %v2347
    %v2356 = vsel %vm2051, %v2355, %v2350
    %v2357 = vsel %vm2053, %v2356, %v2353
    %2359 = vrot.lane.b32.xlu0 %v1748, 124
    %v2360 = vpop.permute.xlu0 %2359
    %v2361 = vsel %vm194, %v2360, 0
    %v2364 = vsel %vm198, %v2357, 0
    %2366 = vmatpush.msra.mxu0 0.0
    %2367 = vmatpush.msra.mxu0 0.0
    %2368 = vmatpush.msra.mxu0 0.0
    %2369 = vmatpush.msra.mxu0 0.0
    %2370 = vmatpush.msra.mxu0 0.0
    %2371 = vmatpush.msra.mxu0 0.0
    %2372 = vmatpush.msra.mxu0 0.0
    %2373 = vmatpush.msra.mxu0 0.0
    %2374 = vmatpush.msra.mxu0 0.0
    %2375 = vmatpush.msra.mxu0 0.0
    %2376 = vmatpush.msra.mxu0 0.0
    %2377 = vmatpush.msra.mxu0 0.0
    %2378 = vmatpush.msra.mxu0 0.0
    %2379 = vmatpush.msra.mxu0 0.0
    %2380 = vmatpush.msra.mxu0 0.0
    %2381 = vmatpush.msra.mxu0 %v2364
    %2382 = vmatmul.f32.gmra.mxu0 %v2361
    %v2383 = vpop.f32.mrf.mxu0
    %v2384 = vadd.f32 0.0, %v2383
    %2385 = vdwg.mxu0
    %v2386 = vsel %vm194, %v1748, 0
    %v2389 = vsel %vm198, %v2054, 0
    %2391 = vmatpush.msra.mxu0 0.0
    %2392 = vmatpush.msra.mxu0 0.0
    %2393 = vmatpush.msra.mxu0 0.0
    %2394 = vmatpush.msra.mxu0 0.0
    %2395 = vmatpush.msra.mxu0 0.0
    %2396 = vmatpush.msra.mxu0 0.0
    %2397 = vmatpush.msra.mxu0 0.0
    %2398 = vmatpush.msra.mxu0 0.0
    %2399 = vmatpush.msra.mxu0 0.0
    %2400 = vmatpush.msra.mxu0 0.0
    %2401 = vmatpush.msra.mxu0 0.0
    %2402 = vmatpush.msra.mxu0 0.0
    %2403 = vmatpush.msra.mxu0 0.0
    %2404 = vmatpush.msra.mxu0 0.0
    %2405 = vmatpush.msra.mxu0 0.0
    %2406 = vmatpush.msra.mxu0 %v2389
    %2407 = vmatmul.f32.gmra.mxu0 %v2386
    %v2408 = vpop.f32.mrf.mxu0
    %v2409 = vadd.f32 %v2384, %v2408
    %2410 = vdwg.mxu0
    %2411 = vmatpush.msra.mxu0 %v1764
    %2412 = vmatpush.msra.mxu0 %v1763
    %2413 = vmatpush.msra.mxu0 %v1762
    %2414 = vmatpush.msra.mxu0 %v1761
    %2415 = vmatpush.msra.mxu0 %v1760
    %2416 = vmatpush.msra.mxu0 %v1759
    %2417 = vmatpush.msra.mxu0 %v1758
    %2418 = vmatpush.msra.mxu0 %v1757
    %2419 = vmatpush.msra.mxu0 %v1756
    %2420 = vmatpush.msra.mxu0 %v1755
    %2421 = vmatpush.msra.mxu0 %v1754
    %2422 = vmatpush.msra.mxu0 %v1753
    %2423 = vmatpush.msra.mxu0 %v1752
    %2424 = vmatpush.msra.mxu0 %v1751
    %2425 = vmatpush.msra.mxu0 %v1750
    %2426 = vmatpush.msra.mxu0 %v1749
    %2427 = vmatmul.f32.gmra.mxu0 %v627
    %v2428 = vpop.f32.mrf.mxu0
    %v2429 = vadd.f32 0.0, %v2428
    %2430 = vdwg.mxu0
    %2431 = vmatpush.msra.mxu0 %v1780
    %2432 = vmatpush.msra.mxu0 %v1779
    %2433 = vmatpush.msra.mxu0 %v1778
    %2434 = vmatpush.msra.mxu0 %v1777
    %2435 = vmatpush.msra.mxu0 %v1776
    %2436 = vmatpush.msra.mxu0 %v1775
    %2437 = vmatpush.msra.mxu0 %v1774
    %2438 = vmatpush.msra.mxu0 %v1773
    %2439 = vmatpush.msra.mxu0 %v1772
    %2440 = vmatpush.msra.mxu0 %v1771
    %2441 = vmatpush.msra.mxu0 %v1770
    %2442 = vmatpush.msra.mxu0 %v1769
    %2443 = vmatpush.msra.mxu0 %v1768
    %2444 = vmatpush.msra.mxu0 %v1767
    %2445 = vmatpush.msra.mxu0 %v1766
    %2446 = vmatpush.msra.mxu0 %v1765
    %2447 = vmatmul.f32.gmra.mxu0 %v628
    %v2448 = vpop.f32.mrf.mxu0
    %v2449 = vadd.f32 %v2429, %v2448
    %2450 = vdwg.mxu0
    %2451 = vmatpush.msra.mxu0 %v1837
    %2452 = vmatpush.msra.mxu0 %v1836
    %2453 = vmatpush.msra.mxu0 %v1835
    %2454 = vmatpush.msra.mxu0 %v1834
    %2455 = vmatpush.msra.mxu0 %v1833
    %2456 = vmatpush.msra.mxu0 %v1832
    %2457 = vmatpush.msra.mxu0 %v1831
    %2458 = vmatpush.msra.mxu0 %v1830
    %2459 = vmatpush.msra.mxu0 %v1829
    %2460 = vmatpush.msra.mxu0 %v1828
    %2461 = vmatpush.msra.mxu0 %v1827
    %2462 = vmatpush.msra.mxu0 %v1826
    %2463 = vmatpush.msra.mxu0 %v1825
    %2464 = vmatpush.msra.mxu0 %v1824
    %2465 = vmatpush.msra.mxu0 %v1823
    %2466 = vmatpush.msra.mxu0 %v1822
    %2467 = vmatmul.f32.gmra.mxu0 %v627
    %v2468 = vpop.f32.mrf.mxu0
    %v2469 = vadd.f32 0.0, %v2468
    %2470 = vdwg.mxu0
    %2471 = vmatpush.msra.mxu0 %v1853
    %2472 = vmatpush.msra.mxu0 %v1852
    %2473 = vmatpush.msra.mxu0 %v1851
    %2474 = vmatpush.msra.mxu0 %v1850
    %2475 = vmatpush.msra.mxu0 %v1849
    %2476 = vmatpush.msra.mxu0 %v1848
    %2477 = vmatpush.msra.mxu0 %v1847
    %2478 = vmatpush.msra.mxu0 %v1846
    %2479 = vmatpush.msra.mxu0 %v1845
    %2480 = vmatpush.msra.mxu0 %v1844
    %2481 = vmatpush.msra.mxu0 %v1843
    %2482 = vmatpush.msra.mxu0 %v1842
    %2483 = vmatpush.msra.mxu0 %v1841
    %2484 = vmatpush.msra.mxu0 %v1840
    %2485 = vmatpush.msra.mxu0 %v1839
    %2486 = vmatpush.msra.mxu0 %v1838
    %2487 = vmatmul.f32.gmra.mxu0 %v628
    %v2488 = vpop.f32.mrf.mxu0
    %v2489 = vadd.f32 %v2469, %v2488
    %2490 = vdwg.mxu0
    %2491 = vmatpush.msra.mxu0 %v1910
    %2492 = vmatpush.msra.mxu0 %v1909
    %2493 = vmatpush.msra.mxu0 %v1908
    %2494 = vmatpush.msra.mxu0 %v1907
    %2495 = vmatpush.msra.mxu0 %v1906
    %2496 = vmatpush.msra.mxu0 %v1905
    %2497 = vmatpush.msra.mxu0 %v1904
    %2498 = vmatpush.msra.mxu0 %v1903
    %2499 = vmatpush.msra.mxu0 %v1902
    %2500 = vmatpush.msra.mxu0 %v1901
    %2501 = vmatpush.msra.mxu0 %v1900
    %2502 = vmatpush.msra.mxu0 %v1899
    %2503 = vmatpush.msra.mxu0 %v1898
    %2504 = vmatpush.msra.mxu0 %v1897
    %2505 = vmatpush.msra.mxu0 %v1896
    %2506 = vmatpush.msra.mxu0 %v1895
    %2507 = vmatmul.f32.gmra.mxu0 %v627
    %v2508 = vpop.f32.mrf.mxu0
    %v2509 = vadd.f32 0.0, %v2508
    %2510 = vdwg.mxu0
    %2511 = vmatpush.msra.mxu0 %v1926
    %2512 = vmatpush.msra.mxu0 %v1925
    %2513 = vmatpush.msra.mxu0 %v1924
    %2514 = vmatpush.msra.mxu0 %v1923
    %2515 = vmatpush.msra.mxu0 %v1922
    %2516 = vmatpush.msra.mxu0 %v1921
    %2517 = vmatpush.msra.mxu0 %v1920
    %2518 = vmatpush.msra.mxu0 %v1919
    %2519 = vmatpush.msra.mxu0 %v1918
    %2520 = vmatpush.msra.mxu0 %v1917
    %2521 = vmatpush.msra.mxu0 %v1916
    %2522 = vmatpush.msra.mxu0 %v1915
    %2523 = vmatpush.msra.mxu0 %v1914
    %2524 = vmatpush.msra.mxu0 %v1913
    %2525 = vmatpush.msra.mxu0 %v1912
    %2526 = vmatpush.msra.mxu0 %v1911
    %2527 = vmatmul.f32.gmra.mxu0 %v628
    %v2528 = vpop.f32.mrf.mxu0
    %v2529 = vadd.f32 %v2509, %v2528
    %2530 = vdwg.mxu0
    %2531 = vmatpush.msra.mxu0 %v1983
    %2532 = vmatpush.msra.mxu0 %v1982
    %2533 = vmatpush.msra.mxu0 %v1981
    %2534 = vmatpush.msra.mxu0 %v1980
    %2535 = vmatpush.msra.mxu0 %v1979
    %2536 = vmatpush.msra.mxu0 %v1978
    %2537 = vmatpush.msra.mxu0 %v1977
    %2538 = vmatpush.msra.mxu0 %v1976
    %2539 = vmatpush.msra.mxu0 %v1975
    %2540 = vmatpush.msra.mxu0 %v1974
    %2541 = vmatpush.msra.mxu0 %v1973
    %2542 = vmatpush.msra.mxu0 %v1972
    %2543 = vmatpush.msra.mxu0 %v1971
    %2544 = vmatpush.msra.mxu0 %v1970
    %2545 = vmatpush.msra.mxu0 %v1969
    %2546 = vmatpush.msra.mxu0 %v1968
    %2547 = vmatmul.f32.gmra.mxu0 %v627
    %v2548 = vpop.f32.mrf.mxu0
    %v2549 = vadd.f32 0.0, %v2548
    %2550 = vdwg.mxu0
    %2551 = vmatpush.msra.mxu0 %v1999
    %2552 = vmatpush.msra.mxu0 %v1998
    %2553 = vmatpush.msra.mxu0 %v1997
    %2554 = vmatpush.msra.mxu0 %v1996
    %2555 = vmatpush.msra.mxu0 %v1995
    %2556 = vmatpush.msra.mxu0 %v1994
    %2557 = vmatpush.msra.mxu0 %v1993
    %2558 = vmatpush.msra.mxu0 %v1992
    %2559 = vmatpush.msra.mxu0 %v1991
    %2560 = vmatpush.msra.mxu0 %v1990
    %2561 = vmatpush.msra.mxu0 %v1989
    %2562 = vmatpush.msra.mxu0 %v1988
    %2563 = vmatpush.msra.mxu0 %v1987
    %2564 = vmatpush.msra.mxu0 %v1986
    %2565 = vmatpush.msra.mxu0 %v1985
    %2566 = vmatpush.msra.mxu0 %v1984
    %2567 = vmatmul.f32.gmra.mxu0 %v628
    %v2568 = vpop.f32.mrf.mxu0
    %v2569 = vadd.f32 %v2549, %v2568
    %2570 = vdwg.mxu0
    %v2572 = vrot.slane %v2489, 7
    %v2575 = vrot.slane %v2529, 6
    %v2578 = vrot.slane %v2569, 5
    %v2580 = vsel %vm2049, %v2449, %v2572
    %v2581 = vsel %vm2051, %v2580, %v2575
    %v2582 = vsel %vm2053, %v2581, %v2578
    %2583 = vmatpush.msra.mxu0 %v2070
    %2584 = vmatpush.msra.mxu0 %v2069
    %2585 = vmatpush.msra.mxu0 %v2068
    %2586 = vmatpush.msra.mxu0 %v2067
    %2587 = vmatpush.msra.mxu0 %v2066
    %2588 = vmatpush.msra.mxu0 %v2065
    %2589 = vmatpush.msra.mxu0 %v2064
    %2590 = vmatpush.msra.mxu0 %v2063
    %2591 = vmatpush.msra.mxu0 %v2062
    %2592 = vmatpush.msra.mxu0 %v2061
    %2593 = vmatpush.msra.mxu0 %v2060
    %2594 = vmatpush.msra.mxu0 %v2059
    %2595 = vmatpush.msra.mxu0 %v2058
    %2596 = vmatpush.msra.mxu0 %v2057
    %2597 = vmatpush.msra.mxu0 %v2056
    %2598 = vmatpush.msra.mxu0 %v2055
    %2599 = vmatmul.f32.gmra.mxu0 %v627
    %v2600 = vpop.f32.mrf.mxu0
    %v2601 = vadd.f32 0.0, %v2600
    %2602 = vdwg.mxu0
    %2603 = vmatpush.msra.mxu0 %v2086
    %2604 = vmatpush.msra.mxu0 %v2085
    %2605 = vmatpush.msra.mxu0 %v2084
    %2606 = vmatpush.msra.mxu0 %v2083
    %2607 = vmatpush.msra.mxu0 %v2082
    %2608 = vmatpush.msra.mxu0 %v2081
    %2609 = vmatpush.msra.mxu0 %v2080
    %2610 = vmatpush.msra.mxu0 %v2079
    %2611 = vmatpush.msra.mxu0 %v2078
    %2612 = vmatpush.msra.mxu0 %v2077
    %2613 = vmatpush.msra.mxu0 %v2076
    %2614 = vmatpush.msra.mxu0 %v2075
    %2615 = vmatpush.msra.mxu0 %v2074
    %2616 = vmatpush.msra.mxu0 %v2073
    %2617 = vmatpush.msra.mxu0 %v2072
    %2618 = vmatpush.msra.mxu0 %v2071
    %2619 = vmatmul.f32.gmra.mxu0 %v628
    %v2620 = vpop.f32.mrf.mxu0
    %v2621 = vadd.f32 %v2601, %v2620
    %2622 = vdwg.mxu0
    %2623 = vmatpush.msra.mxu0 %v2143
    %2624 = vmatpush.msra.mxu0 %v2142
    %2625 = vmatpush.msra.mxu0 %v2141
    %2626 = vmatpush.msra.mxu0 %v2140
    %2627 = vmatpush.msra.mxu0 %v2139
    %2628 = vmatpush.msra.mxu0 %v2138
    %2629 = vmatpush.msra.mxu0 %v2137
    %2630 = vmatpush.msra.mxu0 %v2136
    %2631 = vmatpush.msra.mxu0 %v2135
    %2632 = vmatpush.msra.mxu0 %v2134
    %2633 = vmatpush.msra.mxu0 %v2133
    %2634 = vmatpush.msra.mxu0 %v2132
    %2635 = vmatpush.msra.mxu0 %v2131
    %2636 = vmatpush.msra.mxu0 %v2130
    %2637 = vmatpush.msra.mxu0 %v2129
    %2638 = vmatpush.msra.mxu0 %v2128
    %2639 = vmatmul.f32.gmra.mxu0 %v627
    %v2640 = vpop.f32.mrf.mxu0
    %v2641 = vadd.f32 0.0, %v2640
    %2642 = vdwg.mxu0
    %2643 = vmatpush.msra.mxu0 %v2159
    %2644 = vmatpush.msra.mxu0 %v2158
    %2645 = vmatpush.msra.mxu0 %v2157
    %2646 = vmatpush.msra.mxu0 %v2156
    %2647 = vmatpush.msra.mxu0 %v2155
    %2648 = vmatpush.msra.mxu0 %v2154
    %2649 = vmatpush.msra.mxu0 %v2153
    %2650 = vmatpush.msra.mxu0 %v2152
    %2651 = vmatpush.msra.mxu0 %v2151
    %2652 = vmatpush.msra.mxu0 %v2150
    %2653 = vmatpush.msra.mxu0 %v2149
    %2654 = vmatpush.msra.mxu0 %v2148
    %2655 = vmatpush.msra.mxu0 %v2147
    %2656 = vmatpush.msra.mxu0 %v2146
    %2657 = vmatpush.msra.mxu0 %v2145
    %2658 = vmatpush.msra.mxu0 %v2144
    %2659 = vmatmul.f32.gmra.mxu0 %v628
    %v2660 = vpop.f32.mrf.mxu0
    %v2661 = vadd.f32 %v2641, %v2660
    %2662 = vdwg.mxu0
    %2663 = vmatpush.msra.mxu0 %v2216
    %2664 = vmatpush.msra.mxu0 %v2215
    %2665 = vmatpush.msra.mxu0 %v2214
    %2666 = vmatpush.msra.mxu0 %v2213
    %2667 = vmatpush.msra.mxu0 %v2212
    %2668 = vmatpush.msra.mxu0 %v2211
    %2669 = vmatpush.msra.mxu0 %v2210
    %2670 = vmatpush.msra.mxu0 %v2209
    %2671 = vmatpush.msra.mxu0 %v2208
    %2672 = vmatpush.msra.mxu0 %v2207
    %2673 = vmatpush.msra.mxu0 %v2206
    %2674 = vmatpush.msra.mxu0 %v2205
    %2675 = vmatpush.msra.mxu0 %v2204
    %2676 = vmatpush.msra.mxu0 %v2203
    %2677 = vmatpush.msra.mxu0 %v2202
    %2678 = vmatpush.msra.mxu0 %v2201
    %2679 = vmatmul.f32.gmra.mxu0 %v627
    %v2680 = vpop.f32.mrf.mxu0
    %v2681 = vadd.f32 0.0, %v2680
    %2682 = vdwg.mxu0
    %2683 = vmatpush.msra.mxu0 %v2232
    %2684 = vmatpush.msra.mxu0 %v2231
    %2685 = vmatpush.msra.mxu0 %v2230
    %2686 = vmatpush.msra.mxu0 %v2229
    %2687 = vmatpush.msra.mxu0 %v2228
    %2688 = vmatpush.msra.mxu0 %v2227
    %2689 = vmatpush.msra.mxu0 %v2226
    %2690 = vmatpush.msra.mxu0 %v2225
    %2691 = vmatpush.msra.mxu0 %v2224
    %2692 = vmatpush.msra.mxu0 %v2223
    %2693 = vmatpush.msra.mxu0 %v2222
    %2694 = vmatpush.msra.mxu0 %v2221
    %2695 = vmatpush.msra.mxu0 %v2220
    %2696 = vmatpush.msra.mxu0 %v2219
    %2697 = vmatpush.msra.mxu0 %v2218
    %2698 = vmatpush.msra.mxu0 %v2217
    %2699 = vmatmul.f32.gmra.mxu0 %v628
    %v2700 = vpop.f32.mrf.mxu0
    %v2701 = vadd.f32 %v2681, %v2700
    %2702 = vdwg.mxu0
    %2703 = vmatpush.msra.mxu0 %v2289
    %2704 = vmatpush.msra.mxu0 %v2288
    %2705 = vmatpush.msra.mxu0 %v2287
    %2706 = vmatpush.msra.mxu0 %v2286
    %2707 = vmatpush.msra.mxu0 %v2285
    %2708 = vmatpush.msra.mxu0 %v2284
    %2709 = vmatpush.msra.mxu0 %v2283
    %2710 = vmatpush.msra.mxu0 %v2282
    %2711 = vmatpush.msra.mxu0 %v2281
    %2712 = vmatpush.msra.mxu0 %v2280
    %2713 = vmatpush.msra.mxu0 %v2279
    %2714 = vmatpush.msra.mxu0 %v2278
    %2715 = vmatpush.msra.mxu0 %v2277
    %2716 = vmatpush.msra.mxu0 %v2276
    %2717 = vmatpush.msra.mxu0 %v2275
    %2718 = vmatpush.msra.mxu0 %v2274
    %2719 = vmatmul.f32.gmra.mxu0 %v627
    %v2720 = vpop.f32.mrf.mxu0
    %v2721 = vadd.f32 0.0, %v2720
    %2722 = vdwg.mxu0
    %2723 = vmatpush.msra.mxu0 %v2305
    %2724 = vmatpush.msra.mxu0 %v2304
    %2725 = vmatpush.msra.mxu0 %v2303
    %2726 = vmatpush.msra.mxu0 %v2302
    %2727 = vmatpush.msra.mxu0 %v2301
    %2728 = vmatpush.msra.mxu0 %v2300
    %2729 = vmatpush.msra.mxu0 %v2299
    %2730 = vmatpush.msra.mxu0 %v2298
    %2731 = vmatpush.msra.mxu0 %v2297
    %2732 = vmatpush.msra.mxu0 %v2296
    %2733 = vmatpush.msra.mxu0 %v2295
    %2734 = vmatpush.msra.mxu0 %v2294
    %2735 = vmatpush.msra.mxu0 %v2293
    %2736 = vmatpush.msra.mxu0 %v2292
    %2737 = vmatpush.msra.mxu0 %v2291
    %2738 = vmatpush.msra.mxu0 %v2290
    %2739 = vmatmul.f32.gmra.mxu0 %v628
    %v2740 = vpop.f32.mrf.mxu0
    %v2741 = vadd.f32 %v2721, %v2740
    %2742 = vdwg.mxu0
    %v2744 = vrot.slane %v2661, 7
    %v2747 = vrot.slane %v2701, 6
    %v2750 = vrot.slane %v2741, 5
    %v2752 = vsel %vm2049, %v2621, %v2744
    %v2753 = vsel %vm2051, %v2752, %v2747
    %v2754 = vsel %vm2053, %v2753, %v2750
    %v2756 = vsel %vm198, %v2754, 0
    %2758 = vmatpush.msra.mxu0 0.0
    %2759 = vmatpush.msra.mxu0 0.0
    %2760 = vmatpush.msra.mxu0 0.0
    %2761 = vmatpush.msra.mxu0 0.0
    %2762 = vmatpush.msra.mxu0 0.0
    %2763 = vmatpush.msra.mxu0 0.0
    %2764 = vmatpush.msra.mxu0 0.0
    %2765 = vmatpush.msra.mxu0 0.0
    %2766 = vmatpush.msra.mxu0 0.0
    %2767 = vmatpush.msra.mxu0 0.0
    %2768 = vmatpush.msra.mxu0 0.0
    %2769 = vmatpush.msra.mxu0 0.0
    %2770 = vmatpush.msra.mxu0 0.0
    %2771 = vmatpush.msra.mxu0 0.0
    %2772 = vmatpush.msra.mxu0 0.0
    %2773 = vmatpush.msra.mxu0 %v2756
    %2774 = vmatmul.f32.gmra.mxu0 %v2361
    %v2775 = vpop.f32.mrf.mxu0
    %v2776 = vadd.f32 0.0, %v2775
    %2777 = vdwg.mxu0
    %v2779 = vsel %vm198, %v2582, 0
    %2781 = vmatpush.msra.mxu0 0.0
    %2782 = vmatpush.msra.mxu0 0.0
    %2783 = vmatpush.msra.mxu0 0.0
    %2784 = vmatpush.msra.mxu0 0.0
    %2785 = vmatpush.msra.mxu0 0.0
    %2786 = vmatpush.msra.mxu0 0.0
    %2787 = vmatpush.msra.mxu0 0.0
    %2788 = vmatpush.msra.mxu0 0.0
    %2789 = vmatpush.msra.mxu0 0.0
    %2790 = vmatpush.msra.mxu0 0.0
    %2791 = vmatpush.msra.mxu0 0.0
    %2792 = vmatpush.msra.mxu0 0.0
    %2793 = vmatpush.msra.mxu0 0.0
    %2794 = vmatpush.msra.mxu0 0.0
    %2795 = vmatpush.msra.mxu0 0.0
    %2796 = vmatpush.msra.mxu0 %v2779
    %2797 = vmatmul.f32.gmra.mxu0 %v2386
    %v2798 = vpop.f32.mrf.mxu0
    %v2799 = vadd.f32 %v2776, %v2798
    %2800 = vdwg.mxu0
    %v2801 = vld [vmem:[%s15] sm:$0xff]
    %v2802 = vld [vmem:[%s16] sm:$0xff]
    %vm2803 = vcmask 326656
    %v2804 = vsel %vm2803, %v2409, 0.0
    %2805 = vadd.xlane.f32.xlu0 %v2804
    %v2806 = vpop.xlane.xlu0 %2805
    %v2807 = vadd.f32 %v2806, 0.0
    %v2808 = vsel %vm2803, %v2799, 0.0
    %2809 = vadd.xlane.f32.xlu0 %v2808
    %v2810 = vpop.xlane.xlu0 %2809
    %v2811 = vadd.f32 %v2807, %v2810
    %v2812 = vmul.f32 %v2811, 0.0125
    %v2813 = vsub.f32 %v2409, %v2812
    %v2814 = vmul.f32 %v2813, %v2813
    %v2815 = vsel %vm2803, %v2814, 0.0
    %2816 = vadd.xlane.f32.xlu0 %v2815
    %v2817 = vpop.xlane.xlu0 %2816
    %v2818 = vadd.f32 %v2817, 0.0
    %v2819 = vsub.f32 %v2799, %v2812
    %v2820 = vmul.f32 %v2819, %v2819
    %v2821 = vsel %vm2803, %v2820, 0.0
    %2822 = vadd.xlane.f32.xlu0 %v2821
    %v2823 = vpop.xlane.xlu0 %2822
    %v2824 = vadd.f32 %v2818, %v2823
    %v2825 = vmul.f32 %v2824, 0.0125
    %v2826 = vadd.f32 %v2825, 1e-05
    %v2827 = vrsqrt.pop %v2826
    %v2828 = vmul.f32 %v2827, %v2826
    %v2829 = vmul.f32 %v2828, %v2827
    %v2830 = vmul.f32 0.5, %v2829
    %v2831 = vsub.f32 1.5, %v2830
    %v2832 = vmul.f32 %v2827, %v2831
    %vm2833 = vweird.f32 %v2826
    %vm2834 = vweird.f32 %v2827
    %vm2835 = vmor %vm2833, %vm2834
    %v2836 = vsel %vm2835, %v2827, %v2832
    %v2837 = vmul.f32 %v2801, %v2836
    %v2838 = vmul.f32 %v2812, %v2837
    %v2839 = vsub.f32 %v2802, %v2838
    %2841 = vset.pattern.permute.xlu0 0
    %2842 = vperm.xlu0 %2841, %v2837
    %v2843 = vpop.permute.xlu0 %2842
    %v2845 = vmul.f32 %v2409, %v2843
    %2847 = vset.pattern.permute.xlu0 0
    %2848 = vperm.xlu0 %2847, %v2839
    %v2849 = vpop.permute.xlu0 %2848
    %v2851 = vadd.f32 %v2845, %v2849
    %v2852 = vmax.f32 %v2851, 0.0
    %v2853 = vmul.f32 %v2799, %v2843
    %v2854 = vadd.f32 %v2853, %v2849
    %v2855 = vmax.f32 %v2854, 0.0
    %v2856 = vld [vmem:[%s25] sm:$0xff]
    %v2857 = vld [vmem:[%s25 + $0x8] sm:$0xff]
    %v2858 = vld [vmem:[%s25 + $0x10] sm:$0xff]
    %v2859 = vld [vmem:[%s25 + $0x18] sm:$0xff]
    %v2860 = vld [vmem:[%s25 + $0x20] sm:$0xff]
    %v2861 = vld [vmem:[%s25 + $0x28] sm:$0xff]
    %v2862 = vld [vmem:[%s25 + $0x30] sm:$0xff]
    %v2863 = vld [vmem:[%s25 + $0x38] sm:$0xff]
    %v2864 = vld [vmem:[%s25 + $0x40] sm:$0xff]
    %v2865 = vld [vmem:[%s25 + $0x48] sm:$0xff]
    %v2866 = vld [vmem:[%s26] sm:$0xff]
    %v2867 = vld [vmem:[%s26 + $0x8] sm:$0xff]
    %v2868 = vld [vmem:[%s26 + $0x10] sm:$0xff]
    %v2869 = vld [vmem:[%s26 + $0x18] sm:$0xff]
    %v2870 = vld [vmem:[%s26 + $0x20] sm:$0xff]
    %v2871 = vld [vmem:[%s26 + $0x28] sm:$0xff]
    %v2872 = vld [vmem:[%s26 + $0x30] sm:$0xff]
    %v2873 = vld [vmem:[%s26 + $0x38] sm:$0xff]
    %v2874 = vld [vmem:[%s26 + $0x40] sm:$0xff]
    %v2875 = vld [vmem:[%s26 + $0x48] sm:$0xff]
    %v2877 = vrot.slane %v2852, 4
    %v2878 = vsel %vm2803, %v2877, 0
    %2880 = vmatpush.msra.mxu0 0.0
    %2881 = vmatpush.msra.mxu0 0.0
    %2882 = vmatpush.msra.mxu0 0.0
    %2883 = vmatpush.msra.mxu0 0.0
    %2884 = vmatpush.msra.mxu0 0.0
    %2885 = vmatpush.msra.mxu0 0.0
    %2886 = vmatpush.msra.mxu0 0.0
    %2887 = vmatpush.msra.mxu0 0.0
    %2888 = vmatpush.msra.mxu0 0.0
    %2889 = vmatpush.msra.mxu0 0.0
    %2890 = vmatpush.msra.mxu0 0.0
    %2891 = vmatpush.msra.mxu0 %v2874
    %2892 = vmatpush.msra.mxu0 %v2872
    %2893 = vmatpush.msra.mxu0 %v2870
    %2894 = vmatpush.msra.mxu0 %v2868
    %2895 = vmatpush.msra.mxu0 %v2866
    %2896 = vmatmul.f32.gmra.mxu0 %v2878
    %v2897 = vpop.f32.mrf.mxu0
    %v2898 = vadd.f32 0.0, %v2897
    %2899 = vdwg.mxu0
    %2900 = vmatpush.msra.mxu0 0.0
    %2901 = vmatpush.msra.mxu0 0.0
    %2902 = vmatpush.msra.mxu0 0.0
    %2903 = vmatpush.msra.mxu0 0.0
    %2904 = vmatpush.msra.mxu0 0.0
    %2905 = vmatpush.msra.mxu0 0.0
    %2906 = vmatpush.msra.mxu0 0.0
    %2907 = vmatpush.msra.mxu0 0.0
    %2908 = vmatpush.msra.mxu0 0.0
    %2909 = vmatpush.msra.mxu0 0.0
    %2910 = vmatpush.msra.mxu0 0.0
    %2911 = vmatpush.msra.mxu0 %v2875
    %2912 = vmatpush.msra.mxu0 %v2873
    %2913 = vmatpush.msra.mxu0 %v2871
    %2914 = vmatpush.msra.mxu0 %v2869
    %2915 = vmatpush.msra.mxu0 %v2867
    %2916 = vmatmul.f32.gmra.mxu0 %v2878
    %v2917 = vpop.f32.mrf.mxu0
    %v2918 = vadd.f32 0.0, %v2917
    %2919 = vdwg.mxu0
    %v2920 = vsel %vm2803, %v2852, 0
    %2922 = vmatpush.msra.mxu0 0.0
    %2923 = vmatpush.msra.mxu0 0.0
    %2924 = vmatpush.msra.mxu0 0.0
    %2925 = vmatpush.msra.mxu0 0.0
    %2926 = vmatpush.msra.mxu0 0.0
    %2927 = vmatpush.msra.mxu0 0.0
    %2928 = vmatpush.msra.mxu0 0.0
    %2929 = vmatpush.msra.mxu0 0.0
    %2930 = vmatpush.msra.mxu0 0.0
    %2931 = vmatpush.msra.mxu0 0.0
    %2932 = vmatpush.msra.mxu0 0.0
    %2933 = vmatpush.msra.mxu0 %v2864
    %2934 = vmatpush.msra.mxu0 %v2862
    %2935 = vmatpush.msra.mxu0 %v2860
    %2936 = vmatpush.msra.mxu0 %v2858
    %2937 = vmatpush.msra.mxu0 %v2856
    %2938 = vmatmul.f32.gmra.mxu0 %v2920
    %v2939 = vpop.f32.mrf.mxu0
    %v2940 = vadd.f32 %v2898, %v2939
    %2941 = vdwg.mxu0
    %2942 = vmatpush.msra.mxu0 0.0
    %2943 = vmatpush.msra.mxu0 0.0
    %2944 = vmatpush.msra.mxu0 0.0
    %2945 = vmatpush.msra.mxu0 0.0
    %2946 = vmatpush.msra.mxu0 0.0
    %2947 = vmatpush.msra.mxu0 0.0
    %2948 = vmatpush.msra.mxu0 0.0
    %2949 = vmatpush.msra.mxu0 0.0
    %2950 = vmatpush.msra.mxu0 0.0
    %2951 = vmatpush.msra.mxu0 0.0
    %2952 = vmatpush.msra.mxu0 0.0
    %2953 = vmatpush.msra.mxu0 %v2865
    %2954 = vmatpush.msra.mxu0 %v2863
    %2955 = vmatpush.msra.mxu0 %v2861
    %2956 = vmatpush.msra.mxu0 %v2859
    %2957 = vmatpush.msra.mxu0 %v2857
    %2958 = vmatmul.f32.gmra.mxu0 %v2920
    %v2959 = vpop.f32.mrf.mxu0
    %v2960 = vadd.f32 %v2918, %v2959
    %2961 = vdwg.mxu0
    %v2963 = vrot.slane %v2855, 4
    %v2964 = vsel %vm2803, %v2963, 0
    %2966 = vmatpush.msra.mxu0 0.0
    %2967 = vmatpush.msra.mxu0 0.0
    %2968 = vmatpush.msra.mxu0 0.0
    %2969 = vmatpush.msra.mxu0 0.0
    %2970 = vmatpush.msra.mxu0 0.0
    %2971 = vmatpush.msra.mxu0 0.0
    %2972 = vmatpush.msra.mxu0 0.0
    %2973 = vmatpush.msra.mxu0 0.0
    %2974 = vmatpush.msra.mxu0 0.0
    %2975 = vmatpush.msra.mxu0 0.0
    %2976 = vmatpush.msra.mxu0 0.0
    %2977 = vmatpush.msra.mxu0 %v2874
    %2978 = vmatpush.msra.mxu0 %v2872
    %2979 = vmatpush.msra.mxu0 %v2870
    %2980 = vmatpush.msra.mxu0 %v2868
    %2981 = vmatpush.msra.mxu0 %v2866
    %2982 = vmatmul.f32.gmra.mxu0 %v2964
    %v2983 = vpop.f32.mrf.mxu0
    %v2984 = vadd.f32 0.0, %v2983
    %2985 = vdwg.mxu0
    %2986 = vmatpush.msra.mxu0 0.0
    %2987 = vmatpush.msra.mxu0 0.0
    %2988 = vmatpush.msra.mxu0 0.0
    %2989 = vmatpush.msra.mxu0 0.0
    %2990 = vmatpush.msra.mxu0 0.0
    %2991 = vmatpush.msra.mxu0 0.0
    %2992 = vmatpush.msra.mxu0 0.0
    %2993 = vmatpush.msra.mxu0 0.0
    %2994 = vmatpush.msra.mxu0 0.0
    %2995 = vmatpush.msra.mxu0 0.0
    %2996 = vmatpush.msra.mxu0 0.0
    %2997 = vmatpush.msra.mxu0 %v2875
    %2998 = vmatpush.msra.mxu0 %v2873
    %2999 = vmatpush.msra.mxu0 %v2871
    %3000 = vmatpush.msra.mxu0 %v2869
    %3001 = vmatpush.msra.mxu0 %v2867
    %3002 = vmatmul.f32.gmra.mxu0 %v2964
    %v3003 = vpop.f32.mrf.mxu0
    %v3004 = vadd.f32 0.0, %v3003
    %3005 = vdwg.mxu0
    %v3006 = vsel %vm2803, %v2855, 0
    %3008 = vmatpush.msra.mxu0 0.0
    %3009 = vmatpush.msra.mxu0 0.0
    %3010 = vmatpush.msra.mxu0 0.0
    %3011 = vmatpush.msra.mxu0 0.0
    %3012 = vmatpush.msra.mxu0 0.0
    %3013 = vmatpush.msra.mxu0 0.0
    %3014 = vmatpush.msra.mxu0 0.0
    %3015 = vmatpush.msra.mxu0 0.0
    %3016 = vmatpush.msra.mxu0 0.0
    %3017 = vmatpush.msra.mxu0 0.0
    %3018 = vmatpush.msra.mxu0 0.0
    %3019 = vmatpush.msra.mxu0 %v2864
    %3020 = vmatpush.msra.mxu0 %v2862
    %3021 = vmatpush.msra.mxu0 %v2860
    %3022 = vmatpush.msra.mxu0 %v2858
    %3023 = vmatpush.msra.mxu0 %v2856
    %3024 = vmatmul.f32.gmra.mxu0 %v3006
    %v3025 = vpop.f32.mrf.mxu0
    %v3026 = vadd.f32 %v2984, %v3025
    %3027 = vdwg.mxu0
    %3028 = vmatpush.msra.mxu0 0.0
    %3029 = vmatpush.msra.mxu0 0.0
    %3030 = vmatpush.msra.mxu0 0.0
    %3031 = vmatpush.msra.mxu0 0.0
    %3032 = vmatpush.msra.mxu0 0.0
    %3033 = vmatpush.msra.mxu0 0.0
    %3034 = vmatpush.msra.mxu0 0.0
    %3035 = vmatpush.msra.mxu0 0.0
    %3036 = vmatpush.msra.mxu0 0.0
    %3037 = vmatpush.msra.mxu0 0.0
    %3038 = vmatpush.msra.mxu0 0.0
    %3039 = vmatpush.msra.mxu0 %v2865
    %3040 = vmatpush.msra.mxu0 %v2863
    %3041 = vmatpush.msra.mxu0 %v2861
    %3042 = vmatpush.msra.mxu0 %v2859
    %3043 = vmatpush.msra.mxu0 %v2857
    %3044 = vmatmul.f32.gmra.mxu0 %v3006
    %v3045 = vpop.f32.mrf.mxu0
    %v3046 = vadd.f32 %v3004, %v3045
    %3047 = vdwg.mxu0
    %v3048 = vld [vmem:[%s7] sm:$0xff]
    %v3049 = vld [vmem:[%s8] sm:$0xff]
    %v3050 = vadd.f32 %v621, %v1537
    %v3051 = vadd.f32 %v622, %v1577
    %v3052 = vadd.f32 %v3050, %v2940
    %v3053 = vadd.f32 %v3051, %v2960
    %v3055 = vsel %vm194, %v3049, 0
    %v3058 = vsel %vm198, %v3052, 0
    %v3061 = vsel %vm198, %v3053, 0
    %3063 = vmatpush.msra.mxu0 0.0
    %3064 = vmatpush.msra.mxu0 0.0
    %3065 = vmatpush.msra.mxu0 0.0
    %3066 = vmatpush.msra.mxu0 0.0
    %3067 = vmatpush.msra.mxu0 0.0
    %3068 = vmatpush.msra.mxu0 0.0
    %3069 = vmatpush.msra.mxu0 0.0
    %3070 = vmatpush.msra.mxu0 0.0
    %3071 = vmatpush.msra.mxu0 0.0
    %3072 = vmatpush.msra.mxu0 0.0
    %3073 = vmatpush.msra.mxu0 0.0
    %3074 = vmatpush.msra.mxu0 0.0
    %3075 = vmatpush.msra.mxu0 0.0
    %3076 = vmatpush.msra.mxu0 0.0
    %3077 = vmatpush.msra.mxu0 0.0
    %3078 = vmatpush.msra.mxu0 %v3058
    %3079 = vmatmul.f32.gmra.mxu0 %v3055
    %v3080 = vpop.f32.mrf.mxu0
    %v3081 = vadd.f32 0.0, %v3080
    %3082 = vdwg.mxu0
    %3083 = vmatpush.msra.mxu0 0.0
    %3084 = vmatpush.msra.mxu0 0.0
    %3085 = vmatpush.msra.mxu0 0.0
    %3086 = vmatpush.msra.mxu0 0.0
    %3087 = vmatpush.msra.mxu0 0.0
    %3088 = vmatpush.msra.mxu0 0.0
    %3089 = vmatpush.msra.mxu0 0.0
    %3090 = vmatpush.msra.mxu0 0.0
    %3091 = vmatpush.msra.mxu0 0.0
    %3092 = vmatpush.msra.mxu0 0.0
    %3093 = vmatpush.msra.mxu0 0.0
    %3094 = vmatpush.msra.mxu0 0.0
    %3095 = vmatpush.msra.mxu0 0.0
    %3096 = vmatpush.msra.mxu0 0.0
    %3097 = vmatpush.msra.mxu0 0.0
    %3098 = vmatpush.msra.mxu0 %v3061
    %3099 = vmatmul.f32.gmra.mxu0 %v3055
    %v3100 = vpop.f32.mrf.mxu0
    %v3101 = vadd.f32 0.0, %v3100
    %3102 = vdwg.mxu0
    %3103 = vst [vmem:[#allocation1] ss:$2 sm:$0xff] %v182
    %v3104 = vld.sshfl [vmem:[#allocation1] sm:$0xff pattern:$0x75316420]
    %v3105 = vld.sshfl [vmem:[#allocation1 + $0x8] sm:$0xff pattern:$0x75316420]
    %v3107 = vsel %vm194, %v3048, 0
    %v3109 = vsel %vm198, %v3104, 0
    %v3111 = vsel %vm198, %v3105, 0
    %3113 = vmatpush.msra.mxu0 0.0
    %3114 = vmatpush.msra.mxu0 0.0
    %3115 = vmatpush.msra.mxu0 0.0
    %3116 = vmatpush.msra.mxu0 0.0
    %3117 = vmatpush.msra.mxu0 0.0
    %3118 = vmatpush.msra.mxu0 0.0
    %3119 = vmatpush.msra.mxu0 0.0
    %3120 = vmatpush.msra.mxu0 0.0
    %3121 = vmatpush.msra.mxu0 0.0
    %3122 = vmatpush.msra.mxu0 0.0
    %3123 = vmatpush.msra.mxu0 0.0
    %3124 = vmatpush.msra.mxu0 0.0
    %3125 = vmatpush.msra.mxu0 0.0
    %3126 = vmatpush.msra.mxu0 0.0
    %3127 = vmatpush.msra.mxu0 0.0
    %3128 = vmatpush.msra.mxu0 %v3109
    %3129 = vmatmul.f32.gmra.mxu0 %v3107
    %v3130 = vpop.f32.mrf.mxu0
    %v3131 = vadd.f32 %v3081, %v3130
    %3132 = vdwg.mxu0
    %3133 = vmatpush.msra.mxu0 0.0
    %3134 = vmatpush.msra.mxu0 0.0
    %3135 = vmatpush.msra.mxu0 0.0
    %3136 = vmatpush.msra.mxu0 0.0
    %3137 = vmatpush.msra.mxu0 0.0
    %3138 = vmatpush.msra.mxu0 0.0
    %3139 = vmatpush.msra.mxu0 0.0
    %3140 = vmatpush.msra.mxu0 0.0
    %3141 = vmatpush.msra.mxu0 0.0
    %3142 = vmatpush.msra.mxu0 0.0
    %3143 = vmatpush.msra.mxu0 0.0
    %3144 = vmatpush.msra.mxu0 0.0
    %3145 = vmatpush.msra.mxu0 0.0
    %3146 = vmatpush.msra.mxu0 0.0
    %3147 = vmatpush.msra.mxu0 0.0
    %3148 = vmatpush.msra.mxu0 %v3111
    %3149 = vmatmul.f32.gmra.mxu0 %v3107
    %v3150 = vpop.f32.mrf.mxu0
    %v3151 = vadd.f32 %v3101, %v3150
    %3152 = vdwg.mxu0
    %v3153 = vadd.f32 %v627, %v1706
    %v3154 = vadd.f32 %v628, %v1746
    %v3155 = vadd.f32 %v3153, %v3026
    %v3156 = vadd.f32 %v3154, %v3046
    %v3158 = vsel %vm198, %v3155, 0
    %v3161 = vsel %vm198, %v3156, 0
    %3163 = vmatpush.msra.mxu0 0.0
    %3164 = vmatpush.msra.mxu0 0.0
    %3165 = vmatpush.msra.mxu0 0.0
    %3166 = vmatpush.msra.mxu0 0.0
    %3167 = vmatpush.msra.mxu0 0.0
    %3168 = vmatpush.msra.mxu0 0.0
    %3169 = vmatpush.msra.mxu0 0.0
    %3170 = vmatpush.msra.mxu0 0.0
    %3171 = vmatpush.msra.mxu0 0.0
    %3172 = vmatpush.msra.mxu0 0.0
    %3173 = vmatpush.msra.mxu0 0.0
    %3174 = vmatpush.msra.mxu0 0.0
    %3175 = vmatpush.msra.mxu0 0.0
    %3176 = vmatpush.msra.mxu0 0.0
    %3177 = vmatpush.msra.mxu0 0.0
    %3178 = vmatpush.msra.mxu0 %v3158
    %3179 = vmatmul.f32.gmra.mxu0 %v3055
    %v3180 = vpop.f32.mrf.mxu0
    %v3181 = vadd.f32 0.0, %v3180
    %3182 = vdwg.mxu0
    %3183 = vmatpush.msra.mxu0 0.0
    %3184 = vmatpush.msra.mxu0 0.0
    %3185 = vmatpush.msra.mxu0 0.0
    %3186 = vmatpush.msra.mxu0 0.0
    %3187 = vmatpush.msra.mxu0 0.0
    %3188 = vmatpush.msra.mxu0 0.0
    %3189 = vmatpush.msra.mxu0 0.0
    %3190 = vmatpush.msra.mxu0 0.0
    %3191 = vmatpush.msra.mxu0 0.0
    %3192 = vmatpush.msra.mxu0 0.0
    %3193 = vmatpush.msra.mxu0 0.0
    %3194 = vmatpush.msra.mxu0 0.0
    %3195 = vmatpush.msra.mxu0 0.0
    %3196 = vmatpush.msra.mxu0 0.0
    %3197 = vmatpush.msra.mxu0 0.0
    %3198 = vmatpush.msra.mxu0 %v3161
    %3199 = vmatmul.f32.gmra.mxu0 %v3055
    %v3200 = vpop.f32.mrf.mxu0
    %v3201 = vadd.f32 0.0, %v3200
    %3202 = vdwg.mxu0
    %3203 = vst [vmem:[#allocation1] ss:$2 sm:$0xff] %v184
    %v3204 = vld.sshfl [vmem:[#allocation1] sm:$0xff pattern:$0x75316420]
    %v3205 = vld.sshfl [vmem:[#allocation1 + $0x8] sm:$0xff pattern:$0x75316420]
    %v3206 = vsel %vm198, %v3204, 0
    %v3208 = vsel %vm198, %v3205, 0
    %3210 = vmatpush.msra.mxu0 0.0
    %3211 = vmatpush.msra.mxu0 0.0
    %3212 = vmatpush.msra.mxu0 0.0
    %3213 = vmatpush.msra.mxu0 0.0
    %3214 = vmatpush.msra.mxu0 0.0
    %3215 = vmatpush.msra.mxu0 0.0
    %3216 = vmatpush.msra.mxu0 0.0
    %3217 = vmatpush.msra.mxu0 0.0
    %3218 = vmatpush.msra.mxu0 0.0
    %3219 = vmatpush.msra.mxu0 0.0
    %3220 = vmatpush.msra.mxu0 0.0
    %3221 = vmatpush.msra.mxu0 0.0
    %3222 = vmatpush.msra.mxu0 0.0
    %3223 = vmatpush.msra.mxu0 0.0
    %3224 = vmatpush.msra.mxu0 0.0
    %3225 = vmatpush.msra.mxu0 %v3206
    %3226 = vmatmul.f32.gmra.mxu0 %v3107
    %v3227 = vpop.f32.mrf.mxu0
    %v3228 = vadd.f32 %v3181, %v3227
    %3229 = vdwg.mxu0
    %3230 = vmatpush.msra.mxu0 0.0
    %3231 = vmatpush.msra.mxu0 0.0
    %3232 = vmatpush.msra.mxu0 0.0
    %3233 = vmatpush.msra.mxu0 0.0
    %3234 = vmatpush.msra.mxu0 0.0
    %3235 = vmatpush.msra.mxu0 0.0
    %3236 = vmatpush.msra.mxu0 0.0
    %3237 = vmatpush.msra.mxu0 0.0
    %3238 = vmatpush.msra.mxu0 0.0
    %3239 = vmatpush.msra.mxu0 0.0
    %3240 = vmatpush.msra.mxu0 0.0
    %3241 = vmatpush.msra.mxu0 0.0
    %3242 = vmatpush.msra.mxu0 0.0
    %3243 = vmatpush.msra.mxu0 0.0
    %3244 = vmatpush.msra.mxu0 0.0
    %3245 = vmatpush.msra.mxu0 %v3208
    %3246 = vmatmul.f32.gmra.mxu0 %v3107
    %v3247 = vpop.f32.mrf.mxu0
    %v3248 = vadd.f32 %v3201, %v3247
    %3249 = vdwg.mxu0
    %v3250 = vld [vmem:[%s17] sm:$0xff]
    %v3251 = vld [vmem:[%s18] sm:$0xff]
    %v3252 = vadd.f32 %v3131, %v3151
    %3253 = vadd.xlane.f32.xlu0 %v3252
    %v3254 = vpop.xlane.xlu0 %3253
    %v3255 = vadd.f32 %v3254, 0.0
    %v3256 = vadd.f32 %v3228, %v3248
    %3257 = vadd.xlane.f32.xlu0 %v3256
    %v3258 = vpop.xlane.xlu0 %3257
    %v3259 = vadd.f32 %v3255, %v3258
    %v3260 = vmul.f32 %v3259, 0.001953125
    %v3261 = vsub.f32 %v3131, %v3260
    %v3262 = vsub.f32 %v3151, %v3260
    %v3263 = vmul.f32 %v3261, %v3261
    %v3264 = vmul.f32 %v3262, %v3262
    %v3265 = vadd.f32 %v3263, %v3264
    %3266 = vadd.xlane.f32.xlu0 %v3265
    %v3267 = vpop.xlane.xlu0 %3266
    %v3268 = vadd.f32 %v3267, 0.0
    %v3269 = vsub.f32 %v3228, %v3260
    %v3270 = vsub.f32 %v3248, %v3260
    %v3271 = vmul.f32 %v3269, %v3269
    %v3272 = vmul.f32 %v3270, %v3270
    %v3273 = vadd.f32 %v3271, %v3272
    %3274 = vadd.xlane.f32.xlu0 %v3273
    %v3275 = vpop.xlane.xlu0 %3274
    %v3276 = vadd.f32 %v3268, %v3275
    %v3277 = vmul.f32 %v3276, 0.001953125
    %v3278 = vadd.f32 %v3277, 1e-05
    %v3279 = vrsqrt.pop %v3278
    %v3280 = vmul.f32 %v3279, %v3278
    %v3281 = vmul.f32 %v3280, %v3279
    %v3282 = vmul.f32 0.5, %v3281
    %v3283 = vsub.f32 1.5, %v3282
    %v3284 = vmul.f32 %v3279, %v3283
    %vm3285 = vweird.f32 %v3278
    %vm3286 = vweird.f32 %v3279
    %vm3287 = vmor %vm3285, %vm3286
    %v3288 = vsel %vm3287, %v3279, %v3284
    %v3289 = vmul.f32 %v3250, %v3288
    %v3290 = vmul.f32 %v3260, %v3289
    %v3291 = vsub.f32 %v3251, %v3290
    %3293 = vset.pattern.permute.xlu0 0
    %3294 = vperm.xlu0 %3293, %v3289
    %v3295 = vpop.permute.xlu0 %3294
    %v3297 = vmul.f32 %v3131, %v3295
    %v3298 = vmul.f32 %v3151, %v3295
    %3300 = vset.pattern.permute.xlu0 0
    %3301 = vperm.xlu0 %3300, %v3291
    %v3302 = vpop.permute.xlu0 %3301
    %v3304 = vadd.f32 %v3297, %v3302
    %v3305 = vadd.f32 %v3298, %v3302
    %v3306 = vmax.f32 %v3304, 0.0
    %v3307 = vmax.f32 %v3305, 0.0
    %v3308 = vmul.f32 %v3228, %v3295
    %v3309 = vmul.f32 %v3248, %v3295
    %v3310 = vadd.f32 %v3308, %v3302
    %v3311 = vadd.f32 %v3309, %v3302
    %v3312 = vmax.f32 %v3310, 0.0
    %v3313 = vmax.f32 %v3311, 0.0
    %3314 = vst [vmem:[%s28] sm:$0xff] %v3306
    %3315 = vst [vmem:[%s28 + $0x8] sm:$0xff] %v3307
    %s3316 = scalar_lea.vmem %s28, 16
    %3317 = vst [vmem:[%s3316] sm:$0xff] %v3312
    %3318 = vst [vmem:[%s3316 + $0x8] sm:$0xff] %v3313
    // Predicated region
    $region134: #{ffconvset_forward.1} parent=1 // pred_check
      _
    $region135: #{ffconvset_forward.1} parent=1 // pred_check_branch
      %3320 = sbr.rel (0) target = $region137
    $region136: #{ffconvset_forward.1} parent=1 // pred_region
      _
    $region137: #{ffconvset_forward.1} parent=1 // pred_fallthru
      _
    // Predicated region
    $region138: #{ffconvset_forward.1} parent=1 // pred_check
      _
    $region139: #{ffconvset_forward.1} parent=1 // pred_check_branch
      %3322 = sbr.rel (0) target = $region141
    $region140: #{ffconvset_forward.1} parent=1 // pred_region
      _
    $region141: #{ffconvset_forward.1} parent=1 // pred_fallthru
      _
    // Predicated region
    $region142: #{ffconvset_forward.1} parent=1 // pred_check
      _
    $region143: #{ffconvset_forward.1} parent=1 // pred_check_branch
      %3324 = sbr.rel (0) target = $region145
    $region144: #{ffconvset_forward.1} parent=1 // pred_region
      _
    $region145: #{ffconvset_forward.1} parent=1 // pred_fallthru
      _
    // Predicated region
    $region146: #{ffconvset_forward.1} parent=1 // pred_check
      _
    $region147: #{ffconvset_forward.1} parent=1 // pred_check_branch
      %3326 = sbr.rel (0) target = $region149
    $region148: #{ffconvset_forward.1} parent=1 // pred_region
      _
    $region149: #{ffconvset_forward.1} parent=1 // pred_fallthru
      _
    %3327 = vsyncpa [#allocation3], 1
    %3328 = vsyncpa [#allocation5], 1
    %3329 = vsyncpa [#allocation8], 1
    %3330 = vsyncpa [#allocation11], 1

</llo_original>
